<compile_context>
chip_gen: v7x
topology: tpu7x:2x2x1
jax: 0.10.0
libtpu: 0.0.40
codegen_flags: <defaults>
</compile_context>

<pallas_src>
import numpy as np
import jax
import jax.numpy as jnp
from jax.experimental import pallas as pl
from jax.experimental.pallas import tpu as pltpu


# ----------------------------- glue: parameter lowering ----------------------------- #

def interp_matrix(n_in, n_out):
    """1-D bilinear interpolation matrix (n_out, n_in), align_corners=True."""
    if n_out > 1:
        src = np.arange(n_out, dtype=np.float64) * (n_in - 1) / (n_out - 1)
    else:
        src = np.zeros((1,), np.float64)
    i0 = np.clip(np.floor(src).astype(np.int64), 0, n_in - 1)
    i1 = np.clip(i0 + 1, 0, n_in - 1)
    frac = src - i0
    A = np.zeros((n_out, n_in), np.float64)
    A[np.arange(n_out), i0] += 1.0 - frac
    A[np.arange(n_out), i1] += frac
    return A.astype(np.float32)


def bf16_round(a):
    return jnp.asarray(a, jnp.float32).astype(jnp.bfloat16).astype(jnp.float32)


# --------------------------------- pallas kernel ------------------------------------ #

def make_upblock(B, Cin, Cout, H, W, scale=2):
    Hout, Wout = H * scale, W * scale
    # Row stride of the flattened padded maps: >= Wout+2; nudged (a few extra zero
    # columns) so Hout*Wp is a multiple of 128 -> fully lane-dense GEMM N / output store.
    Wp = Wout + 2
    for extra in range(0, 9):
        if (Hout * (Wout + 2 + extra)) % 128 == 0:
            Wp = Wout + 2 + extra
            break
    Nout = Hout * Wp                # flattened (row-padded) output positions per image
    pad_len = (Hout + 3) * Wp       # padded map + slack so all 9 tap slices stay in bounds
    cdt = jnp.bfloat16              # MXU feed dtype (f32 accumulation everywhere)

    offs = [dh * Wp + dw for dh in range(3) for dw in range(3)]
    ctr = 4                         # center tap (dh=1, dw=1) == x_up at valid positions

    def kernel(x_ref, up_ref, w1_ref, t1_ref, w2_ref, t2_ref, wsc_ref, msk_ref,
               o_ref, pad1_ref, pad2_ref, act1_ref, act2_ref):
        # ---- bilinear x2 upsample (align_corners=True): one GEMM into row-padded layout
        x_up = jnp.dot(x_ref[0], up_ref[...],
                       preferred_element_type=jnp.float32)          # (Cin, Nout) f32

        # ---- padded map 1: [zero row | x_up (rows have built-in L/R zero cols) | zeros]
        pad1_ref[:, pl.ds(0, Wp)] = jnp.zeros((Cin, Wp), cdt)
        pad1_ref[:, pl.ds(Wp, Nout)] = x_up.astype(cdt)
        pad1_ref[:, pl.ds(Wp + Nout, 2 * Wp)] = jnp.zeros((Cin, 2 * Wp), cdt)

        # ---- conv1: 9 lane-offset taps stacked on sublanes -> one K=9*Cin GEMM
        for k in range(9):
            act1_ref[pl.ds(k * Cin, Cin), :] = pad1_ref[:, pl.ds(offs[k], Nout)]
        acc1 = jnp.dot(w1_ref[...], act1_ref[...],
                       preferred_element_type=jnp.float32)          # (Cout, Nout) f32
        # BN scale folded into w1; add shift, ReLU6, zero the junk (pad) columns
        y1 = jnp.clip(acc1 + t1_ref[...], 0.0, 6.0) * msk_ref[...]

        # ---- padded map 2 (junk columns of y1 are exactly the borders -> already zero)
        pad2_ref[:, pl.ds(0, Wp + 1)] = jnp.zeros((Cout, Wp + 1), cdt)
        pad2_ref[:, pl.ds(Wp + 1, Nout)] = y1.astype(cdt)
        pad2_ref[:, pl.ds(Wp + 1 + Nout, 2 * Wp - 1)] = jnp.zeros((Cout, 2 * Wp - 1), cdt)

        # ---- conv2: same fused-tap GEMM with K=9*Cout
        for k in range(9):
            act2_ref[pl.ds(k * Cout, Cout), :] = pad2_ref[:, pl.ds(offs[k], Nout)]
        acc2 = jnp.dot(w2_ref[...], act2_ref[...],
                       preferred_element_type=jnp.float32)          # (Cout, Nout) f32
        y2 = jnp.clip(acc2 + t2_ref[...], 0.0, 6.0)

        # ---- 1x1 shortcut: reuse the center tap of act1 (== upsampled input)
        sc = jnp.dot(wsc_ref[...], act1_ref[pl.ds(ctr * Cin, Cin), :],
                     preferred_element_type=jnp.float32)            # (Cout, Nout) f32

        # ---- residual add, lane-dense store
        o_ref[0] = (y2 + sc).astype(o_ref.dtype)

    flops_per_b = 2 * Nout * (Cin * H * W + 9 * Cin * Cout + 9 * Cout * Cout + Cin * Cout)
    bytes_per_b = Cin * H * W * 2 + Cout * Nout * 4
    weight_bytes = (H * W * Nout + 9 * Cin * Cout + 9 * Cout * Cout + Cin * Cout) * 2 \
                   + (Nout + 2 * Cout) * 4
    cost = pl.CostEstimate(flops=B * flops_per_b, transcendentals=0,
                           bytes_accessed=B * bytes_per_b + weight_bytes)

    call = pl.pallas_call(
        kernel,
        out_shape=jax.ShapeDtypeStruct((B, Cout, Nout), jnp.float32),
        grid_spec=pltpu.PrefetchScalarGridSpec(
            num_scalar_prefetch=0,
            grid=(B,),
            in_specs=[
                pl.BlockSpec((1, Cin, H * W), lambda b: (b, 0, 0)),   # x (bf16)
                pl.BlockSpec((H * W, Nout), lambda b: (0, 0)),        # upsample kron (bf16)
                pl.BlockSpec((Cout, 9 * Cin), lambda b: (0, 0)),      # conv1 w (scale-folded, bf16)
                pl.BlockSpec((Cout, 1), lambda b: (0, 0)),            # bn1 shift (f32)
                pl.BlockSpec((Cout, 9 * Cout), lambda b: (0, 0)),     # conv2 w (scale-folded, bf16)
                pl.BlockSpec((Cout, 1), lambda b: (0, 0)),            # bn2 shift (f32)
                pl.BlockSpec((Cout, Cin), lambda b: (0, 0)),          # shortcut w (bf16)
                pl.BlockSpec((1, Nout), lambda b: (0, 0)),            # valid-column mask (f32)
            ],
            out_specs=pl.BlockSpec((1, Cout, Nout), lambda b: (b, 0, 0)),
            scratch_shapes=[
                pltpu.VMEM((Cin, pad_len), cdt),       # padded upsampled input
                pltpu.VMEM((Cout, pad_len), cdt),      # padded conv1 output
                pltpu.VMEM((9 * Cin, Nout), cdt),      # conv1 im2col taps
                pltpu.VMEM((9 * Cout, Nout), cdt),     # conv2 im2col taps
            ],
        ),
        compiler_params=pltpu.CompilerParams(
            dimension_semantics=("parallel",),         # batch steps are independent
            vmem_limit_bytes=32 * 1024 * 1024),
        cost_estimate=cost,
    )
    return call, Hout, Wout, Wp, Nout


# ------------------------------------ reference -------------------------------------- #

def reference(x_r, up_r, w1f, t1, w2f, t2, wsc, Hout, Wout, Wp):
    """Plain-JAX reference mirroring the kernel's bf16 precision points
    (bf16-rounded inputs / folded weights / upsample operator / intermediate maps)."""
    B, Cin, H, W = x_r.shape
    hp = jax.lax.Precision.HIGHEST
    xu = jnp.einsum('bck,kn->bcn', x_r.reshape(B, Cin, H * W), up_r, precision=hp)
    xu = xu.reshape(B, Cin, Hout, Wp)[:, :, :, 1:Wout + 1]
    xu = bf16_round(xu)
    dn = ('NCHW', 'OIHW', 'NCHW')
    sc = jax.lax.conv_general_dilated(xu, wsc, (1, 1), 'VALID',
                                      dimension_numbers=dn, precision=hp)
    y1 = jax.lax.conv_general_dilated(xu, w1f, (1, 1), ((1, 1), (1, 1)),
                                      dimension_numbers=dn, precision=hp)
    y1 = bf16_round(jnp.clip(y1 + t1[None, :, None, None], 0.0, 6.0))
    y2 = jax.lax.conv_general_dilated(y1, w2f, (1, 1), ((1, 1), (1, 1)),
                                      dimension_numbers=dn, precision=hp)
    y2 = jnp.clip(y2 + t2[None, :, None, None], 0.0, 6.0)
    return y2 + sc


# -------------------------------------- main ----------------------------------------- #

if __name__ == "__main__":
    B, Cin, Cout, H, W, scale = 2, 4, 8, 16, 16, 2
    eps = 1e-5

    key = jax.random.PRNGKey(0)
    ks = jax.random.split(key, 12)
    x = jax.random.normal(ks[0], (B, Cin, H, W), jnp.float32)

    w1_oihw = jax.random.normal(ks[1], (Cout, Cin, 3, 3), jnp.float32) * 0.2
    w2_oihw = jax.random.normal(ks[2], (Cout, Cout, 3, 3), jnp.float32) * 0.15
    wsc_oihw = jax.random.normal(ks[3], (Cout, Cin, 1, 1), jnp.float32) * 0.3

    g1 = 1.0 + 0.1 * jax.random.normal(ks[4], (Cout,), jnp.float32)
    b1 = 0.1 * jax.random.normal(ks[5], (Cout,), jnp.float32)
    m1 = 0.1 * jax.random.normal(ks[6], (Cout,), jnp.float32)
    v1 = 0.5 + jax.random.uniform(ks[7], (Cout,), jnp.float32)
    g2 = 1.0 + 0.1 * jax.random.normal(ks[8], (Cout,), jnp.float32)
    b2 = 0.1 * jax.random.normal(ks[9], (Cout,), jnp.float32)
    m2 = 0.1 * jax.random.normal(ks[10], (Cout,), jnp.float32)
    v2 = 0.5 + jax.random.uniform(ks[11], (Cout,), jnp.float32)

    call, Hout, Wout, Wp, Nout = make_upblock(B, Cin, Cout, H, W, scale)

    # ----- inference-mode BN folding + bf16 precision points (shared with reference) -----
    inv1 = g1 / jnp.sqrt(v1 + eps)
    inv2 = g2 / jnp.sqrt(v2 + eps)
    t1 = (b1 - m1 * inv1).astype(jnp.float32)
    t2 = (b2 - m2 * inv2).astype(jnp.float32)

    x_r = bf16_round(x)
    w1f_r = bf16_round(w1_oihw * inv1[:, None, None, None])   # BN scale folded
    w2f_r = bf16_round(w2_oihw * inv2[:, None, None, None])
    wsc_r = bf16_round(wsc_oihw)

    # ----- upsample operator: kron(Ah^T, Aw_pad) maps (Cin, H*W) -> (Cin, Hout*Wp) -----
    Ah = interp_matrix(H, Hout)                        # (Hout, H)
    Aw = interp_matrix(W, Wout)                        # (Wout, W)
    Aw_pad = np.zeros((W, Wp), np.float32)
    Aw_pad[:, 1:Wout + 1] = Aw.T                       # built-in left/right zero pad cols
    up_np = np.kron(Ah.T, Aw_pad)                      # (H*W, Hout*Wp)
    up_r = bf16_round(jnp.asarray(up_np))

    col = np.arange(Nout) % Wp
    mask = jnp.asarray((col < Wout).astype(np.float32)[None, :])   # (1, Nout)

    # ----- kernel operands -----
    x_k = x_r.reshape(B, Cin, H * W).astype(jnp.bfloat16)
    up_k = up_r.astype(jnp.bfloat16)
    w1_k = jnp.transpose(w1f_r, (0, 2, 3, 1)).reshape(Cout, 9 * Cin).astype(jnp.bfloat16)
    w2_k = jnp.transpose(w2f_r, (0, 2, 3, 1)).reshape(Cout, 9 * Cout).astype(jnp.bfloat16)
    wsc_k = wsc_r[:, :, 0, 0].astype(jnp.bfloat16)
    t1_k = t1.reshape(Cout, 1)
    t2_k = t2.reshape(Cout, 1)

    out_flat = call(x_k, up_k, w1_k, t1_k, w2_k, t2_k, wsc_k, mask)
    out_flat = jax.block_until_ready(out_flat)

    # drop the pad columns -> NCHW (no transpose needed)
    out = out_flat.reshape(B, Cout, Hout, Wp)[:, :, :, :Wout]

    # ----- correctness check -----
    ref = reference(x_r, up_r, w1f_r, t1, w2f_r, t2, wsc_r, Hout, Wout, Wp)
    max_err = float(jnp.max(jnp.abs(out - ref)))
    if not jnp.allclose(out, ref, atol=2e-2, rtol=2e-2):
        raise AssertionError(f"Pallas kernel mismatch vs reference, max err = {max_err}")

    print("KERNEL_OK")
</pallas_src>

<mosaic_0001>
module attributes {stable_mosaic.version = 11 : i64} {
  func.func @kernel(%arg0: i32, %arg1: memref<1x4x256xbf16, #tpu.memory_space<vmem>>, %arg2: memref<256x1152xbf16, #tpu.memory_space<vmem>>, %arg3: memref<8x36xbf16, #tpu.memory_space<vmem>>, %arg4: memref<8x1xf32, #tpu.memory_space<vmem>>, %arg5: memref<8x72xbf16, #tpu.memory_space<vmem>>, %arg6: memref<8x1xf32, #tpu.memory_space<vmem>>, %arg7: memref<8x4xbf16, #tpu.memory_space<vmem>>, %arg8: memref<1x1152xf32, #tpu.memory_space<vmem>>, %arg9: memref<1x8x1152xf32, #tpu.memory_space<vmem>>, %arg10: memref<4x1260xbf16, #tpu.memory_space<vmem>>, %arg11: memref<8x1260xbf16, #tpu.memory_space<vmem>>, %arg12: memref<36x1152xbf16, #tpu.memory_space<vmem>>, %arg13: memref<72x1152xbf16, #tpu.memory_space<vmem>>) attributes {dimension_semantics = [#tpu.dimension_semantics<parallel>], iteration_bounds = array<i64: 2>, scalar_prefetch = 0 : i64, scratch_operands = 4 : i64, tpu.core_type = #tpu.core_type<tc>, window_params = [{transform_indices = @transform_0, window_bounds = array<i64: 1, 4, 256>}, {pipeline_mode = #tpu.pipeline_mode<synchronous>, transform_indices = @transform_1, window_bounds = array<i64: 256, 1152>}, {pipeline_mode = #tpu.pipeline_mode<synchronous>, transform_indices = @transform_2, window_bounds = array<i64: 8, 36>}, {pipeline_mode = #tpu.pipeline_mode<synchronous>, transform_indices = @transform_3, window_bounds = array<i64: 8, 1>}, {pipeline_mode = #tpu.pipeline_mode<synchronous>, transform_indices = @transform_4, window_bounds = array<i64: 8, 72>}, {pipeline_mode = #tpu.pipeline_mode<synchronous>, transform_indices = @transform_5, window_bounds = array<i64: 8, 1>}, {pipeline_mode = #tpu.pipeline_mode<synchronous>, transform_indices = @transform_6, window_bounds = array<i64: 8, 4>}, {pipeline_mode = #tpu.pipeline_mode<synchronous>, transform_indices = @transform_7, window_bounds = array<i64: 1, 1152>}, {transform_indices = @transform_8, window_bounds = array<i64: 1, 8, 1152>}]} {
    %c0 = arith.constant 0 : index
    %c0_0 = arith.constant 0 : index
    %c0_1 = arith.constant 0 : index
    %0 = vector.load %arg1[%c0, %c0_0, %c0_1] : memref<1x4x256xbf16, #tpu.memory_space<vmem>>, vector<1x4x256xbf16>
    %1 = vector.shape_cast %0 : vector<1x4x256xbf16> to vector<4x256xbf16>
    %c0_2 = arith.constant 0 : index
    %c0_3 = arith.constant 0 : index
    %2 = vector.load %arg2[%c0_2, %c0_3] : memref<256x1152xbf16, #tpu.memory_space<vmem>>, vector<256x1152xbf16>
    %cst = arith.constant dense<0.000000e+00> : vector<4x1152xf32>
    %3 = tpu.matmul %1, %2, %cst {dimension_numbers = #tpu.dot_dimension_numbers<[1], [0], [0], [1], [0, 0, 1, 1], [], []>} : vector<4x256xbf16>, vector<256x1152xbf16>, vector<4x1152xf32> -> vector<4x1152xf32>
    %cst_4 = arith.constant 0.000000e+00 : bf16
    %4 = vector.broadcast %cst_4 : bf16 to vector<4x36xbf16>
    %c0_5 = arith.constant 0 : index
    %c0_6 = arith.constant 0 : index
    %5 = vector.load %arg10[%c0_5, %c0_6] : memref<4x1260xbf16, #tpu.memory_space<vmem>>, vector<4x36xbf16>
    tpu.vector_store %arg10[%c0_5, %c0_6], %4 {strides = array<i32>} : memref<4x1260xbf16, #tpu.memory_space<vmem>>, vector<4x36xbf16>,
    %6 = arith.truncf %3 : vector<4x1152xf32> to vector<4x1152xbf16>
    %c0_7 = arith.constant 0 : index
    %c36 = arith.constant 36 : index
    %7 = vector.load %arg10[%c0_7, %c36] : memref<4x1260xbf16, #tpu.memory_space<vmem>>, vector<4x1152xbf16>
    tpu.vector_store %arg10[%c0_7, %c36], %6 {strides = array<i32>} : memref<4x1260xbf16, #tpu.memory_space<vmem>>, vector<4x1152xbf16>,
    %cst_8 = arith.constant 0.000000e+00 : bf16
    %8 = vector.broadcast %cst_8 : bf16 to vector<4x72xbf16>
    %c0_9 = arith.constant 0 : index
    %c1188 = arith.constant 1188 : index
    %9 = vector.load %arg10[%c0_9, %c1188] : memref<4x1260xbf16, #tpu.memory_space<vmem>>, vector<4x72xbf16>
    tpu.vector_store %arg10[%c0_9, %c1188], %8 {strides = array<i32>} : memref<4x1260xbf16, #tpu.memory_space<vmem>>, vector<4x72xbf16>,
    %c0_10 = arith.constant 0 : index
    %c0_11 = arith.constant 0 : index
    %10 = vector.load %arg10[%c0_10, %c0_11] : memref<4x1260xbf16, #tpu.memory_space<vmem>>, vector<4x1152xbf16>
    %c0_12 = arith.constant 0 : index
    %c0_13 = arith.constant 0 : index
    %11 = vector.load %arg12[%c0_12, %c0_13] : memref<36x1152xbf16, #tpu.memory_space<vmem>>, vector<4x1152xbf16>
    tpu.vector_store %arg12[%c0_12, %c0_13], %10 {strides = array<i32>} : memref<36x1152xbf16, #tpu.memory_space<vmem>>, vector<4x1152xbf16>,
    %c0_14 = arith.constant 0 : index
    %c1 = arith.constant 1 : index
    %12 = vector.load %arg10[%c0_14, %c1] : memref<4x1260xbf16, #tpu.memory_space<vmem>>, vector<4x1152xbf16>
    %c4 = arith.constant 4 : index
    %c0_15 = arith.constant 0 : index
    %13 = vector.load %arg12[%c4, %c0_15] : memref<36x1152xbf16, #tpu.memory_space<vmem>>, vector<4x1152xbf16>
    tpu.vector_store %arg12[%c4, %c0_15], %12 {strides = array<i32>} : memref<36x1152xbf16, #tpu.memory_space<vmem>>, vector<4x1152xbf16>,
    %c0_16 = arith.constant 0 : index
    %c2 = arith.constant 2 : index
    %14 = vector.load %arg10[%c0_16, %c2] : memref<4x1260xbf16, #tpu.memory_space<vmem>>, vector<4x1152xbf16>
    %c8 = arith.constant 8 : index
    %c0_17 = arith.constant 0 : index
    %15 = vector.load %arg12[%c8, %c0_17] : memref<36x1152xbf16, #tpu.memory_space<vmem>>, vector<4x1152xbf16>
    tpu.vector_store %arg12[%c8, %c0_17], %14 {strides = array<i32>} : memref<36x1152xbf16, #tpu.memory_space<vmem>>, vector<4x1152xbf16>,
    %c0_18 = arith.constant 0 : index
    %c36_19 = arith.constant 36 : index
    %16 = vector.load %arg10[%c0_18, %c36_19] : memref<4x1260xbf16, #tpu.memory_space<vmem>>, vector<4x1152xbf16>
    %c12 = arith.constant 12 : index
    %c0_20 = arith.constant 0 : index
    %17 = vector.load %arg12[%c12, %c0_20] : memref<36x1152xbf16, #tpu.memory_space<vmem>>, vector<4x1152xbf16>
    tpu.vector_store %arg12[%c12, %c0_20], %16 {strides = array<i32>} : memref<36x1152xbf16, #tpu.memory_space<vmem>>, vector<4x1152xbf16>,
    %c0_21 = arith.constant 0 : index
    %c37 = arith.constant 37 : index
    %18 = vector.load %arg10[%c0_21, %c37] : memref<4x1260xbf16, #tpu.memory_space<vmem>>, vector<4x1152xbf16>
    %c16 = arith.constant 16 : index
    %c0_22 = arith.constant 0 : index
    %19 = vector.load %arg12[%c16, %c0_22] : memref<36x1152xbf16, #tpu.memory_space<vmem>>, vector<4x1152xbf16>
    tpu.vector_store %arg12[%c16, %c0_22], %18 {strides = array<i32>} : memref<36x1152xbf16, #tpu.memory_space<vmem>>, vector<4x1152xbf16>,
    %c0_23 = arith.constant 0 : index
    %c38 = arith.constant 38 : index
    %20 = vector.load %arg10[%c0_23, %c38] : memref<4x1260xbf16, #tpu.memory_space<vmem>>, vector<4x1152xbf16>
    %c20 = arith.constant 20 : index
    %c0_24 = arith.constant 0 : index
    %21 = vector.load %arg12[%c20, %c0_24] : memref<36x1152xbf16, #tpu.memory_space<vmem>>, vector<4x1152xbf16>
    tpu.vector_store %arg12[%c20, %c0_24], %20 {strides = array<i32>} : memref<36x1152xbf16, #tpu.memory_space<vmem>>, vector<4x1152xbf16>,
    %c0_25 = arith.constant 0 : index
    %c72 = arith.constant 72 : index
    %22 = vector.load %arg10[%c0_25, %c72] : memref<4x1260xbf16, #tpu.memory_space<vmem>>, vector<4x1152xbf16>
    %c24 = arith.constant 24 : index
    %c0_26 = arith.constant 0 : index
    %23 = vector.load %arg12[%c24, %c0_26] : memref<36x1152xbf16, #tpu.memory_space<vmem>>, vector<4x1152xbf16>
    tpu.vector_store %arg12[%c24, %c0_26], %22 {strides = array<i32>} : memref<36x1152xbf16, #tpu.memory_space<vmem>>, vector<4x1152xbf16>,
    %c0_27 = arith.constant 0 : index
    %c73 = arith.constant 73 : index
    %24 = vector.load %arg10[%c0_27, %c73] : memref<4x1260xbf16, #tpu.memory_space<vmem>>, vector<4x1152xbf16>
    %c28 = arith.constant 28 : index
    %c0_28 = arith.constant 0 : index
    %25 = vector.load %arg12[%c28, %c0_28] : memref<36x1152xbf16, #tpu.memory_space<vmem>>, vector<4x1152xbf16>
    tpu.vector_store %arg12[%c28, %c0_28], %24 {strides = array<i32>} : memref<36x1152xbf16, #tpu.memory_space<vmem>>, vector<4x1152xbf16>,
    %c0_29 = arith.constant 0 : index
    %c74 = arith.constant 74 : index
    %26 = vector.load %arg10[%c0_29, %c74] : memref<4x1260xbf16, #tpu.memory_space<vmem>>, vector<4x1152xbf16>
    %c32 = arith.constant 32 : index
    %c0_30 = arith.constant 0 : index
    %27 = vector.load %arg12[%c32, %c0_30] : memref<36x1152xbf16, #tpu.memory_space<vmem>>, vector<4x1152xbf16>
    tpu.vector_store %arg12[%c32, %c0_30], %26 {strides = array<i32>} : memref<36x1152xbf16, #tpu.memory_space<vmem>>, vector<4x1152xbf16>,
    %c0_31 = arith.constant 0 : index
    %c0_32 = arith.constant 0 : index
    %28 = vector.load %arg3[%c0_31, %c0_32] : memref<8x36xbf16, #tpu.memory_space<vmem>>, vector<8x36xbf16>
    %c0_33 = arith.constant 0 : index
    %c0_34 = arith.constant 0 : index
    %29 = vector.load %arg12[%c0_33, %c0_34] : memref<36x1152xbf16, #tpu.memory_space<vmem>>, vector<36x1152xbf16>
    %cst_35 = arith.constant dense<0.000000e+00> : vector<8x1152xf32>
    %30 = tpu.matmul %28, %29, %cst_35 {dimension_numbers = #tpu.dot_dimension_numbers<[1], [0], [0], [1], [0, 0, 1, 1], [], []>} : vector<8x36xbf16>, vector<36x1152xbf16>, vector<8x1152xf32> -> vector<8x1152xf32>
    %c0_36 = arith.constant 0 : index
    %c0_37 = arith.constant 0 : index
    %31 = vector.load %arg4[%c0_36, %c0_37] : memref<8x1xf32, #tpu.memory_space<vmem>>, vector<8x1xf32>
    %32 = vector.broadcast %31 : vector<8x1xf32> to vector<8x1152xf32>
    %33 = arith.addf %30, %32 : vector<8x1152xf32>
    %cst_38 = arith.constant 0.000000e+00 : f32
    %cst_39 = arith.constant 6.000000e+00 : f32
    %34 = vector.broadcast %cst_38 : f32 to vector<8x1152xf32>
    %35 = arith.maximumf %34, %33 : vector<8x1152xf32>
    %36 = vector.broadcast %cst_39 : f32 to vector<8x1152xf32>
    %37 = arith.minimumf %36, %35 : vector<8x1152xf32>
    %c0_40 = arith.constant 0 : index
    %c0_41 = arith.constant 0 : index
    %38 = vector.load %arg8[%c0_40, %c0_41] : memref<1x1152xf32, #tpu.memory_space<vmem>>, vector<1x1152xf32>
    %39 = vector.broadcast %38 : vector<1x1152xf32> to vector<8x1152xf32>
    %40 = arith.mulf %37, %39 : vector<8x1152xf32>
    %cst_42 = arith.constant 0.000000e+00 : bf16
    %41 = vector.broadcast %cst_42 : bf16 to vector<8x37xbf16>
    %c0_43 = arith.constant 0 : index
    %c0_44 = arith.constant 0 : index
    %42 = vector.load %arg11[%c0_43, %c0_44] : memref<8x1260xbf16, #tpu.memory_space<vmem>>, vector<8x37xbf16>
    tpu.vector_store %arg11[%c0_43, %c0_44], %41 {strides = array<i32>} : memref<8x1260xbf16, #tpu.memory_space<vmem>>, vector<8x37xbf16>,
    %43 = arith.truncf %40 : vector<8x1152xf32> to vector<8x1152xbf16>
    %c0_45 = arith.constant 0 : index
    %c37_46 = arith.constant 37 : index
    %44 = vector.load %arg11[%c0_45, %c37_46] : memref<8x1260xbf16, #tpu.memory_space<vmem>>, vector<8x1152xbf16>
    tpu.vector_store %arg11[%c0_45, %c37_46], %43 {strides = array<i32>} : memref<8x1260xbf16, #tpu.memory_space<vmem>>, vector<8x1152xbf16>,
    %cst_47 = arith.constant 0.000000e+00 : bf16
    %45 = vector.broadcast %cst_47 : bf16 to vector<8x71xbf16>
    %c0_48 = arith.constant 0 : index
    %c1189 = arith.constant 1189 : index
    %46 = vector.load %arg11[%c0_48, %c1189] : memref<8x1260xbf16, #tpu.memory_space<vmem>>, vector<8x71xbf16>
    tpu.vector_store %arg11[%c0_48, %c1189], %45 {strides = array<i32>} : memref<8x1260xbf16, #tpu.memory_space<vmem>>, vector<8x71xbf16>,
    %c0_49 = arith.constant 0 : index
    %c0_50 = arith.constant 0 : index
    %47 = vector.load %arg11[%c0_49, %c0_50] : memref<8x1260xbf16, #tpu.memory_space<vmem>>, vector<8x1152xbf16>
    %c0_51 = arith.constant 0 : index
    %c0_52 = arith.constant 0 : index
    %48 = vector.load %arg13[%c0_51, %c0_52] : memref<72x1152xbf16, #tpu.memory_space<vmem>>, vector<8x1152xbf16>
    tpu.vector_store %arg13[%c0_51, %c0_52], %47 {strides = array<i32>} : memref<72x1152xbf16, #tpu.memory_space<vmem>>, vector<8x1152xbf16>,
    %c0_53 = arith.constant 0 : index
    %c1_54 = arith.constant 1 : index
    %49 = vector.load %arg11[%c0_53, %c1_54] : memref<8x1260xbf16, #tpu.memory_space<vmem>>, vector<8x1152xbf16>
    %c8_55 = arith.constant 8 : index
    %c0_56 = arith.constant 0 : index
    %50 = vector.load %arg13[%c8_55, %c0_56] : memref<72x1152xbf16, #tpu.memory_space<vmem>>, vector<8x1152xbf16>
    tpu.vector_store %arg13[%c8_55, %c0_56], %49 {strides = array<i32>} : memref<72x1152xbf16, #tpu.memory_space<vmem>>, vector<8x1152xbf16>,
    %c0_57 = arith.constant 0 : index
    %c2_58 = arith.constant 2 : index
    %51 = vector.load %arg11[%c0_57, %c2_58] : memref<8x1260xbf16, #tpu.memory_space<vmem>>, vector<8x1152xbf16>
    %c16_59 = arith.constant 16 : index
    %c0_60 = arith.constant 0 : index
    %52 = vector.load %arg13[%c16_59, %c0_60] : memref<72x1152xbf16, #tpu.memory_space<vmem>>, vector<8x1152xbf16>
    tpu.vector_store %arg13[%c16_59, %c0_60], %51 {strides = array<i32>} : memref<72x1152xbf16, #tpu.memory_space<vmem>>, vector<8x1152xbf16>,
    %c0_61 = arith.constant 0 : index
    %c36_62 = arith.constant 36 : index
    %53 = vector.load %arg11[%c0_61, %c36_62] : memref<8x1260xbf16, #tpu.memory_space<vmem>>, vector<8x1152xbf16>
    %c24_63 = arith.constant 24 : index
    %c0_64 = arith.constant 0 : index
    %54 = vector.load %arg13[%c24_63, %c0_64] : memref<72x1152xbf16, #tpu.memory_space<vmem>>, vector<8x1152xbf16>
    tpu.vector_store %arg13[%c24_63, %c0_64], %53 {strides = array<i32>} : memref<72x1152xbf16, #tpu.memory_space<vmem>>, vector<8x1152xbf16>,
    %c0_65 = arith.constant 0 : index
    %c37_66 = arith.constant 37 : index
    %55 = vector.load %arg11[%c0_65, %c37_66] : memref<8x1260xbf16, #tpu.memory_space<vmem>>, vector<8x1152xbf16>
    %c32_67 = arith.constant 32 : index
    %c0_68 = arith.constant 0 : index
    %56 = vector.load %arg13[%c32_67, %c0_68] : memref<72x1152xbf16, #tpu.memory_space<vmem>>, vector<8x1152xbf16>
    tpu.vector_store %arg13[%c32_67, %c0_68], %55 {strides = array<i32>} : memref<72x1152xbf16, #tpu.memory_space<vmem>>, vector<8x1152xbf16>,
    %c0_69 = arith.constant 0 : index
    %c38_70 = arith.constant 38 : index
    %57 = vector.load %arg11[%c0_69, %c38_70] : memref<8x1260xbf16, #tpu.memory_space<vmem>>, vector<8x1152xbf16>
    %c40 = arith.constant 40 : index
    %c0_71 = arith.constant 0 : index
    %58 = vector.load %arg13[%c40, %c0_71] : memref<72x1152xbf16, #tpu.memory_space<vmem>>, vector<8x1152xbf16>
    tpu.vector_store %arg13[%c40, %c0_71], %57 {strides = array<i32>} : memref<72x1152xbf16, #tpu.memory_space<vmem>>, vector<8x1152xbf16>,
    %c0_72 = arith.constant 0 : index
    %c72_73 = arith.constant 72 : index
    %59 = vector.load %arg11[%c0_72, %c72_73] : memref<8x1260xbf16, #tpu.memory_space<vmem>>, vector<8x1152xbf16>
    %c48 = arith.constant 48 : index
    %c0_74 = arith.constant 0 : index
    %60 = vector.load %arg13[%c48, %c0_74] : memref<72x1152xbf16, #tpu.memory_space<vmem>>, vector<8x1152xbf16>
    tpu.vector_store %arg13[%c48, %c0_74], %59 {strides = array<i32>} : memref<72x1152xbf16, #tpu.memory_space<vmem>>, vector<8x1152xbf16>,
    %c0_75 = arith.constant 0 : index
    %c73_76 = arith.constant 73 : index
    %61 = vector.load %arg11[%c0_75, %c73_76] : memref<8x1260xbf16, #tpu.memory_space<vmem>>, vector<8x1152xbf16>
    %c56 = arith.constant 56 : index
    %c0_77 = arith.constant 0 : index
    %62 = vector.load %arg13[%c56, %c0_77] : memref<72x1152xbf16, #tpu.memory_space<vmem>>, vector<8x1152xbf16>
    tpu.vector_store %arg13[%c56, %c0_77], %61 {strides = array<i32>} : memref<72x1152xbf16, #tpu.memory_space<vmem>>, vector<8x1152xbf16>,
    %c0_78 = arith.constant 0 : index
    %c74_79 = arith.constant 74 : index
    %63 = vector.load %arg11[%c0_78, %c74_79] : memref<8x1260xbf16, #tpu.memory_space<vmem>>, vector<8x1152xbf16>
    %c64 = arith.constant 64 : index
    %c0_80 = arith.constant 0 : index
    %64 = vector.load %arg13[%c64, %c0_80] : memref<72x1152xbf16, #tpu.memory_space<vmem>>, vector<8x1152xbf16>
    tpu.vector_store %arg13[%c64, %c0_80], %63 {strides = array<i32>} : memref<72x1152xbf16, #tpu.memory_space<vmem>>, vector<8x1152xbf16>,
    %c0_81 = arith.constant 0 : index
    %c0_82 = arith.constant 0 : index
    %65 = vector.load %arg5[%c0_81, %c0_82] : memref<8x72xbf16, #tpu.memory_space<vmem>>, vector<8x72xbf16>
    %c0_83 = arith.constant 0 : index
    %c0_84 = arith.constant 0 : index
    %66 = vector.load %arg13[%c0_83, %c0_84] : memref<72x1152xbf16, #tpu.memory_space<vmem>>, vector<72x1152xbf16>
    %cst_85 = arith.constant dense<0.000000e+00> : vector<8x1152xf32>
    %67 = tpu.matmul %65, %66, %cst_85 {dimension_numbers = #tpu.dot_dimension_numbers<[1], [0], [0], [1], [0, 0, 1, 1], [], []>} : vector<8x72xbf16>, vector<72x1152xbf16>, vector<8x1152xf32> -> vector<8x1152xf32>
    %c0_86 = arith.constant 0 : index
    %c0_87 = arith.constant 0 : index
    %68 = vector.load %arg6[%c0_86, %c0_87] : memref<8x1xf32, #tpu.memory_space<vmem>>, vector<8x1xf32>
    %69 = vector.broadcast %68 : vector<8x1xf32> to vector<8x1152xf32>
    %70 = arith.addf %67, %69 : vector<8x1152xf32>
    %cst_88 = arith.constant 0.000000e+00 : f32
    %cst_89 = arith.constant 6.000000e+00 : f32
    %71 = vector.broadcast %cst_88 : f32 to vector<8x1152xf32>
    %72 = arith.maximumf %71, %70 : vector<8x1152xf32>
    %73 = vector.broadcast %cst_89 : f32 to vector<8x1152xf32>
    %74 = arith.minimumf %73, %72 : vector<8x1152xf32>
    %c0_90 = arith.constant 0 : index
    %c0_91 = arith.constant 0 : index
    %75 = vector.load %arg7[%c0_90, %c0_91] : memref<8x4xbf16, #tpu.memory_space<vmem>>, vector<8x4xbf16>
    %c16_92 = arith.constant 16 : index
    %c0_93 = arith.constant 0 : index
    %76 = vector.load %arg12[%c16_92, %c0_93] : memref<36x1152xbf16, #tpu.memory_space<vmem>>, vector<4x1152xbf16>
    %cst_94 = arith.constant dense<0.000000e+00> : vector<8x1152xf32>
    %77 = tpu.matmul %75, %76, %cst_94 {dimension_numbers = #tpu.dot_dimension_numbers<[1], [0], [0], [1], [0, 0, 1, 1], [], []>} : vector<8x4xbf16>, vector<4x1152xbf16>, vector<8x1152xf32> -> vector<8x1152xf32>
    %78 = arith.addf %74, %77 : vector<8x1152xf32>
    %c0_95 = arith.constant 0 : index
    %c0_96 = arith.constant 0 : index
    %c0_97 = arith.constant 0 : index
    %79 = vector.load %arg9[%c0_95, %c0_96, %c0_97] : memref<1x8x1152xf32, #tpu.memory_space<vmem>>, vector<1x8x1152xf32>
    %80 = vector.shape_cast %79 : vector<1x8x1152xf32> to vector<8x1152xf32>
    %81 = vector.shape_cast %78 : vector<8x1152xf32> to vector<1x8x1152xf32>
    tpu.vector_store %arg9[%c0_95, %c0_96, %c0_97], %81 {strides = array<i32>} : memref<1x8x1152xf32, #tpu.memory_space<vmem>>, vector<1x8x1152xf32>,
    return
  }
  func.func @transform_0(%arg0: i32) -> (i32, i32, i32) {
    %c0_i32 = arith.constant 0 : i32
    %c0_i32_0 = arith.constant 0 : i32
    %c0_i32_1 = arith.constant 0 : i32
    return %arg0, %c0_i32, %c0_i32_0 : i32, i32, i32
  }
  func.func @transform_1(%arg0: i32) -> (i32, i32) {
    %c0_i32 = arith.constant 0 : i32
    %c0_i32_0 = arith.constant 0 : i32
    %c0_i32_1 = arith.constant 0 : i32
    return %c0_i32, %c0_i32_0 : i32, i32
  }
  func.func @transform_2(%arg0: i32) -> (i32, i32) {
    %c0_i32 = arith.constant 0 : i32
    %c0_i32_0 = arith.constant 0 : i32
    %c0_i32_1 = arith.constant 0 : i32
    return %c0_i32, %c0_i32_0 : i32, i32
  }
  func.func @transform_3(%arg0: i32) -> (i32, i32) {
    %c0_i32 = arith.constant 0 : i32
    %c0_i32_0 = arith.constant 0 : i32
    %c0_i32_1 = arith.constant 0 : i32
    return %c0_i32, %c0_i32_0 : i32, i32
  }
  func.func @transform_4(%arg0: i32) -> (i32, i32) {
    %c0_i32 = arith.constant 0 : i32
    %c0_i32_0 = arith.constant 0 : i32
    %c0_i32_1 = arith.constant 0 : i32
    return %c0_i32, %c0_i32_0 : i32, i32
  }
  func.func @transform_5(%arg0: i32) -> (i32, i32) {
    %c0_i32 = arith.constant 0 : i32
    %c0_i32_0 = arith.constant 0 : i32
    %c0_i32_1 = arith.constant 0 : i32
    return %c0_i32, %c0_i32_0 : i32, i32
  }
  func.func @transform_6(%arg0: i32) -> (i32, i32) {
    %c0_i32 = arith.constant 0 : i32
    %c0_i32_0 = arith.constant 0 : i32
    %c0_i32_1 = arith.constant 0 : i32
    return %c0_i32, %c0_i32_0 : i32, i32
  }
  func.func @transform_7(%arg0: i32) -> (i32, i32) {
    %c0_i32 = arith.constant 0 : i32
    %c0_i32_0 = arith.constant 0 : i32
    %c0_i32_1 = arith.constant 0 : i32
    return %c0_i32, %c0_i32_0 : i32, i32
  }
  func.func @transform_8(%arg0: i32) -> (i32, i32, i32) {
    %c0_i32 = arith.constant 0 : i32
    %c0_i32_0 = arith.constant 0 : i32
    %c0_i32_1 = arith.constant 0 : i32
    return %arg0, %c0_i32, %c0_i32_0 : i32, i32, i32
  }
}

</mosaic_0001>

<llo_original>
// kernel: tpu_custom_call.1
$region0: #{tpu_custom_call.1}
  #allocation0 [shape = 'u32[]', space=smem, size = 0x4, offset = 0x4, fixed_abs, tag = 'smem constant byte address 0x4 - core index']
  #allocation1 [shape = 'u32[144,128]{1,0:T(1,128)}', space=vmem, size = 0x12000, scoped, tag = 'internal scratch']
  #allocation2 [shape = 'bf16[4,1260]{1,0:T(4,128)(2,1)}', space=vmem, size = 0x2800, scoped, tag = 'scratch operand']
  #allocation3 [shape = 'bf16[8,1260]{1,0:T(8,128)(2,1)}', space=vmem, size = 0x5000, scoped, tag = 'scratch operand']
  #allocation4 [shape = 'bf16[36,1152]{1,0:T(8,128)(2,1)}', space=vmem, size = 0x16800, scoped, tag = 'scratch operand']
  #allocation5 [shape = 'bf16[72,1152]{1,0:T(8,128)(2,1)}', space=vmem, size = 0x28800, scoped, tag = 'scratch operand']
  %s0 = inlined_call_operand.vmem [shape: bf16[2,4,256], index: 0, kind: input, shape index: {}]
  %s1 = inlined_call_operand.hbm [shape: bf16[256,1152], index: 1, kind: input, shape index: {}]
  %s2 = inlined_call_operand.vmem [shape: bf16[8,36], index: 2, kind: input, shape index: {}]
  %s3 = inlined_call_operand.vmem [shape: f32[8,1], index: 3, kind: input, shape index: {}]
  %s4 = inlined_call_operand.vmem [shape: bf16[8,72], index: 4, kind: input, shape index: {}]
  %s5 = inlined_call_operand.vmem [shape: f32[8,1], index: 5, kind: input, shape index: {}]
  %s6 = inlined_call_operand.vmem [shape: bf16[8,4], index: 6, kind: input, shape index: {}]
  %s7 = inlined_call_operand.vmem [shape: f32[1,1152], index: 7, kind: input, shape index: {}]
  %s8 = inlined_call_operand.hbm [shape: f32[2,8,1152], index: 8, kind: output, shape index: {}]
  %s9 = sld [smem:[#allocation0]]
  $region69: #{tpu_custom_call.1} parent=0
    _
  %s11 = ssub.s32 1, %s9
  %s12 = scalar_select 0, %s11, %s9
  $region1: #{tpu_custom_call.1} parent=0
    #allocation6 [shape = 'u8[589824]{0}', space=vmem, size = 0x90000, scoped, tag = 'input window, operand 1, single buffered']
    #allocation7 [shape = 's32[2]{0}', space=sflag, size = 0x8, scoped, tag = 'scoped memory for tpu_custom_call.1']
    #allocation8 [shape = 's32[2]{0}', space=sflag, size = 0x8, scoped, tag = 'scoped memory for tpu_custom_call.1']
    #allocation9 [shape = 'u8[73728]{0}', space=vmem, size = 0x12000, scoped, tag = 'output window, operand 0']
    %13 = vsyncpa [#allocation7], 0
    %14 = vsyncpa [#allocation8], 0
    %s15 = scalar_lea.sflag [#allocation8], 1
    %16 = vsyncpa %s15, 0
    loop: start=0, step=1, limit=4
    $region2: #{tpu_custom_call.1} parent=1 // loop_pre_header
      _
    $region3: #{tpu_custom_call.1} parent=1 // loop_header
      %s18 = sphi 0, %s22
      %p19 = scmp.ge.s32.totalorder %s18, 4
      %s28 = sphi 0, %s30
      %s31 = sphi 0, %s28
      %s32 = sphi 0, %s31
      %s48 = sphi 0, %s32
      %s52 = sphi 0, %s52
      %s54 = sphi 0, %s52
      %s55 = sphi 0, %s54
      %s69 = sphi 0, %s55
      %s73 = sphi 0, %s73
      %s75 = sphi 0, %s73
      %s76 = sphi 0, %s75
      %s90 = sphi 0, %s76
      %s94 = sphi 0, %s94
      %s96 = sphi 0, %s94
      %s97 = sphi 0, %s96
      %s111 = sphi 0, %s97
      %s115 = sphi 0, %s115
      %s117 = sphi 0, %s115
      %s118 = sphi 0, %s117
      %s132 = sphi 0, %s118
      %s136 = sphi 0, %s136
      %s138 = sphi 0, %s136
      %s139 = sphi 0, %s138
      %s153 = sphi 0, %s139
      %s157 = sphi 0, %s157
      %s159 = sphi 0, %s157
      %s160 = sphi 0, %s159
      %s174 = sphi 0, %s160
      %s178 = sphi 0, %s178
      %s180 = sphi 0, %s178
      %s181 = sphi 0, %s180
      %s195 = sphi 0, %s181
      %s201 = sphi 0, %s203
      %s204 = sphi 0, %s201
      %s205 = sphi 0, %s204
      %s221 = sphi 0, %s205
    $region4: #{tpu_custom_call.1} parent=1 // loop_header_branch
      %21 = sbr.rel (%p19) target = $region8
    $region5: #{tpu_custom_call.1} parent=1 // loop_body
      %s23 = ssub.s32 %s18, 1
      %s24 = ssub.s32 %s18, 2
      %s25 = sadd.s32 %s18, 1
      %s26 = ssub.s32 %s18, %s25
      %p27 = scmp.eq.s32.totalorder %s26, 0
      %s29 = sadd.s32 %s28, 1
      %s30 = scalar_select %p27, %s28, %s29
      %p33 = pneg %p27
      %p34 = scmp.eq.s32.totalorder %s18, 1
      %p35 = por %p33, %p34
      %p36 = scmp.ne.s32.totalorder %s28, %s31
      %p37 = scmp.eq.s32.totalorder %s18, 0
      %p38 = por %p36, %p37
      %p39 = scmp.ne.s32.totalorder %s28, %s31
      %p40 = scmp.eq.s32.totalorder %s23, 1
      %p41 = por %p39, %p40
      %p42 = scmp.ne.s32.totalorder %s31, %s32
      %p43 = scmp.eq.s32.totalorder %s23, 0
      %p44 = por %p42, %p43
      %p45 = scmp.ne.s32.totalorder %s31, %s32
      %p46 = scmp.eq.s32.totalorder %s24, 1
      %p47 = por %p45, %p46
      %p49 = scmp.ne.s32.totalorder %s32, %s48
      %p50 = scmp.eq.s32.totalorder %s24, 0
      %p51 = por %p49, %p50
      %s53 = sadd.s32 %s52, 1
      %p56 = scmp.eq.s32.totalorder %s18, 1
      %p57 = scmp.ne.s32.totalorder %s52, %s54
      %p58 = scmp.eq.s32.totalorder %s18, 0
      %p59 = por %p57, %p58
      %p60 = scmp.ne.s32.totalorder %s52, %s54
      %p61 = scmp.eq.s32.totalorder %s23, 1
      %p62 = por %p60, %p61
      %p63 = scmp.ne.s32.totalorder %s54, %s55
      %p64 = scmp.eq.s32.totalorder %s23, 0
      %p65 = por %p63, %p64
      %p66 = scmp.ne.s32.totalorder %s54, %s55
      %p67 = scmp.eq.s32.totalorder %s24, 1
      %p68 = por %p66, %p67
      %p70 = scmp.ne.s32.totalorder %s55, %s69
      %p71 = scmp.eq.s32.totalorder %s24, 0
      %p72 = por %p70, %p71
      %s74 = sadd.s32 %s73, 1
      %p77 = scmp.eq.s32.totalorder %s18, 1
      %p78 = scmp.ne.s32.totalorder %s73, %s75
      %p79 = scmp.eq.s32.totalorder %s18, 0
      %p80 = por %p78, %p79
      %p81 = scmp.ne.s32.totalorder %s73, %s75
      %p82 = scmp.eq.s32.totalorder %s23, 1
      %p83 = por %p81, %p82
      %p84 = scmp.ne.s32.totalorder %s75, %s76
      %p85 = scmp.eq.s32.totalorder %s23, 0
      %p86 = por %p84, %p85
      %p87 = scmp.ne.s32.totalorder %s75, %s76
      %p88 = scmp.eq.s32.totalorder %s24, 1
      %p89 = por %p87, %p88
      %p91 = scmp.ne.s32.totalorder %s76, %s90
      %p92 = scmp.eq.s32.totalorder %s24, 0
      %p93 = por %p91, %p92
      %s95 = sadd.s32 %s94, 1
      %p98 = scmp.eq.s32.totalorder %s18, 1
      %p99 = scmp.ne.s32.totalorder %s94, %s96
      %p100 = scmp.eq.s32.totalorder %s18, 0
      %p101 = por %p99, %p100
      %p102 = scmp.ne.s32.totalorder %s94, %s96
      %p103 = scmp.eq.s32.totalorder %s23, 1
      %p104 = por %p102, %p103
      %p105 = scmp.ne.s32.totalorder %s96, %s97
      %p106 = scmp.eq.s32.totalorder %s23, 0
      %p107 = por %p105, %p106
      %p108 = scmp.ne.s32.totalorder %s96, %s97
      %p109 = scmp.eq.s32.totalorder %s24, 1
      %p110 = por %p108, %p109
      %p112 = scmp.ne.s32.totalorder %s97, %s111
      %p113 = scmp.eq.s32.totalorder %s24, 0
      %p114 = por %p112, %p113
      %s116 = sadd.s32 %s115, 1
      %p119 = scmp.eq.s32.totalorder %s18, 1
      %p120 = scmp.ne.s32.totalorder %s115, %s117
      %p121 = scmp.eq.s32.totalorder %s18, 0
      %p122 = por %p120, %p121
      %p123 = scmp.ne.s32.totalorder %s115, %s117
      %p124 = scmp.eq.s32.totalorder %s23, 1
      %p125 = por %p123, %p124
      %p126 = scmp.ne.s32.totalorder %s117, %s118
      %p127 = scmp.eq.s32.totalorder %s23, 0
      %p128 = por %p126, %p127
      %p129 = scmp.ne.s32.totalorder %s117, %s118
      %p130 = scmp.eq.s32.totalorder %s24, 1
      %p131 = por %p129, %p130
      %p133 = scmp.ne.s32.totalorder %s118, %s132
      %p134 = scmp.eq.s32.totalorder %s24, 0
      %p135 = por %p133, %p134
      %s137 = sadd.s32 %s136, 1
      %p140 = scmp.eq.s32.totalorder %s18, 1
      %p141 = scmp.ne.s32.totalorder %s136, %s138
      %p142 = scmp.eq.s32.totalorder %s18, 0
      %p143 = por %p141, %p142
      %p144 = scmp.ne.s32.totalorder %s136, %s138
      %p145 = scmp.eq.s32.totalorder %s23, 1
      %p146 = por %p144, %p145
      %p147 = scmp.ne.s32.totalorder %s138, %s139
      %p148 = scmp.eq.s32.totalorder %s23, 0
      %p149 = por %p147, %p148
      %p150 = scmp.ne.s32.totalorder %s138, %s139
      %p151 = scmp.eq.s32.totalorder %s24, 1
      %p152 = por %p150, %p151
      %p154 = scmp.ne.s32.totalorder %s139, %s153
      %p155 = scmp.eq.s32.totalorder %s24, 0
      %p156 = por %p154, %p155
      %s158 = sadd.s32 %s157, 1
      %p161 = scmp.eq.s32.totalorder %s18, 1
      %p162 = scmp.ne.s32.totalorder %s157, %s159
      %p163 = scmp.eq.s32.totalorder %s18, 0
      %p164 = por %p162, %p163
      %p165 = scmp.ne.s32.totalorder %s157, %s159
      %p166 = scmp.eq.s32.totalorder %s23, 1
      %p167 = por %p165, %p166
      %p168 = scmp.ne.s32.totalorder %s159, %s160
      %p169 = scmp.eq.s32.totalorder %s23, 0
      %p170 = por %p168, %p169
      %p171 = scmp.ne.s32.totalorder %s159, %s160
      %p172 = scmp.eq.s32.totalorder %s24, 1
      %p173 = por %p171, %p172
      %p175 = scmp.ne.s32.totalorder %s160, %s174
      %p176 = scmp.eq.s32.totalorder %s24, 0
      %p177 = por %p175, %p176
      %s179 = sadd.s32 %s178, 1
      %p182 = scmp.eq.s32.totalorder %s18, 1
      %p183 = scmp.ne.s32.totalorder %s178, %s180
      %p184 = scmp.eq.s32.totalorder %s18, 0
      %p185 = por %p183, %p184
      %p186 = scmp.ne.s32.totalorder %s178, %s180
      %p187 = scmp.eq.s32.totalorder %s23, 1
      %p188 = por %p186, %p187
      %p189 = scmp.ne.s32.totalorder %s180, %s181
      %p190 = scmp.eq.s32.totalorder %s23, 0
      %p191 = por %p189, %p190
      %p192 = scmp.ne.s32.totalorder %s180, %s181
      %p193 = scmp.eq.s32.totalorder %s24, 1
      %p194 = por %p192, %p193
      %p196 = scmp.ne.s32.totalorder %s181, %s195
      %p197 = scmp.eq.s32.totalorder %s24, 0
      %p198 = por %p196, %p197
      %s199 = ssub.s32 %s18, %s25
      %p200 = scmp.eq.s32.totalorder %s199, 0
      %s202 = sadd.s32 %s201, 1
      %s203 = scalar_select %p200, %s201, %s202
      %p206 = pneg %p200
      %p207 = scmp.eq.s32.totalorder %s18, 1
      %p208 = por %p206, %p207
      %p209 = scmp.ne.s32.totalorder %s201, %s204
      %p210 = scmp.eq.s32.totalorder %s18, 0
      %p211 = por %p209, %p210
      %p212 = scmp.ne.s32.totalorder %s201, %s204
      %p213 = scmp.eq.s32.totalorder %s23, 1
      %p214 = por %p212, %p213
      %p215 = scmp.ne.s32.totalorder %s204, %s205
      %p216 = scmp.eq.s32.totalorder %s23, 0
      %p217 = por %p215, %p216
      %p218 = scmp.ne.s32.totalorder %s204, %s205
      %p219 = scmp.eq.s32.totalorder %s24, 1
      %p220 = por %p218, %p219
      %p222 = scmp.ne.s32.totalorder %s205, %s221
      %p223 = scmp.eq.s32.totalorder %s24, 0
      %p224 = por %p222, %p223
      %p225 = scmp.le.s32.totalorder 1, %s18
      %p226 = scmp.lt.s32.totalorder %s18, 3
      %p227 = pnand %p225, %p226
      %p228 = pneg %p227
      // Predicated region
      $region9: #{tpu_custom_call.1} parent=5 // pred_check
        _
      $region10: #{tpu_custom_call.1} parent=5 // pred_check_branch
        %230 = sbr.rel (%p227) target = $region12
      $region11: #{tpu_custom_call.1} parent=5 // pred_region
        %s231 = ssub.s32 %s18, 1
        // Predicated region
        $region13: #{tpu_custom_call.1} parent=11 // pred_check
          %p232 = pneg %p65
        $region14: #{tpu_custom_call.1} parent=11 // pred_check_branch
          %234 = sbr.rel (%p232) target = $region16
        $region15: #{tpu_custom_call.1} parent=11 // pred_region
          %s236 = ssub.s32 18432, 18432
          %237 = vsyncadd [#allocation7], %s236
          %s238 = sshll.u32 [#allocation6], 4
          %s239 = int_to_ptr.vmem [resolvable:$true] %s238
          %244 = dma.hbm_to_vmem [thread:$0]  %s1, 18432, %s239, [#allocation7], 576, 576, 36
        $region16: #{tpu_custom_call.1} parent=11 // pred_fallthru
          _
        // Predicated region
        $region17: #{tpu_custom_call.1} parent=11 // pred_check
          %p245 = pneg %p86
        $region18: #{tpu_custom_call.1} parent=11 // pred_check_branch
          %247 = sbr.rel (%p245) target = $region20
        $region19: #{tpu_custom_call.1} parent=11 // pred_region
          _
        $region20: #{tpu_custom_call.1} parent=11 // pred_fallthru
          _
        // Predicated region
        $region21: #{tpu_custom_call.1} parent=11 // pred_check
          %p248 = pneg %p107
        $region22: #{tpu_custom_call.1} parent=11 // pred_check_branch
          %250 = sbr.rel (%p248) target = $region24
        $region23: #{tpu_custom_call.1} parent=11 // pred_region
          _
        $region24: #{tpu_custom_call.1} parent=11 // pred_fallthru
          _
        // Predicated region
        $region25: #{tpu_custom_call.1} parent=11 // pred_check
          %p251 = pneg %p128
        $region26: #{tpu_custom_call.1} parent=11 // pred_check_branch
          %253 = sbr.rel (%p251) target = $region28
        $region27: #{tpu_custom_call.1} parent=11 // pred_region
          _
        $region28: #{tpu_custom_call.1} parent=11 // pred_fallthru
          _
        // Predicated region
        $region29: #{tpu_custom_call.1} parent=11 // pred_check
          %p254 = pneg %p149
        $region30: #{tpu_custom_call.1} parent=11 // pred_check_branch
          %256 = sbr.rel (%p254) target = $region32
        $region31: #{tpu_custom_call.1} parent=11 // pred_region
          _
        $region32: #{tpu_custom_call.1} parent=11 // pred_fallthru
          _
        // Predicated region
        $region33: #{tpu_custom_call.1} parent=11 // pred_check
          %p257 = pneg %p170
        $region34: #{tpu_custom_call.1} parent=11 // pred_check_branch
          %259 = sbr.rel (%p257) target = $region36
        $region35: #{tpu_custom_call.1} parent=11 // pred_region
          _
        $region36: #{tpu_custom_call.1} parent=11 // pred_fallthru
          _
        // Predicated region
        $region37: #{tpu_custom_call.1} parent=11 // pred_check
          %p260 = pneg %p191
        $region38: #{tpu_custom_call.1} parent=11 // pred_check_branch
          %262 = sbr.rel (%p260) target = $region40
        $region39: #{tpu_custom_call.1} parent=11 // pred_region
          _
        $region40: #{tpu_custom_call.1} parent=11 // pred_fallthru
          _
      $region12: #{tpu_custom_call.1} parent=5 // pred_fallthru
        _
      %p263 = scmp.lt.s32.totalorder %s18, 2
      // Predicated region
      $region41: #{tpu_custom_call.1} parent=5 // pred_check
        %p264 = pneg %p263
      $region42: #{tpu_custom_call.1} parent=5 // pred_check_branch
        %266 = sbr.rel (%p264) target = $region44
      $region43: #{tpu_custom_call.1} parent=5 // pred_region
        // Predicated region
        $region45: #{tpu_custom_call.1} parent=43 // pred_check
          %p267 = pneg %p38
        $region46: #{tpu_custom_call.1} parent=43 // pred_check_branch
          %269 = sbr.rel (%p267) target = $region48
        $region47: #{tpu_custom_call.1} parent=43 // pred_region
          %p270 = scmp.lt.s32.totalorder %s18, 1
          %s271 = scalar_select %p270, %s18, 1
          %s272 = smul.addr %s271, 2
          %s273 = smul.addr %s272, 2
          %s274 = scalar_lea.vmem %s0, %s273
        $region48: #{tpu_custom_call.1} parent=43 // pred_fallthru
          _
      $region44: #{tpu_custom_call.1} parent=5 // pred_fallthru
        _
      %p275 = scmp.le.s32.totalorder 1, %s18
      %p276 = scmp.lt.s32.totalorder %s18, 3
      %p277 = pnand %p275, %p276
      %p278 = pneg %p277
      // Predicated region
      $region49: #{tpu_custom_call.1} parent=5 // pred_check
        _
      $region50: #{tpu_custom_call.1} parent=5 // pred_check_branch
        %280 = sbr.rel (%p277) target = $region52
      $region51: #{tpu_custom_call.1} parent=5 // pred_region
        %s281 = ssub.s32 %s18, 1
        // Predicated region
        $region53: #{tpu_custom_call.1} parent=51 // pred_check
          %p282 = pneg %p65
        $region54: #{tpu_custom_call.1} parent=51 // pred_check_branch
          %284 = sbr.rel (%p282) target = $region56
        $region55: #{tpu_custom_call.1} parent=51 // pred_region
          %285 = dma.done [#allocation7], 18432
        $region56: #{tpu_custom_call.1} parent=51 // pred_fallthru
          _
        %p286 = scmp.lt.s32.totalorder %s23, 1
        %s287 = scalar_select %p286, %s23, 1
        %s288 = smul.addr %s287, 2
        %s289 = smul.addr %s288, 2
        %s290 = scalar_lea.vmem %s0, %s289
        %p291 = pneg %p44
        %p292 = pneg %p41
        %p293 = pneg %p65
        %p294 = pneg %p62
        %p295 = pneg %p86
        %p296 = pneg %p83
        %p297 = pneg %p107
        %p298 = pneg %p104
        %p299 = pneg %p128
        %p300 = pneg %p125
        %p301 = pneg %p149
        %p302 = pneg %p146
        %p303 = pneg %p170
        %p304 = pneg %p167
        %p305 = pneg %p191
        %p306 = pneg %p188
        %p307 = pneg %p217
        %p308 = pneg %p214
        %s309 = sand.u32 %s204, 1
        %s310 = scalar_lea.sflag [#allocation8], %s309
        %s311 = sand.u32 %s204, 1
        %s312 = smul.addr %s311, 72
        %s313 = scalar_lea.vmem [#allocation9], %s312
        %p314 = scmp.lt.s32.totalorder %s23, 1
        %s315 = scalar_select %p314, %s23, 1
        %s316 = smul.addr %s315, 2
        %s317 = smul.addr %s316, 2
        %s318 = scalar_lea.vmem %s0, %s317
        %v320 = vld [vmem:[%s318] sm:$0xf]
        %v321 = vld [vmem:[#allocation6] sm:$0xff]
        %v322 = vld [vmem:[#allocation6 + $0x8] sm:$0xff]
        %v323 = vld [vmem:[#allocation6 + $0x10] sm:$0xff]
        %v324 = vld [vmem:[#allocation6 + $0x18] sm:$0xff]
        %v325 = vld [vmem:[#allocation6 + $0x20] sm:$0xf]
        %v326 = vld [vmem:[#allocation6 + $0x24] sm:$0xff]
        %v327 = vld [vmem:[#allocation6 + $0x2c] sm:$0xff]
        %v328 = vld [vmem:[#allocation6 + $0x34] sm:$0xff]
        %v329 = vld [vmem:[#allocation6 + $0x3c] sm:$0xff]
        %v330 = vld [vmem:[#allocation6 + $0x44] sm:$0xf]
        %v331 = vld [vmem:[#allocation6 + $0x48] sm:$0xff]
        %v332 = vld [vmem:[#allocation6 + $0x50] sm:$0xff]
        %v333 = vld [vmem:[#allocation6 + $0x58] sm:$0xff]
        %v334 = vld [vmem:[#allocation6 + $0x60] sm:$0xff]
        %v335 = vld [vmem:[#allocation6 + $0x68] sm:$0xf]
        %v336 = vld [vmem:[#allocation6 + $0x6c] sm:$0xff]
        %v337 = vld [vmem:[#allocation6 + $0x74] sm:$0xff]
        %v338 = vld [vmem:[#allocation6 + $0x7c] sm:$0xff]
        %v339 = vld [vmem:[#allocation6 + $0x84] sm:$0xff]
        %v340 = vld [vmem:[#allocation6 + $0x8c] sm:$0xf]
        %v341 = vld [vmem:[#allocation6 + $0x90] sm:$0xff]
        %v342 = vld [vmem:[#allocation6 + $0x98] sm:$0xff]
        %v343 = vld [vmem:[#allocation6 + $0xa0] sm:$0xff]
        %v344 = vld [vmem:[#allocation6 + $0xa8] sm:$0xff]
        %v345 = vld [vmem:[#allocation6 + $0xb0] sm:$0xf]
        %v346 = vld [vmem:[#allocation6 + $0xb4] sm:$0xff]
        %v347 = vld [vmem:[#allocation6 + $0xbc] sm:$0xff]
        %v348 = vld [vmem:[#allocation6 + $0xc4] sm:$0xff]
        %v349 = vld [vmem:[#allocation6 + $0xcc] sm:$0xff]
        %v350 = vld [vmem:[#allocation6 + $0xd4] sm:$0xf]
        %v351 = vld [vmem:[#allocation6 + $0xd8] sm:$0xff]
        %v352 = vld [vmem:[#allocation6 + $0xe0] sm:$0xff]
        %v353 = vld [vmem:[#allocation6 + $0xe8] sm:$0xff]
        %v354 = vld [vmem:[#allocation6 + $0xf0] sm:$0xff]
        %v355 = vld [vmem:[#allocation6 + $0xf8] sm:$0xf]
        %v356 = vld [vmem:[#allocation6 + $0xfc] sm:$0xff]
        %v357 = vld [vmem:[#allocation6 + $0x104] sm:$0xff]
        %v358 = vld [vmem:[#allocation6 + $0x10c] sm:$0xff]
        %v359 = vld [vmem:[#allocation6 + $0x114] sm:$0xff]
        %v360 = vld [vmem:[#allocation6 + $0x11c] sm:$0xf]
        %v361 = vld [vmem:[#allocation6 + $0x120] sm:$0xff]
        %v362 = vld [vmem:[#allocation6 + $0x128] sm:$0xff]
        %v363 = vld [vmem:[#allocation6 + $0x130] sm:$0xff]
        %v364 = vld [vmem:[#allocation6 + $0x138] sm:$0xff]
        %v365 = vld [vmem:[#allocation6 + $0x140] sm:$0xf]
        %v366 = vld [vmem:[#allocation6 + $0x144] sm:$0xff]
        %v367 = vld [vmem:[#allocation6 + $0x14c] sm:$0xff]
        %v368 = vld [vmem:[#allocation6 + $0x154] sm:$0xff]
        %v369 = vld [vmem:[#allocation6 + $0x15c] sm:$0xff]
        %v370 = vld [vmem:[#allocation6 + $0x164] sm:$0xf]
        %v371 = vld [vmem:[#allocation6 + $0x168] sm:$0xff]
        %v372 = vld [vmem:[#allocation6 + $0x170] sm:$0xff]
        %v373 = vld [vmem:[#allocation6 + $0x178] sm:$0xff]
        %v374 = vld [vmem:[#allocation6 + $0x180] sm:$0xff]
        %v375 = vld [vmem:[#allocation6 + $0x188] sm:$0xf]
        %v376 = vld [vmem:[#allocation6 + $0x18c] sm:$0xff]
        %v377 = vld [vmem:[#allocation6 + $0x194] sm:$0xff]
        %v378 = vld [vmem:[#allocation6 + $0x19c] sm:$0xff]
        %v379 = vld [vmem:[#allocation6 + $0x1a4] sm:$0xff]
        %v380 = vld [vmem:[#allocation6 + $0x1ac] sm:$0xf]
        %v381 = vld [vmem:[#allocation6 + $0x1b0] sm:$0xff]
        %v382 = vld [vmem:[#allocation6 + $0x1b8] sm:$0xff]
        %v383 = vld [vmem:[#allocation6 + $0x1c0] sm:$0xff]
        %v384 = vld [vmem:[#allocation6 + $0x1c8] sm:$0xff]
        %v385 = vld [vmem:[#allocation6 + $0x1d0] sm:$0xf]
        %v386 = vld [vmem:[#allocation6 + $0x1d4] sm:$0xff]
        %v387 = vld [vmem:[#allocation6 + $0x1dc] sm:$0xff]
        %v388 = vld [vmem:[#allocation6 + $0x1e4] sm:$0xff]
        %v389 = vld [vmem:[#allocation6 + $0x1ec] sm:$0xff]
        %v390 = vld [vmem:[#allocation6 + $0x1f4] sm:$0xf]
        %v391 = vld [vmem:[#allocation6 + $0x1f8] sm:$0xff]
        %v392 = vld [vmem:[#allocation6 + $0x200] sm:$0xff]
        %v393 = vld [vmem:[#allocation6 + $0x208] sm:$0xff]
        %v394 = vld [vmem:[#allocation6 + $0x210] sm:$0xff]
        %v395 = vld [vmem:[#allocation6 + $0x218] sm:$0xf]
        %v396 = vld [vmem:[#allocation6 + $0x21c] sm:$0xff]
        %v397 = vld [vmem:[#allocation6 + $0x224] sm:$0xff]
        %v398 = vld [vmem:[#allocation6 + $0x22c] sm:$0xff]
        %v399 = vld [vmem:[#allocation6 + $0x234] sm:$0xff]
        %v400 = vld [vmem:[#allocation6 + $0x23c] sm:$0xf]
        %v401 = vld [vmem:[#allocation6 + $0x240] sm:$0xff]
        %v402 = vld [vmem:[#allocation6 + $0x248] sm:$0xff]
        %v403 = vld [vmem:[#allocation6 + $0x250] sm:$0xff]
        %v404 = vld [vmem:[#allocation6 + $0x258] sm:$0xff]
        %v405 = vld [vmem:[#allocation6 + $0x260] sm:$0xf]
        %v406 = vld [vmem:[#allocation6 + $0x264] sm:$0xff]
        %v407 = vld [vmem:[#allocation6 + $0x26c] sm:$0xff]
        %v408 = vld [vmem:[#allocation6 + $0x274] sm:$0xff]
        %v409 = vld [vmem:[#allocation6 + $0x27c] sm:$0xff]
        %v410 = vld [vmem:[#allocation6 + $0x284] sm:$0xf]
        %v411 = vld [vmem:[#allocation6 + $0x288] sm:$0xff]
        %v412 = vld [vmem:[#allocation6 + $0x290] sm:$0xff]
        %v413 = vld [vmem:[#allocation6 + $0x298] sm:$0xff]
        %v414 = vld [vmem:[#allocation6 + $0x2a0] sm:$0xff]
        %v415 = vld [vmem:[#allocation6 + $0x2a8] sm:$0xf]
        %v416 = vld [vmem:[#allocation6 + $0x2ac] sm:$0xff]
        %v417 = vld [vmem:[#allocation6 + $0x2b4] sm:$0xff]
        %v418 = vld [vmem:[#allocation6 + $0x2bc] sm:$0xff]
        %v419 = vld [vmem:[#allocation6 + $0x2c4] sm:$0xff]
        %v420 = vld [vmem:[#allocation6 + $0x2cc] sm:$0xf]
        %v421 = vld [vmem:[#allocation6 + $0x2d0] sm:$0xff]
        %v422 = vld [vmem:[#allocation6 + $0x2d8] sm:$0xff]
        %v423 = vld [vmem:[#allocation6 + $0x2e0] sm:$0xff]
        %v424 = vld [vmem:[#allocation6 + $0x2e8] sm:$0xff]
        %v425 = vld [vmem:[#allocation6 + $0x2f0] sm:$0xf]
        %v426 = vld [vmem:[#allocation6 + $0x2f4] sm:$0xff]
        %v427 = vld [vmem:[#allocation6 + $0x2fc] sm:$0xff]
        %v428 = vld [vmem:[#allocation6 + $0x304] sm:$0xff]
        %v429 = vld [vmem:[#allocation6 + $0x30c] sm:$0xff]
        %v430 = vld [vmem:[#allocation6 + $0x314] sm:$0xf]
        %v431 = vld [vmem:[#allocation6 + $0x318] sm:$0xff]
        %v432 = vld [vmem:[#allocation6 + $0x320] sm:$0xff]
        %v433 = vld [vmem:[#allocation6 + $0x328] sm:$0xff]
        %v434 = vld [vmem:[#allocation6 + $0x330] sm:$0xff]
        %v435 = vld [vmem:[#allocation6 + $0x338] sm:$0xf]
        %v436 = vld [vmem:[#allocation6 + $0x33c] sm:$0xff]
        %v437 = vld [vmem:[#allocation6 + $0x344] sm:$0xff]
        %v438 = vld [vmem:[#allocation6 + $0x34c] sm:$0xff]
        %v439 = vld [vmem:[#allocation6 + $0x354] sm:$0xff]
        %v440 = vld [vmem:[#allocation6 + $0x35c] sm:$0xf]
        %v441 = vld [vmem:[#allocation6 + $0x360] sm:$0xff]
        %v442 = vld [vmem:[#allocation6 + $0x368] sm:$0xff]
        %v443 = vld [vmem:[#allocation6 + $0x370] sm:$0xff]
        %v444 = vld [vmem:[#allocation6 + $0x378] sm:$0xff]
        %v445 = vld [vmem:[#allocation6 + $0x380] sm:$0xf]
        %v446 = vld [vmem:[#allocation6 + $0x384] sm:$0xff]
        %v447 = vld [vmem:[#allocation6 + $0x38c] sm:$0xff]
        %v448 = vld [vmem:[#allocation6 + $0x394] sm:$0xff]
        %v449 = vld [vmem:[#allocation6 + $0x39c] sm:$0xff]
        %v450 = vld [vmem:[#allocation6 + $0x3a4] sm:$0xf]
        %v451 = vld [vmem:[#allocation6 + $0x3a8] sm:$0xff]
        %v452 = vld [vmem:[#allocation6 + $0x3b0] sm:$0xff]
        %v453 = vld [vmem:[#allocation6 + $0x3b8] sm:$0xff]
        %v454 = vld [vmem:[#allocation6 + $0x3c0] sm:$0xff]
        %v455 = vld [vmem:[#allocation6 + $0x3c8] sm:$0xf]
        %v456 = vld [vmem:[#allocation6 + $0x3cc] sm:$0xff]
        %v457 = vld [vmem:[#allocation6 + $0x3d4] sm:$0xff]
        %v458 = vld [vmem:[#allocation6 + $0x3dc] sm:$0xff]
        %v459 = vld [vmem:[#allocation6 + $0x3e4] sm:$0xff]
        %v460 = vld [vmem:[#allocation6 + $0x3ec] sm:$0xf]
        %v461 = vld [vmem:[#allocation6 + $0x3f0] sm:$0xff]
        %v462 = vld [vmem:[#allocation6 + $0x3f8] sm:$0xff]
        %v463 = vld [vmem:[#allocation6 + $0x400] sm:$0xff]
        %v464 = vld [vmem:[#allocation6 + $0x408] sm:$0xff]
        %v465 = vld [vmem:[#allocation6 + $0x410] sm:$0xf]
        %v466 = vld [vmem:[#allocation6 + $0x414] sm:$0xff]
        %v467 = vld [vmem:[#allocation6 + $0x41c] sm:$0xff]
        %v468 = vld [vmem:[#allocation6 + $0x424] sm:$0xff]
        %v469 = vld [vmem:[#allocation6 + $0x42c] sm:$0xff]
        %v470 = vld [vmem:[#allocation6 + $0x434] sm:$0xf]
        %v471 = vld [vmem:[#allocation6 + $0x438] sm:$0xff]
        %v472 = vld [vmem:[#allocation6 + $0x440] sm:$0xff]
        %v473 = vld [vmem:[#allocation6 + $0x448] sm:$0xff]
        %v474 = vld [vmem:[#allocation6 + $0x450] sm:$0xff]
        %v475 = vld [vmem:[#allocation6 + $0x458] sm:$0xf]
        %v476 = vld [vmem:[#allocation6 + $0x45c] sm:$0xff]
        %v477 = vld [vmem:[#allocation6 + $0x464] sm:$0xff]
        %v478 = vld [vmem:[#allocation6 + $0x46c] sm:$0xff]
        %v479 = vld [vmem:[#allocation6 + $0x474] sm:$0xff]
        %v480 = vld [vmem:[#allocation6 + $0x47c] sm:$0xf]
        %v483 = vunpack.c.l.s4 1983009808
        %v484 = vunpack.c.0.s8 %v483
        %v485 = vlaneseq
        %v486 = vshrl.u32 %v485, 7
        %v487 = vsub.s32 %v484, %v486
        %v488 = vrot.slane %v320, %v487
        %v489 = vcombine.high %v488, %v488
        %v652 = vunpack.c.l.b16 %v321
        %v653 = vunpack.c.h.b16 %v321
        %v654 = vunpack.c.l.b16 %v322
        %v655 = vunpack.c.h.b16 %v322
        %v656 = vunpack.c.l.b16 %v323
        %v657 = vunpack.c.h.b16 %v323
        %v658 = vunpack.c.l.b16 %v324
        %v659 = vunpack.c.h.b16 %v324
        %v660 = vunpack.c.l.b16 %v325
        %v661 = vunpack.c.l.b16 %v326
        %v662 = vunpack.c.h.b16 %v326
        %v663 = vunpack.c.l.b16 %v327
        %v664 = vunpack.c.h.b16 %v327
        %v665 = vunpack.c.l.b16 %v328
        %v666 = vunpack.c.h.b16 %v328
        %v667 = vunpack.c.l.b16 %v329
        %v668 = vunpack.c.h.b16 %v329
        %v669 = vunpack.c.l.b16 %v330
        %v670 = vunpack.c.l.b16 %v331
        %v671 = vunpack.c.h.b16 %v331
        %v672 = vunpack.c.l.b16 %v332
        %v673 = vunpack.c.h.b16 %v332
        %v674 = vunpack.c.l.b16 %v333
        %v675 = vunpack.c.h.b16 %v333
        %v676 = vunpack.c.l.b16 %v334
        %v677 = vunpack.c.h.b16 %v334
        %v678 = vunpack.c.l.b16 %v335
        %v679 = vunpack.c.l.b16 %v336
        %v680 = vunpack.c.h.b16 %v336
        %v681 = vunpack.c.l.b16 %v337
        %v682 = vunpack.c.h.b16 %v337
        %v683 = vunpack.c.l.b16 %v338
        %v684 = vunpack.c.h.b16 %v338
        %v685 = vunpack.c.l.b16 %v339
        %v686 = vunpack.c.h.b16 %v339
        %v687 = vunpack.c.l.b16 %v340
        %v688 = vunpack.c.l.b16 %v341
        %v689 = vunpack.c.h.b16 %v341
        %v690 = vunpack.c.l.b16 %v342
        %v691 = vunpack.c.h.b16 %v342
        %v692 = vunpack.c.l.b16 %v343
        %v693 = vunpack.c.h.b16 %v343
        %v694 = vunpack.c.l.b16 %v344
        %v695 = vunpack.c.h.b16 %v344
        %v696 = vunpack.c.l.b16 %v345
        %v697 = vunpack.c.l.b16 %v346
        %v698 = vunpack.c.h.b16 %v346
        %v699 = vunpack.c.l.b16 %v347
        %v700 = vunpack.c.h.b16 %v347
        %v701 = vunpack.c.l.b16 %v348
        %v702 = vunpack.c.h.b16 %v348
        %v703 = vunpack.c.l.b16 %v349
        %v704 = vunpack.c.h.b16 %v349
        %v705 = vunpack.c.l.b16 %v350
        %v706 = vunpack.c.l.b16 %v351
        %v707 = vunpack.c.h.b16 %v351
        %v708 = vunpack.c.l.b16 %v352
        %v709 = vunpack.c.h.b16 %v352
        %v710 = vunpack.c.l.b16 %v353
        %v711 = vunpack.c.h.b16 %v353
        %v712 = vunpack.c.l.b16 %v354
        %v713 = vunpack.c.h.b16 %v354
        %v714 = vunpack.c.l.b16 %v355
        %v715 = vunpack.c.l.b16 %v356
        %v716 = vunpack.c.h.b16 %v356
        %v717 = vunpack.c.l.b16 %v357
        %v718 = vunpack.c.h.b16 %v357
        %v719 = vunpack.c.l.b16 %v358
        %v720 = vunpack.c.h.b16 %v358
        %v721 = vunpack.c.l.b16 %v359
        %v722 = vunpack.c.h.b16 %v359
        %v723 = vunpack.c.l.b16 %v360
        %v724 = vunpack.c.l.b16 %v361
        %v725 = vunpack.c.h.b16 %v361
        %v726 = vunpack.c.l.b16 %v362
        %v727 = vunpack.c.h.b16 %v362
        %v728 = vunpack.c.l.b16 %v363
        %v729 = vunpack.c.h.b16 %v363
        %v730 = vunpack.c.l.b16 %v364
        %v731 = vunpack.c.h.b16 %v364
        %v732 = vunpack.c.l.b16 %v365
        %v733 = vunpack.c.l.b16 %v366
        %v734 = vunpack.c.h.b16 %v366
        %v735 = vunpack.c.l.b16 %v367
        %v736 = vunpack.c.h.b16 %v367
        %v737 = vunpack.c.l.b16 %v368
        %v738 = vunpack.c.h.b16 %v368
        %v739 = vunpack.c.l.b16 %v369
        %v740 = vunpack.c.h.b16 %v369
        %v741 = vunpack.c.l.b16 %v370
        %v742 = vunpack.c.l.b16 %v371
        %v743 = vunpack.c.h.b16 %v371
        %v744 = vunpack.c.l.b16 %v372
        %v745 = vunpack.c.h.b16 %v372
        %v746 = vunpack.c.l.b16 %v373
        %v747 = vunpack.c.h.b16 %v373
        %v748 = vunpack.c.l.b16 %v374
        %v749 = vunpack.c.h.b16 %v374
        %v750 = vunpack.c.l.b16 %v375
        %v751 = vunpack.c.l.b16 %v376
        %v752 = vunpack.c.h.b16 %v376
        %v753 = vunpack.c.l.b16 %v377
        %v754 = vunpack.c.h.b16 %v377
        %v755 = vunpack.c.l.b16 %v378
        %v756 = vunpack.c.h.b16 %v378
        %v757 = vunpack.c.l.b16 %v379
        %v758 = vunpack.c.h.b16 %v379
        %v759 = vunpack.c.l.b16 %v380
        %v760 = vunpack.c.l.b16 %v381
        %v761 = vunpack.c.h.b16 %v381
        %v762 = vunpack.c.l.b16 %v382
        %v763 = vunpack.c.h.b16 %v382
        %v764 = vunpack.c.l.b16 %v383
        %v765 = vunpack.c.h.b16 %v383
        %v766 = vunpack.c.l.b16 %v384
        %v767 = vunpack.c.h.b16 %v384
        %v768 = vunpack.c.l.b16 %v385
        %v769 = vunpack.c.l.b16 %v386
        %v770 = vunpack.c.h.b16 %v386
        %v771 = vunpack.c.l.b16 %v387
        %v772 = vunpack.c.h.b16 %v387
        %v773 = vunpack.c.l.b16 %v388
        %v774 = vunpack.c.h.b16 %v388
        %v775 = vunpack.c.l.b16 %v389
        %v776 = vunpack.c.h.b16 %v389
        %v777 = vunpack.c.l.b16 %v390
        %v778 = vunpack.c.l.b16 %v391
        %v779 = vunpack.c.h.b16 %v391
        %v780 = vunpack.c.l.b16 %v392
        %v781 = vunpack.c.h.b16 %v392
        %v782 = vunpack.c.l.b16 %v393
        %v783 = vunpack.c.h.b16 %v393
        %v784 = vunpack.c.l.b16 %v394
        %v785 = vunpack.c.h.b16 %v394
        %v786 = vunpack.c.l.b16 %v395
        %v787 = vunpack.c.l.b16 %v396
        %v788 = vunpack.c.h.b16 %v396
        %v789 = vunpack.c.l.b16 %v397
        %v790 = vunpack.c.h.b16 %v397
        %v791 = vunpack.c.l.b16 %v398
        %v792 = vunpack.c.h.b16 %v398
        %v793 = vunpack.c.l.b16 %v399
        %v794 = vunpack.c.h.b16 %v399
        %v795 = vunpack.c.l.b16 %v400
        %v796 = vunpack.c.l.b16 %v401
        %v797 = vunpack.c.h.b16 %v401
        %v798 = vunpack.c.l.b16 %v402
        %v799 = vunpack.c.h.b16 %v402
        %v800 = vunpack.c.l.b16 %v403
        %v801 = vunpack.c.h.b16 %v403
        %v802 = vunpack.c.l.b16 %v404
        %v803 = vunpack.c.h.b16 %v404
        %v804 = vunpack.c.l.b16 %v405
        %v805 = vunpack.c.l.b16 %v406
        %v806 = vunpack.c.h.b16 %v406
        %v807 = vunpack.c.l.b16 %v407
        %v808 = vunpack.c.h.b16 %v407
        %v809 = vunpack.c.l.b16 %v408
        %v810 = vunpack.c.h.b16 %v408
        %v811 = vunpack.c.l.b16 %v409
        %v812 = vunpack.c.h.b16 %v409
        %v813 = vunpack.c.l.b16 %v410
        %v814 = vunpack.c.l.b16 %v411
        %v815 = vunpack.c.h.b16 %v411
        %v816 = vunpack.c.l.b16 %v412
        %v817 = vunpack.c.h.b16 %v412
        %v818 = vunpack.c.l.b16 %v413
        %v819 = vunpack.c.h.b16 %v413
        %v820 = vunpack.c.l.b16 %v414
        %v821 = vunpack.c.h.b16 %v414
        %v822 = vunpack.c.l.b16 %v415
        %v823 = vunpack.c.l.b16 %v416
        %v824 = vunpack.c.h.b16 %v416
        %v825 = vunpack.c.l.b16 %v417
        %v826 = vunpack.c.h.b16 %v417
        %v827 = vunpack.c.l.b16 %v418
        %v828 = vunpack.c.h.b16 %v418
        %v829 = vunpack.c.l.b16 %v419
        %v830 = vunpack.c.h.b16 %v419
        %v831 = vunpack.c.l.b16 %v420
        %v832 = vunpack.c.l.b16 %v421
        %v833 = vunpack.c.h.b16 %v421
        %v834 = vunpack.c.l.b16 %v422
        %v835 = vunpack.c.h.b16 %v422
        %v836 = vunpack.c.l.b16 %v423
        %v837 = vunpack.c.h.b16 %v423
        %v838 = vunpack.c.l.b16 %v424
        %v839 = vunpack.c.h.b16 %v424
        %v840 = vunpack.c.l.b16 %v425
        %v841 = vunpack.c.l.b16 %v426
        %v842 = vunpack.c.h.b16 %v426
        %v843 = vunpack.c.l.b16 %v427
        %v844 = vunpack.c.h.b16 %v427
        %v845 = vunpack.c.l.b16 %v428
        %v846 = vunpack.c.h.b16 %v428
        %v847 = vunpack.c.l.b16 %v429
        %v848 = vunpack.c.h.b16 %v429
        %v849 = vunpack.c.l.b16 %v430
        %v850 = vunpack.c.l.b16 %v431
        %v851 = vunpack.c.h.b16 %v431
        %v852 = vunpack.c.l.b16 %v432
        %v853 = vunpack.c.h.b16 %v432
        %v854 = vunpack.c.l.b16 %v433
        %v855 = vunpack.c.h.b16 %v433
        %v856 = vunpack.c.l.b16 %v434
        %v857 = vunpack.c.h.b16 %v434
        %v858 = vunpack.c.l.b16 %v435
        %v859 = vunpack.c.l.b16 %v436
        %v860 = vunpack.c.h.b16 %v436
        %v861 = vunpack.c.l.b16 %v437
        %v862 = vunpack.c.h.b16 %v437
        %v863 = vunpack.c.l.b16 %v438
        %v864 = vunpack.c.h.b16 %v438
        %v865 = vunpack.c.l.b16 %v439
        %v866 = vunpack.c.h.b16 %v439
        %v867 = vunpack.c.l.b16 %v440
        %v868 = vunpack.c.l.b16 %v441
        %v869 = vunpack.c.h.b16 %v441
        %v870 = vunpack.c.l.b16 %v442
        %v871 = vunpack.c.h.b16 %v442
        %v872 = vunpack.c.l.b16 %v443
        %v873 = vunpack.c.h.b16 %v443
        %v874 = vunpack.c.l.b16 %v444
        %v875 = vunpack.c.h.b16 %v444
        %v876 = vunpack.c.l.b16 %v445
        %v877 = vunpack.c.l.b16 %v446
        %v878 = vunpack.c.h.b16 %v446
        %v879 = vunpack.c.l.b16 %v447
        %v880 = vunpack.c.h.b16 %v447
        %v881 = vunpack.c.l.b16 %v448
        %v882 = vunpack.c.h.b16 %v448
        %v883 = vunpack.c.l.b16 %v449
        %v884 = vunpack.c.h.b16 %v449
        %v885 = vunpack.c.l.b16 %v450
        %v886 = vunpack.c.l.b16 %v451
        %v887 = vunpack.c.h.b16 %v451
        %v888 = vunpack.c.l.b16 %v452
        %v889 = vunpack.c.h.b16 %v452
        %v890 = vunpack.c.l.b16 %v453
        %v891 = vunpack.c.h.b16 %v453
        %v892 = vunpack.c.l.b16 %v454
        %v893 = vunpack.c.h.b16 %v454
        %v894 = vunpack.c.l.b16 %v455
        %v895 = vunpack.c.l.b16 %v456
        %v896 = vunpack.c.h.b16 %v456
        %v897 = vunpack.c.l.b16 %v457
        %v898 = vunpack.c.h.b16 %v457
        %v899 = vunpack.c.l.b16 %v458
        %v900 = vunpack.c.h.b16 %v458
        %v901 = vunpack.c.l.b16 %v459
        %v902 = vunpack.c.h.b16 %v459
        %v903 = vunpack.c.l.b16 %v460
        %v904 = vunpack.c.l.b16 %v461
        %v905 = vunpack.c.h.b16 %v461
        %v906 = vunpack.c.l.b16 %v462
        %v907 = vunpack.c.h.b16 %v462
        %v908 = vunpack.c.l.b16 %v463
        %v909 = vunpack.c.h.b16 %v463
        %v910 = vunpack.c.l.b16 %v464
        %v911 = vunpack.c.h.b16 %v464
        %v912 = vunpack.c.l.b16 %v465
        %v913 = vunpack.c.l.b16 %v466
        %v914 = vunpack.c.h.b16 %v466
        %v915 = vunpack.c.l.b16 %v467
        %v916 = vunpack.c.h.b16 %v467
        %v917 = vunpack.c.l.b16 %v468
        %v918 = vunpack.c.h.b16 %v468
        %v919 = vunpack.c.l.b16 %v469
        %v920 = vunpack.c.h.b16 %v469
        %v921 = vunpack.c.l.b16 %v470
        %v922 = vunpack.c.l.b16 %v471
        %v923 = vunpack.c.h.b16 %v471
        %v924 = vunpack.c.l.b16 %v472
        %v925 = vunpack.c.h.b16 %v472
        %v926 = vunpack.c.l.b16 %v473
        %v927 = vunpack.c.h.b16 %v473
        %v928 = vunpack.c.l.b16 %v474
        %v929 = vunpack.c.h.b16 %v474
        %v930 = vunpack.c.l.b16 %v475
        %v931 = vunpack.c.l.b16 %v476
        %v932 = vunpack.c.h.b16 %v476
        %v933 = vunpack.c.l.b16 %v477
        %v934 = vunpack.c.h.b16 %v477
        %v935 = vunpack.c.l.b16 %v478
        %v936 = vunpack.c.h.b16 %v478
        %v937 = vunpack.c.l.b16 %v479
        %v938 = vunpack.c.h.b16 %v479
        %v939 = vunpack.c.l.b16 %v480
        %v940 = vpack.c.b16 %v661, %v652
        %v941 = vpack.c.b16 %v662, %v653
        %v942 = vpack.c.b16 %v663, %v654
        %v943 = vpack.c.b16 %v664, %v655
        %v944 = vpack.c.b16 %v665, %v656
        %v945 = vpack.c.b16 %v666, %v657
        %v946 = vpack.c.b16 %v667, %v658
        %v947 = vpack.c.b16 %v668, %v659
        %v948 = vpack.c.b16 %v669, %v660
        %v949 = vpack.c.b16 %v679, %v670
        %v950 = vpack.c.b16 %v680, %v671
        %v951 = vpack.c.b16 %v681, %v672
        %v952 = vpack.c.b16 %v682, %v673
        %v953 = vpack.c.b16 %v683, %v674
        %v954 = vpack.c.b16 %v684, %v675
        %v955 = vpack.c.b16 %v685, %v676
        %v956 = vpack.c.b16 %v686, %v677
        %v957 = vpack.c.b16 %v687, %v678
        %v958 = vpack.c.b16 %v697, %v688
        %v959 = vpack.c.b16 %v698, %v689
        %v960 = vpack.c.b16 %v699, %v690
        %v961 = vpack.c.b16 %v700, %v691
        %v962 = vpack.c.b16 %v701, %v692
        %v963 = vpack.c.b16 %v702, %v693
        %v964 = vpack.c.b16 %v703, %v694
        %v965 = vpack.c.b16 %v704, %v695
        %v966 = vpack.c.b16 %v705, %v696
        %v967 = vpack.c.b16 %v715, %v706
        %v968 = vpack.c.b16 %v716, %v707
        %v969 = vpack.c.b16 %v717, %v708
        %v970 = vpack.c.b16 %v718, %v709
        %v971 = vpack.c.b16 %v719, %v710
        %v972 = vpack.c.b16 %v720, %v711
        %v973 = vpack.c.b16 %v721, %v712
        %v974 = vpack.c.b16 %v722, %v713
        %v975 = vpack.c.b16 %v723, %v714
        %v976 = vpack.c.b16 %v733, %v724
        %v977 = vpack.c.b16 %v734, %v725
        %v978 = vpack.c.b16 %v735, %v726
        %v979 = vpack.c.b16 %v736, %v727
        %v980 = vpack.c.b16 %v737, %v728
        %v981 = vpack.c.b16 %v738, %v729
        %v982 = vpack.c.b16 %v739, %v730
        %v983 = vpack.c.b16 %v740, %v731
        %v984 = vpack.c.b16 %v741, %v732
        %v985 = vpack.c.b16 %v751, %v742
        %v986 = vpack.c.b16 %v752, %v743
        %v987 = vpack.c.b16 %v753, %v744
        %v988 = vpack.c.b16 %v754, %v745
        %v989 = vpack.c.b16 %v755, %v746
        %v990 = vpack.c.b16 %v756, %v747
        %v991 = vpack.c.b16 %v757, %v748
        %v992 = vpack.c.b16 %v758, %v749
        %v993 = vpack.c.b16 %v759, %v750
        %v994 = vpack.c.b16 %v769, %v760
        %v995 = vpack.c.b16 %v770, %v761
        %v996 = vpack.c.b16 %v771, %v762
        %v997 = vpack.c.b16 %v772, %v763
        %v998 = vpack.c.b16 %v773, %v764
        %v999 = vpack.c.b16 %v774, %v765
        %v1000 = vpack.c.b16 %v775, %v766
        %v1001 = vpack.c.b16 %v776, %v767
        %v1002 = vpack.c.b16 %v777, %v768
        %v1003 = vpack.c.b16 %v787, %v778
        %v1004 = vpack.c.b16 %v788, %v779
        %v1005 = vpack.c.b16 %v789, %v780
        %v1006 = vpack.c.b16 %v790, %v781
        %v1007 = vpack.c.b16 %v791, %v782
        %v1008 = vpack.c.b16 %v792, %v783
        %v1009 = vpack.c.b16 %v793, %v784
        %v1010 = vpack.c.b16 %v794, %v785
        %v1011 = vpack.c.b16 %v795, %v786
        %v1012 = vpack.c.b16 %v805, %v796
        %v1013 = vpack.c.b16 %v806, %v797
        %v1014 = vpack.c.b16 %v807, %v798
        %v1015 = vpack.c.b16 %v808, %v799
        %v1016 = vpack.c.b16 %v809, %v800
        %v1017 = vpack.c.b16 %v810, %v801
        %v1018 = vpack.c.b16 %v811, %v802
        %v1019 = vpack.c.b16 %v812, %v803
        %v1020 = vpack.c.b16 %v813, %v804
        %v1021 = vpack.c.b16 %v823, %v814
        %v1022 = vpack.c.b16 %v824, %v815
        %v1023 = vpack.c.b16 %v825, %v816
        %v1024 = vpack.c.b16 %v826, %v817
        %v1025 = vpack.c.b16 %v827, %v818
        %v1026 = vpack.c.b16 %v828, %v819
        %v1027 = vpack.c.b16 %v829, %v820
        %v1028 = vpack.c.b16 %v830, %v821
        %v1029 = vpack.c.b16 %v831, %v822
        %v1030 = vpack.c.b16 %v841, %v832
        %v1031 = vpack.c.b16 %v842, %v833
        %v1032 = vpack.c.b16 %v843, %v834
        %v1033 = vpack.c.b16 %v844, %v835
        %v1034 = vpack.c.b16 %v845, %v836
        %v1035 = vpack.c.b16 %v846, %v837
        %v1036 = vpack.c.b16 %v847, %v838
        %v1037 = vpack.c.b16 %v848, %v839
        %v1038 = vpack.c.b16 %v849, %v840
        %v1039 = vpack.c.b16 %v859, %v850
        %v1040 = vpack.c.b16 %v860, %v851
        %v1041 = vpack.c.b16 %v861, %v852
        %v1042 = vpack.c.b16 %v862, %v853
        %v1043 = vpack.c.b16 %v863, %v854
        %v1044 = vpack.c.b16 %v864, %v855
        %v1045 = vpack.c.b16 %v865, %v856
        %v1046 = vpack.c.b16 %v866, %v857
        %v1047 = vpack.c.b16 %v867, %v858
        %v1048 = vpack.c.b16 %v877, %v868
        %v1049 = vpack.c.b16 %v878, %v869
        %v1050 = vpack.c.b16 %v879, %v870
        %v1051 = vpack.c.b16 %v880, %v871
        %v1052 = vpack.c.b16 %v881, %v872
        %v1053 = vpack.c.b16 %v882, %v873
        %v1054 = vpack.c.b16 %v883, %v874
        %v1055 = vpack.c.b16 %v884, %v875
        %v1056 = vpack.c.b16 %v885, %v876
        %v1057 = vpack.c.b16 %v895, %v886
        %v1058 = vpack.c.b16 %v896, %v887
        %v1059 = vpack.c.b16 %v897, %v888
        %v1060 = vpack.c.b16 %v898, %v889
        %v1061 = vpack.c.b16 %v899, %v890
        %v1062 = vpack.c.b16 %v900, %v891
        %v1063 = vpack.c.b16 %v901, %v892
        %v1064 = vpack.c.b16 %v902, %v893
        %v1065 = vpack.c.b16 %v903, %v894
        %v1066 = vpack.c.b16 %v913, %v904
        %v1067 = vpack.c.b16 %v914, %v905
        %v1068 = vpack.c.b16 %v915, %v906
        %v1069 = vpack.c.b16 %v916, %v907
        %v1070 = vpack.c.b16 %v917, %v908
        %v1071 = vpack.c.b16 %v918, %v909
        %v1072 = vpack.c.b16 %v919, %v910
        %v1073 = vpack.c.b16 %v920, %v911
        %v1074 = vpack.c.b16 %v921, %v912
        %v1075 = vpack.c.b16 %v931, %v922
        %v1076 = vpack.c.b16 %v932, %v923
        %v1077 = vpack.c.b16 %v933, %v924
        %v1078 = vpack.c.b16 %v934, %v925
        %v1079 = vpack.c.b16 %v935, %v926
        %v1080 = vpack.c.b16 %v936, %v927
        %v1081 = vpack.c.b16 %v937, %v928
        %v1082 = vpack.c.b16 %v938, %v929
        %v1083 = vpack.c.b16 %v939, %v930
        %1228 = vmatprep.subr.bf16.mxu0 %v941
        %1229 = vmatpush1.bf16.msra.mxu0 %v940
        %1230 = vmatprep.subr.bf16.mxu0 %v950
        %1231 = vmatpush1.bf16.msra.mxu0 %v949
        %1232 = vmatprep.subr.bf16.mxu0 %v959
        %1233 = vmatpush1.bf16.msra.mxu0 %v958
        %1234 = vmatprep.subr.bf16.mxu0 %v968
        %1235 = vmatpush1.bf16.msra.mxu0 %v967
        %1236 = vmatprep.subr.bf16.mxu0 %v977
        %1237 = vmatpush1.bf16.msra.mxu0 %v976
        %1238 = vmatprep.subr.bf16.mxu0 %v986
        %1239 = vmatpush1.bf16.msra.mxu0 %v985
        %1240 = vmatprep.subr.bf16.mxu0 %v995
        %1241 = vmatpush1.bf16.msra.mxu0 %v994
        %1242 = vmatprep.subr.bf16.mxu0 %v1004
        %1243 = vmatpush1.bf16.msra.mxu0 %v1003
        %1244 = vmatprep.subr.bf16.mxu0 %v1013
        %1245 = vmatpush1.bf16.msra.mxu0 %v1012
        %1246 = vmatprep.subr.bf16.mxu0 %v1022
        %1247 = vmatpush1.bf16.msra.mxu0 %v1021
        %1248 = vmatprep.subr.bf16.mxu0 %v1031
        %1249 = vmatpush1.bf16.msra.mxu0 %v1030
        %1250 = vmatprep.subr.bf16.mxu0 %v1040
        %1251 = vmatpush1.bf16.msra.mxu0 %v1039
        %1252 = vmatprep.subr.bf16.mxu0 %v1049
        %1253 = vmatpush1.bf16.msra.mxu0 %v1048
        %1254 = vmatprep.subr.bf16.mxu0 %v1058
        %1255 = vmatpush1.bf16.msra.mxu0 %v1057
        %1256 = vmatprep.subr.bf16.mxu0 %v1067
        %1257 = vmatpush1.bf16.msra.mxu0 %v1066
        %1258 = vmatprep.subr.bf16.mxu0 %v1076
        %1259 = vmatpush1.bf16.msra.mxu0 %v1075
        %1260 = vmatprep.mubr.bf16.mxu0 %v489
        %1261 = vmatmul.mubr.bf16.gmra.mrb[0].mxu0 %v488
        %v1262 = vpop.f32.mrb[0].mxu0
        %v1263 = vadd.f32 0.0, %v1262
        %v1264 = vpop.f32.mrb[0].mxu0
        %v1265 = vadd.f32 0.0, %v1264
        %v1266 = vpop.f32.mrb[0].mxu0
        %v1267 = vpop.f32.mrb[0].mxu0
        %1268 = vdwg.mxu0
        %1269 = vmatprep.subr.bf16.mxu0 %v943
        %1270 = vmatpush1.bf16.msra.mxu0 %v942
        %1271 = vmatprep.subr.bf16.mxu0 %v952
        %1272 = vmatpush1.bf16.msra.mxu0 %v951
        %1273 = vmatprep.subr.bf16.mxu0 %v961
        %1274 = vmatpush1.bf16.msra.mxu0 %v960
        %1275 = vmatprep.subr.bf16.mxu0 %v970
        %1276 = vmatpush1.bf16.msra.mxu0 %v969
        %1277 = vmatprep.subr.bf16.mxu0 %v979
        %1278 = vmatpush1.bf16.msra.mxu0 %v978
        %1279 = vmatprep.subr.bf16.mxu0 %v988
        %1280 = vmatpush1.bf16.msra.mxu0 %v987
        %1281 = vmatprep.subr.bf16.mxu0 %v997
        %1282 = vmatpush1.bf16.msra.mxu0 %v996
        %1283 = vmatprep.subr.bf16.mxu0 %v1006
        %1284 = vmatpush1.bf16.msra.mxu0 %v1005
        %1285 = vmatprep.subr.bf16.mxu0 %v1015
        %1286 = vmatpush1.bf16.msra.mxu0 %v1014
        %1287 = vmatprep.subr.bf16.mxu0 %v1024
        %1288 = vmatpush1.bf16.msra.mxu0 %v1023
        %1289 = vmatprep.subr.bf16.mxu0 %v1033
        %1290 = vmatpush1.bf16.msra.mxu0 %v1032
        %1291 = vmatprep.subr.bf16.mxu0 %v1042
        %1292 = vmatpush1.bf16.msra.mxu0 %v1041
        %1293 = vmatprep.subr.bf16.mxu0 %v1051
        %1294 = vmatpush1.bf16.msra.mxu0 %v1050
        %1295 = vmatprep.subr.bf16.mxu0 %v1060
        %1296 = vmatpush1.bf16.msra.mxu0 %v1059
        %1297 = vmatprep.subr.bf16.mxu0 %v1069
        %1298 = vmatpush1.bf16.msra.mxu0 %v1068
        %1299 = vmatprep.subr.bf16.mxu0 %v1078
        %1300 = vmatpush1.bf16.msra.mxu0 %v1077
        %1301 = vmatprep.mubr.bf16.mxu0 %v489
        %1302 = vmatmul.mubr.bf16.gmra.mrb[0].mxu0 %v488
        %v1303 = vpop.f32.mrb[0].mxu0
        %v1304 = vadd.f32 0.0, %v1303
        %v1305 = vpop.f32.mrb[0].mxu0
        %v1306 = vadd.f32 0.0, %v1305
        %v1307 = vpop.f32.mrb[0].mxu0
        %v1308 = vpop.f32.mrb[0].mxu0
        %1309 = vdwg.mxu0
        %1310 = vmatprep.subr.bf16.mxu0 %v945
        %1311 = vmatpush1.bf16.msra.mxu0 %v944
        %1312 = vmatprep.subr.bf16.mxu0 %v954
        %1313 = vmatpush1.bf16.msra.mxu0 %v953
        %1314 = vmatprep.subr.bf16.mxu0 %v963
        %1315 = vmatpush1.bf16.msra.mxu0 %v962
        %1316 = vmatprep.subr.bf16.mxu0 %v972
        %1317 = vmatpush1.bf16.msra.mxu0 %v971
        %1318 = vmatprep.subr.bf16.mxu0 %v981
        %1319 = vmatpush1.bf16.msra.mxu0 %v980
        %1320 = vmatprep.subr.bf16.mxu0 %v990
        %1321 = vmatpush1.bf16.msra.mxu0 %v989
        %1322 = vmatprep.subr.bf16.mxu0 %v999
        %1323 = vmatpush1.bf16.msra.mxu0 %v998
        %1324 = vmatprep.subr.bf16.mxu0 %v1008
        %1325 = vmatpush1.bf16.msra.mxu0 %v1007
        %1326 = vmatprep.subr.bf16.mxu0 %v1017
        %1327 = vmatpush1.bf16.msra.mxu0 %v1016
        %1328 = vmatprep.subr.bf16.mxu0 %v1026
        %1329 = vmatpush1.bf16.msra.mxu0 %v1025
        %1330 = vmatprep.subr.bf16.mxu0 %v1035
        %1331 = vmatpush1.bf16.msra.mxu0 %v1034
        %1332 = vmatprep.subr.bf16.mxu0 %v1044
        %1333 = vmatpush1.bf16.msra.mxu0 %v1043
        %1334 = vmatprep.subr.bf16.mxu0 %v1053
        %1335 = vmatpush1.bf16.msra.mxu0 %v1052
        %1336 = vmatprep.subr.bf16.mxu0 %v1062
        %1337 = vmatpush1.bf16.msra.mxu0 %v1061
        %1338 = vmatprep.subr.bf16.mxu0 %v1071
        %1339 = vmatpush1.bf16.msra.mxu0 %v1070
        %1340 = vmatprep.subr.bf16.mxu0 %v1080
        %1341 = vmatpush1.bf16.msra.mxu0 %v1079
        %1342 = vmatprep.mubr.bf16.mxu0 %v489
        %1343 = vmatmul.mubr.bf16.gmra.mrb[0].mxu0 %v488
        %v1344 = vpop.f32.mrb[0].mxu0
        %v1345 = vadd.f32 0.0, %v1344
        %v1346 = vpop.f32.mrb[0].mxu0
        %v1347 = vadd.f32 0.0, %v1346
        %v1348 = vpop.f32.mrb[0].mxu0
        %v1349 = vpop.f32.mrb[0].mxu0
        %1350 = vdwg.mxu0
        %1351 = vmatprep.subr.bf16.mxu0 %v947
        %1352 = vmatpush1.bf16.msra.mxu0 %v946
        %1353 = vmatprep.subr.bf16.mxu0 %v956
        %1354 = vmatpush1.bf16.msra.mxu0 %v955
        %1355 = vmatprep.subr.bf16.mxu0 %v965
        %1356 = vmatpush1.bf16.msra.mxu0 %v964
        %1357 = vmatprep.subr.bf16.mxu0 %v974
        %1358 = vmatpush1.bf16.msra.mxu0 %v973
        %1359 = vmatprep.subr.bf16.mxu0 %v983
        %1360 = vmatpush1.bf16.msra.mxu0 %v982
        %1361 = vmatprep.subr.bf16.mxu0 %v992
        %1362 = vmatpush1.bf16.msra.mxu0 %v991
        %1363 = vmatprep.subr.bf16.mxu0 %v1001
        %1364 = vmatpush1.bf16.msra.mxu0 %v1000
        %1365 = vmatprep.subr.bf16.mxu0 %v1010
        %1366 = vmatpush1.bf16.msra.mxu0 %v1009
        %1367 = vmatprep.subr.bf16.mxu0 %v1019
        %1368 = vmatpush1.bf16.msra.mxu0 %v1018
        %1369 = vmatprep.subr.bf16.mxu0 %v1028
        %1370 = vmatpush1.bf16.msra.mxu0 %v1027
        %1371 = vmatprep.subr.bf16.mxu0 %v1037
        %1372 = vmatpush1.bf16.msra.mxu0 %v1036
        %1373 = vmatprep.subr.bf16.mxu0 %v1046
        %1374 = vmatpush1.bf16.msra.mxu0 %v1045
        %1375 = vmatprep.subr.bf16.mxu0 %v1055
        %1376 = vmatpush1.bf16.msra.mxu0 %v1054
        %1377 = vmatprep.subr.bf16.mxu0 %v1064
        %1378 = vmatpush1.bf16.msra.mxu0 %v1063
        %1379 = vmatprep.subr.bf16.mxu0 %v1073
        %1380 = vmatpush1.bf16.msra.mxu0 %v1072
        %1381 = vmatprep.subr.bf16.mxu0 %v1082
        %1382 = vmatpush1.bf16.msra.mxu0 %v1081
        %1383 = vmatprep.mubr.bf16.mxu0 %v489
        %1384 = vmatmul.mubr.bf16.gmra.mrb[0].mxu0 %v488
        %v1385 = vpop.f32.mrb[0].mxu0
        %v1386 = vadd.f32 0.0, %v1385
        %v1387 = vpop.f32.mrb[0].mxu0
        %v1388 = vadd.f32 0.0, %v1387
        %v1389 = vpop.f32.mrb[0].mxu0
        %v1390 = vpop.f32.mrb[0].mxu0
        %1391 = vdwg.mxu0
        %1392 = vmatprep.subr.bf16.mxu0 0
        %1393 = vmatpush1.bf16.msra.mxu0 %v948
        %1394 = vmatprep.subr.bf16.mxu0 0
        %1395 = vmatpush1.bf16.msra.mxu0 %v957
        %1396 = vmatprep.subr.bf16.mxu0 0
        %1397 = vmatpush1.bf16.msra.mxu0 %v966
        %1398 = vmatprep.subr.bf16.mxu0 0
        %1399 = vmatpush1.bf16.msra.mxu0 %v975
        %1400 = vmatprep.subr.bf16.mxu0 0
        %1401 = vmatpush1.bf16.msra.mxu0 %v984
        %1402 = vmatprep.subr.bf16.mxu0 0
        %1403 = vmatpush1.bf16.msra.mxu0 %v993
        %1404 = vmatprep.subr.bf16.mxu0 0
        %1405 = vmatpush1.bf16.msra.mxu0 %v1002
        %1406 = vmatprep.subr.bf16.mxu0 0
        %1407 = vmatpush1.bf16.msra.mxu0 %v1011
        %1408 = vmatprep.subr.bf16.mxu0 0
        %1409 = vmatpush1.bf16.msra.mxu0 %v1020
        %1410 = vmatprep.subr.bf16.mxu0 0
        %1411 = vmatpush1.bf16.msra.mxu0 %v1029
        %1412 = vmatprep.subr.bf16.mxu0 0
        %1413 = vmatpush1.bf16.msra.mxu0 %v1038
        %1414 = vmatprep.subr.bf16.mxu0 0
        %1415 = vmatpush1.bf16.msra.mxu0 %v1047
        %1416 = vmatprep.subr.bf16.mxu0 0
        %1417 = vmatpush1.bf16.msra.mxu0 %v1056
        %1418 = vmatprep.subr.bf16.mxu0 0
        %1419 = vmatpush1.bf16.msra.mxu0 %v1065
        %1420 = vmatprep.subr.bf16.mxu0 0
        %1421 = vmatpush1.bf16.msra.mxu0 %v1074
        %1422 = vmatprep.subr.bf16.mxu0 0
        %1423 = vmatpush1.bf16.msra.mxu0 %v1083
        %1424 = vmatprep.mubr.bf16.mxu0 %v489
        %1425 = vmatmul.mubr.bf16.gmra.mrb[0].mxu0 %v488
        %v1426 = vpop.f32.mrb[0].mxu0
        %v1427 = vadd.f32 0.0, %v1426
        %v1428 = vpop.f32.mrb[0].mxu0
        %v1429 = vpop.f32.mrb[0].mxu0
        %v1430 = vpop.f32.mrb[0].mxu0
        %1431 = vdwg.mxu0
        %vm1432 = vcmask 287744
        %1433 = vst.msk [vmem:[#allocation2] sm:$0x3] %vm1432, 0
        %v1434 = vpack.c.bf16 %v1263, %v1263
        %v1435 = vpack.c.bf16 %v1265, %v1265
        %v1436 = vpack.c.bf16 %v1304, %v1304
        %v1437 = vpack.c.bf16 %v1306, %v1306
        %v1438 = vpack.c.bf16 %v1345, %v1345
        %v1439 = vpack.c.bf16 %v1347, %v1347
        %v1440 = vpack.c.bf16 %v1386, %v1386
        %v1441 = vpack.c.bf16 %v1388, %v1388
        %v1442 = vpack.c.bf16 %v1427, %v1427
        %v1452 = vcombine.low %v1434, %v1435
        %v1453 = vcombine.low %v1436, %v1437
        %v1455 = vunpack.c.l.s4 1983009808
        %v1456 = vunpack.c.0.s8 %v1455
        %v1457 = vlaneseq
        %v1458 = vshrl.u32 %v1457, 7
        %v1459 = vsub.s32 %v1456, %v1458
        %v1460 = vrot.slane %v1452, %v1459
        %v1462 = vunpack.c.l.s4 1983009808
        %v1463 = vunpack.c.0.s8 %v1462
        %v1464 = vlaneseq
        %v1465 = vshrl.u32 %v1464, 7
        %v1466 = vsub.s32 %v1463, %v1465
        %v1467 = vrot.slane %v1453, %v1466
        %v1468 = vcombine.low %v1460, %v1467
        %v1469 = vcombine.low %v1438, %v1439
        %v1470 = vcombine.low %v1440, %v1441
        %v1472 = vunpack.c.l.s4 1983009808
        %v1473 = vunpack.c.0.s8 %v1472
        %v1474 = vlaneseq
        %v1475 = vshrl.u32 %v1474, 7
        %v1476 = vsub.s32 %v1473, %v1475
        %v1477 = vrot.slane %v1469, %v1476
        %v1479 = vunpack.c.l.s4 1983009808
        %v1480 = vunpack.c.0.s8 %v1479
        %v1481 = vlaneseq
        %v1482 = vshrl.u32 %v1481, 7
        %v1483 = vsub.s32 %v1480, %v1482
        %v1484 = vrot.slane %v1470, %v1483
        %v1485 = vcombine.low %v1477, %v1484
        %v1487 = vunpack.c.l.s4 1983009808
        %v1488 = vunpack.c.0.s8 %v1487
        %v1489 = vlaneseq
        %v1490 = vshrl.u32 %v1489, 7
        %v1491 = vsub.s32 %v1488, %v1490
        %v1492 = vrot.slane %v1442, %v1491
        %1493 = vrot.lane.b32.xlu0 %v1468, 36
        %v1494 = vpop.permute.xlu0 %1493
        %1495 = vrot.lane.b32.xlu0 %v1485, 36
        %v1496 = vpop.permute.xlu0 %1495
        %1497 = vrot.lane.b32.xlu0 %v1492, 36
        %v1498 = vpop.permute.xlu0 %1497
        %v1499 = vrot.slane %v1494, 6
        %v1500 = vrot.slane %v1496, 6
        %v1501 = vrot.slane %v1498, 6
        %vm1502 = vcmask 293888
        %v1503 = vsel %vm1502, %v1499, %v1494
        %vm1504 = vcmask 1041408
        %v1505 = vsel %vm1504, %v1499, %v1500
        %v1506 = vsel %vm1502, %v1505, %v1496
        %v1507 = vsel %vm1504, %v1500, %v1501
        %v1508 = vsel %vm1502, %v1507, %v1498
        %vm1512 = vcmask 1041696
        %vm1513 = vcmask 1043458
        %vm1514 = vmor %vm1513, %vm1512
        %vm1515 = vcmask 1045508
        %vm1516 = vmor %vm1515, %vm1514
        %vm1517 = vcmask 1047558
        %vm1518 = vmor %vm1517, %vm1516
        %1519 = vst.msk [vmem:[#allocation2] sm:$0xff] %vm1518, %v1503
        %1520 = vst [vmem:[#allocation2 + $0x8] sm:$0xff] %v1506
        %vm1521 = vcmask 1041408
        %vm1522 = vcmask 289794
        %vm1523 = vmor %vm1522, %vm1521
        %1524 = vst.msk [vmem:[#allocation2 + $0x10] sm:$0xf] %vm1523, %v1508
        %vm1525 = vcmask 877856
        %1526 = vst.msk [vmem:[#allocation2 + $0x12] sm:$0x3] %vm1525, 0
        %v1527 = vld [vmem:[#allocation2] sm:$0xff]
        %v1528 = vld [vmem:[#allocation2 + $0x8] sm:$0xff]
        %v1529 = vld [vmem:[#allocation2 + $0x10] sm:$0x3]
        %v1533 = vcombine.high %v1527, %v1527
        %v1535 = vunpack.c.l.s4 1983009808
        %v1536 = vunpack.c.0.s8 %v1535
        %v1537 = vlaneseq
        %v1538 = vshrl.u32 %v1537, 7
        %v1539 = vsub.s32 %v1536, %v1538
        %v1540 = vrot.slane %v1527, %v1539
        %v1542 = vunpack.c.l.s4 1983009808
        %v1543 = vunpack.c.0.s8 %v1542
        %v1544 = vlaneseq
        %v1545 = vshrl.u32 %v1544, 7
        %v1546 = vsub.s32 %v1543, %v1545
        %v1547 = vrot.slane %v1533, %v1546
        %v1548 = vcombine.high %v1528, %v1528
        %v1550 = vunpack.c.l.s4 1983009808
        %v1551 = vunpack.c.0.s8 %v1550
        %v1552 = vlaneseq
        %v1553 = vshrl.u32 %v1552, 7
        %v1554 = vsub.s32 %v1551, %v1553
        %v1555 = vrot.slane %v1528, %v1554
        %v1557 = vunpack.c.l.s4 1983009808
        %v1558 = vunpack.c.0.s8 %v1557
        %v1559 = vlaneseq
        %v1560 = vshrl.u32 %v1559, 7
        %v1561 = vsub.s32 %v1558, %v1560
        %v1562 = vrot.slane %v1548, %v1561
        %v1564 = vunpack.c.l.s4 1983009808
        %v1565 = vunpack.c.0.s8 %v1564
        %v1566 = vlaneseq
        %v1567 = vshrl.u32 %v1566, 7
        %v1568 = vsub.s32 %v1565, %v1567
        %v1569 = vrot.slane %v1529, %v1568
        %1575 = vst [vmem:[#allocation4] sm:$0x33] %v1540
        %1576 = vst [vmem:[#allocation4 + $0x8] sm:$0x33] %v1547
        %1577 = vst [vmem:[#allocation4 + $0x10] sm:$0x33] %v1555
        %1578 = vst [vmem:[#allocation4 + $0x18] sm:$0x33] %v1562
        %1579 = vst [vmem:[#allocation4 + $0x20] sm:$0x3] %v1569
        %v1580 = vld [vmem:[#allocation2] sm:$0xff]
        %v1581 = vld [vmem:[#allocation2 + $0x8] sm:$0xff]
        %v1582 = vld [vmem:[#allocation2 + $0x10] sm:$0xf]
        %v1586 = vcombine.low %v1580, %v1580
        %v1588 = vunpack.c.l.s4 1983009808
        %v1589 = vunpack.c.0.s8 %v1588
        %v1590 = vlaneseq
        %v1591 = vshrl.u32 %v1590, 7
        %v1592 = vsub.s32 %v1589, %v1591
        %v1593 = vrot.slane %v1586, %v1592
        %v1595 = vunpack.c.l.s4 1983009808
        %v1596 = vunpack.c.0.s8 %v1595
        %v1597 = vlaneseq
        %v1598 = vshrl.u32 %v1597, 7
        %v1599 = vsub.s32 %v1596, %v1598
        %v1600 = vrot.slane %v1580, %v1599
        %v1601 = vcombine.low %v1581, %v1581
        %v1603 = vunpack.c.l.s4 1983009808
        %v1604 = vunpack.c.0.s8 %v1603
        %v1605 = vlaneseq
        %v1606 = vshrl.u32 %v1605, 7
        %v1607 = vsub.s32 %v1604, %v1606
        %v1608 = vrot.slane %v1601, %v1607
        %v1610 = vunpack.c.l.s4 1983009808
        %v1611 = vunpack.c.0.s8 %v1610
        %v1612 = vlaneseq
        %v1613 = vshrl.u32 %v1612, 7
        %v1614 = vsub.s32 %v1611, %v1613
        %v1615 = vrot.slane %v1581, %v1614
        %v1616 = vcombine.low %v1582, %v1582
        %v1618 = vunpack.c.l.s4 1983009808
        %v1619 = vunpack.c.0.s8 %v1618
        %v1620 = vlaneseq
        %v1621 = vshrl.u32 %v1620, 7
        %v1622 = vsub.s32 %v1619, %v1621
        %v1623 = vrot.slane %v1616, %v1622
        %1624 = vrot.lane.b32.xlu0 %v1593, 127
        %v1625 = vpop.permute.xlu0 %1624
        %1626 = vrot.lane.b32.xlu0 %v1600, 127
        %v1627 = vpop.permute.xlu0 %1626
        %1628 = vrot.lane.b32.xlu0 %v1608, 127
        %v1629 = vpop.permute.xlu0 %1628
        %1630 = vrot.lane.b32.xlu0 %v1615, 127
        %v1631 = vpop.permute.xlu0 %1630
        %1632 = vrot.lane.b32.xlu0 %v1623, 127
        %v1633 = vpop.permute.xlu0 %1632
        %v1634 = vrot.slane %v1625, 4
        %v1635 = vrot.slane %v1627, 4
        %v1636 = vrot.slane %v1629, 4
        %v1637 = vrot.slane %v1631, 4
        %v1638 = vrot.slane %v1633, 4
        %vm1639 = vcmask 1043456
        %v1640 = vsel %vm1639, %v1634, %v1635
        %vm1641 = vcmask 1039360
        %v1642 = vsel %vm1641, %v1625, %v1640
        %v1643 = vsel %vm1639, %v1635, %v1636
        %v1644 = vsel %vm1641, %v1627, %v1643
        %v1645 = vsel %vm1639, %v1636, %v1637
        %v1646 = vsel %vm1641, %v1629, %v1645
        %v1647 = vsel %vm1639, %v1637, %v1638
        %v1648 = vsel %vm1641, %v1631, %v1647
        %v1649 = vsel %vm1641, %v1633, %v1638
        %1655 = vst [vmem:[#allocation4] sm:$0xcc] %v1642
        %1656 = vst [vmem:[#allocation4 + $0x8] sm:$0xcc] %v1644
        %1657 = vst [vmem:[#allocation4 + $0x10] sm:$0xcc] %v1646
        %1658 = vst [vmem:[#allocation4 + $0x18] sm:$0xcc] %v1648
        %1659 = vst [vmem:[#allocation4 + $0x20] sm:$0xc] %v1649
        %v1660 = vld [vmem:[#allocation2] sm:$0xff]
        %v1661 = vld [vmem:[#allocation2 + $0x8] sm:$0xff]
        %v1662 = vld [vmem:[#allocation2 + $0x10] sm:$0xf]
        %v1666 = vcombine.high %v1660, %v1660
        %v1668 = vunpack.c.l.s4 1983009808
        %v1669 = vunpack.c.0.s8 %v1668
        %v1670 = vlaneseq
        %v1671 = vshrl.u32 %v1670, 7
        %v1672 = vsub.s32 %v1669, %v1671
        %v1673 = vrot.slane %v1660, %v1672
        %v1675 = vunpack.c.l.s4 1983009808
        %v1676 = vunpack.c.0.s8 %v1675
        %v1677 = vlaneseq
        %v1678 = vshrl.u32 %v1677, 7
        %v1679 = vsub.s32 %v1676, %v1678
        %v1680 = vrot.slane %v1666, %v1679
        %v1681 = vcombine.high %v1661, %v1661
        %v1683 = vunpack.c.l.s4 1983009808
        %v1684 = vunpack.c.0.s8 %v1683
        %v1685 = vlaneseq
        %v1686 = vshrl.u32 %v1685, 7
        %v1687 = vsub.s32 %v1684, %v1686
        %v1688 = vrot.slane %v1661, %v1687
        %v1690 = vunpack.c.l.s4 1983009808
        %v1691 = vunpack.c.0.s8 %v1690
        %v1692 = vlaneseq
        %v1693 = vshrl.u32 %v1692, 7
        %v1694 = vsub.s32 %v1691, %v1693
        %v1695 = vrot.slane %v1681, %v1694
        %v1697 = vunpack.c.l.s4 1983009808
        %v1698 = vunpack.c.0.s8 %v1697
        %v1699 = vlaneseq
        %v1700 = vshrl.u32 %v1699, 7
        %v1701 = vsub.s32 %v1698, %v1700
        %v1702 = vrot.slane %v1662, %v1701
        %1703 = vrot.lane.b32.xlu0 %v1673, 126
        %v1704 = vpop.permute.xlu0 %1703
        %1705 = vrot.lane.b32.xlu0 %v1680, 126
        %v1706 = vpop.permute.xlu0 %1705
        %1707 = vrot.lane.b32.xlu0 %v1688, 126
        %v1708 = vpop.permute.xlu0 %1707
        %1709 = vrot.lane.b32.xlu0 %v1695, 126
        %v1710 = vpop.permute.xlu0 %1709
        %1711 = vrot.lane.b32.xlu0 %v1702, 126
        %v1712 = vpop.permute.xlu0 %1711
        %v1713 = vrot.slane %v1704, 4
        %v1714 = vrot.slane %v1706, 4
        %v1715 = vrot.slane %v1708, 4
        %v1716 = vrot.slane %v1710, 4
        %v1717 = vrot.slane %v1712, 4
        %v1718 = vsel %vm1639, %v1713, %v1714
        %vm1719 = vcmask 1031168
        %v1720 = vsel %vm1719, %v1704, %v1718
        %v1721 = vsel %vm1639, %v1714, %v1715
        %v1722 = vsel %vm1719, %v1706, %v1721
        %v1723 = vsel %vm1639, %v1715, %v1716
        %v1724 = vsel %vm1719, %v1708, %v1723
        %v1725 = vsel %vm1639, %v1716, %v1717
        %v1726 = vsel %vm1719, %v1710, %v1725
        %v1727 = vsel %vm1719, %v1712, %v1717
        %1733 = vst [vmem:[#allocation4 + $0x24] sm:$0x33] %v1720
        %1734 = vst [vmem:[#allocation4 + $0x2c] sm:$0x33] %v1722
        %1735 = vst [vmem:[#allocation4 + $0x34] sm:$0x33] %v1724
        %1736 = vst [vmem:[#allocation4 + $0x3c] sm:$0x33] %v1726
        %1737 = vst [vmem:[#allocation4 + $0x44] sm:$0x3] %v1727
        %v1738 = vld [vmem:[#allocation2] sm:$0xff]
        %v1739 = vld [vmem:[#allocation2 + $0x8] sm:$0xff]
        %v1740 = vld [vmem:[#allocation2 + $0x10] sm:$0xf]
        %v1744 = vcombine.low %v1738, %v1738
        %v1746 = vunpack.c.l.s4 1983009808
        %v1747 = vunpack.c.0.s8 %v1746
        %v1748 = vlaneseq
        %v1749 = vshrl.u32 %v1748, 7
        %v1750 = vsub.s32 %v1747, %v1749
        %v1751 = vrot.slane %v1744, %v1750
        %v1753 = vunpack.c.l.s4 1983009808
        %v1754 = vunpack.c.0.s8 %v1753
        %v1755 = vlaneseq
        %v1756 = vshrl.u32 %v1755, 7
        %v1757 = vsub.s32 %v1754, %v1756
        %v1758 = vrot.slane %v1738, %v1757
        %v1759 = vcombine.low %v1739, %v1739
        %v1761 = vunpack.c.l.s4 1983009808
        %v1762 = vunpack.c.0.s8 %v1761
        %v1763 = vlaneseq
        %v1764 = vshrl.u32 %v1763, 7
        %v1765 = vsub.s32 %v1762, %v1764
        %v1766 = vrot.slane %v1759, %v1765
        %v1768 = vunpack.c.l.s4 1983009808
        %v1769 = vunpack.c.0.s8 %v1768
        %v1770 = vlaneseq
        %v1771 = vshrl.u32 %v1770, 7
        %v1772 = vsub.s32 %v1769, %v1771
        %v1773 = vrot.slane %v1739, %v1772
        %v1774 = vcombine.low %v1740, %v1740
        %v1776 = vunpack.c.l.s4 1983009808
        %v1777 = vunpack.c.0.s8 %v1776
        %v1778 = vlaneseq
        %v1779 = vshrl.u32 %v1778, 7
        %v1780 = vsub.s32 %v1777, %v1779
        %v1781 = vrot.slane %v1774, %v1780
        %1782 = vrot.lane.b32.xlu0 %v1751, 92
        %v1783 = vpop.permute.xlu0 %1782
        %1784 = vrot.lane.b32.xlu0 %v1758, 92
        %v1785 = vpop.permute.xlu0 %1784
        %1786 = vrot.lane.b32.xlu0 %v1766, 92
        %v1787 = vpop.permute.xlu0 %1786
        %1788 = vrot.lane.b32.xlu0 %v1773, 92
        %v1789 = vpop.permute.xlu0 %1788
        %1790 = vrot.lane.b32.xlu0 %v1781, 92
        %v1791 = vpop.permute.xlu0 %1790
        %v1792 = vrot.slane %v1783, 4
        %v1793 = vrot.slane %v1785, 4
        %v1794 = vrot.slane %v1787, 4
        %v1795 = vrot.slane %v1789, 4
        %v1796 = vrot.slane %v1791, 4
        %v1797 = vsel %vm1639, %v1792, %v1793
        %vm1798 = vcmask 752640
        %v1799 = vsel %vm1798, %v1783, %v1797
        %v1800 = vsel %vm1639, %v1793, %v1794
        %v1801 = vsel %vm1798, %v1785, %v1800
        %v1802 = vsel %vm1639, %v1794, %v1795
        %v1803 = vsel %vm1798, %v1787, %v1802
        %v1804 = vsel %vm1639, %v1795, %v1796
        %v1805 = vsel %vm1798, %v1789, %v1804
        %v1806 = vsel %vm1798, %v1791, %v1796
        %1812 = vst [vmem:[#allocation4 + $0x24] sm:$0xcc] %v1799
        %1813 = vst [vmem:[#allocation4 + $0x2c] sm:$0xcc] %v1801
        %1814 = vst [vmem:[#allocation4 + $0x34] sm:$0xcc] %v1803
        %1815 = vst [vmem:[#allocation4 + $0x3c] sm:$0xcc] %v1805
        %1816 = vst [vmem:[#allocation4 + $0x44] sm:$0xc] %v1806
        %v1817 = vld [vmem:[#allocation2] sm:$0xff]
        %v1818 = vld [vmem:[#allocation2 + $0x8] sm:$0xff]
        %v1819 = vld [vmem:[#allocation2 + $0x10] sm:$0xf]
        %v1823 = vcombine.high %v1817, %v1817
        %v1825 = vunpack.c.l.s4 1983009808
        %v1826 = vunpack.c.0.s8 %v1825
        %v1827 = vlaneseq
        %v1828 = vshrl.u32 %v1827, 7
        %v1829 = vsub.s32 %v1826, %v1828
        %v1830 = vrot.slane %v1817, %v1829
        %v1832 = vunpack.c.l.s4 1983009808
        %v1833 = vunpack.c.0.s8 %v1832
        %v1834 = vlaneseq
        %v1835 = vshrl.u32 %v1834, 7
        %v1836 = vsub.s32 %v1833, %v1835
        %v1837 = vrot.slane %v1823, %v1836
        %v1838 = vcombine.high %v1818, %v1818
        %v1840 = vunpack.c.l.s4 1983009808
        %v1841 = vunpack.c.0.s8 %v1840
        %v1842 = vlaneseq
        %v1843 = vshrl.u32 %v1842, 7
        %v1844 = vsub.s32 %v1841, %v1843
        %v1845 = vrot.slane %v1818, %v1844
        %v1847 = vunpack.c.l.s4 1983009808
        %v1848 = vunpack.c.0.s8 %v1847
        %v1849 = vlaneseq
        %v1850 = vshrl.u32 %v1849, 7
        %v1851 = vsub.s32 %v1848, %v1850
        %v1852 = vrot.slane %v1838, %v1851
        %v1854 = vunpack.c.l.s4 1983009808
        %v1855 = vunpack.c.0.s8 %v1854
        %v1856 = vlaneseq
        %v1857 = vshrl.u32 %v1856, 7
        %v1858 = vsub.s32 %v1855, %v1857
        %v1859 = vrot.slane %v1819, %v1858
        %1860 = vrot.lane.b32.xlu0 %v1830, 91
        %v1861 = vpop.permute.xlu0 %1860
        %1862 = vrot.lane.b32.xlu0 %v1837, 91
        %v1863 = vpop.permute.xlu0 %1862
        %1864 = vrot.lane.b32.xlu0 %v1845, 91
        %v1865 = vpop.permute.xlu0 %1864
        %1866 = vrot.lane.b32.xlu0 %v1852, 91
        %v1867 = vpop.permute.xlu0 %1866
        %1868 = vrot.lane.b32.xlu0 %v1859, 91
        %v1869 = vpop.permute.xlu0 %1868
        %v1870 = vrot.slane %v1861, 4
        %v1871 = vrot.slane %v1863, 4
        %v1872 = vrot.slane %v1865, 4
        %v1873 = vrot.slane %v1867, 4
        %v1874 = vrot.slane %v1869, 4
        %v1875 = vsel %vm1639, %v1870, %v1871
        %vm1876 = vcmask 744448
        %v1877 = vsel %vm1876, %v1861, %v1875
        %v1878 = vsel %vm1639, %v1871, %v1872
        %v1879 = vsel %vm1876, %v1863, %v1878
        %v1880 = vsel %vm1639, %v1872, %v1873
        %v1881 = vsel %vm1876, %v1865, %v1880
        %v1882 = vsel %vm1639, %v1873, %v1874
        %v1883 = vsel %vm1876, %v1867, %v1882
        %v1884 = vsel %vm1876, %v1869, %v1874
        %1890 = vst [vmem:[#allocation4 + $0x48] sm:$0x33] %v1877
        %1891 = vst [vmem:[#allocation4 + $0x50] sm:$0x33] %v1879
        %1892 = vst [vmem:[#allocation4 + $0x58] sm:$0x33] %v1881
        %1893 = vst [vmem:[#allocation4 + $0x60] sm:$0x33] %v1883
        %1894 = vst [vmem:[#allocation4 + $0x68] sm:$0x3] %v1884
        %v1895 = vld [vmem:[#allocation2] sm:$0xff]
        %v1896 = vld [vmem:[#allocation2 + $0x8] sm:$0xff]
        %v1897 = vld [vmem:[#allocation2 + $0x10] sm:$0xf]
        %v1901 = vcombine.low %v1895, %v1895
        %v1903 = vunpack.c.l.s4 1983009808
        %v1904 = vunpack.c.0.s8 %v1903
        %v1905 = vlaneseq
        %v1906 = vshrl.u32 %v1905, 7
        %v1907 = vsub.s32 %v1904, %v1906
        %v1908 = vrot.slane %v1901, %v1907
        %v1910 = vunpack.c.l.s4 1983009808
        %v1911 = vunpack.c.0.s8 %v1910
        %v1912 = vlaneseq
        %v1913 = vshrl.u32 %v1912, 7
        %v1914 = vsub.s32 %v1911, %v1913
        %v1915 = vrot.slane %v1895, %v1914
        %v1916 = vcombine.low %v1896, %v1896
        %v1918 = vunpack.c.l.s4 1983009808
        %v1919 = vunpack.c.0.s8 %v1918
        %v1920 = vlaneseq
        %v1921 = vshrl.u32 %v1920, 7
        %v1922 = vsub.s32 %v1919, %v1921
        %v1923 = vrot.slane %v1916, %v1922
        %v1925 = vunpack.c.l.s4 1983009808
        %v1926 = vunpack.c.0.s8 %v1925
        %v1927 = vlaneseq
        %v1928 = vshrl.u32 %v1927, 7
        %v1929 = vsub.s32 %v1926, %v1928
        %v1930 = vrot.slane %v1896, %v1929
        %v1931 = vcombine.low %v1897, %v1897
        %v1933 = vunpack.c.l.s4 1983009808
        %v1934 = vunpack.c.0.s8 %v1933
        %v1935 = vlaneseq
        %v1936 = vshrl.u32 %v1935, 7
        %v1937 = vsub.s32 %v1934, %v1936
        %v1938 = vrot.slane %v1931, %v1937
        %1939 = vrot.lane.b32.xlu0 %v1908, 90
        %v1940 = vpop.permute.xlu0 %1939
        %1941 = vrot.lane.b32.xlu0 %v1915, 90
        %v1942 = vpop.permute.xlu0 %1941
        %1943 = vrot.lane.b32.xlu0 %v1923, 90
        %v1944 = vpop.permute.xlu0 %1943
        %1945 = vrot.lane.b32.xlu0 %v1930, 90
        %v1946 = vpop.permute.xlu0 %1945
        %1947 = vrot.lane.b32.xlu0 %v1938, 90
        %v1948 = vpop.permute.xlu0 %1947
        %v1949 = vrot.slane %v1940, 4
        %v1950 = vrot.slane %v1942, 4
        %v1951 = vrot.slane %v1944, 4
        %v1952 = vrot.slane %v1946, 4
        %v1953 = vrot.slane %v1948, 4
        %v1954 = vsel %vm1639, %v1949, %v1950
        %vm1955 = vcmask 736256
        %v1956 = vsel %vm1955, %v1940, %v1954
        %v1957 = vsel %vm1639, %v1950, %v1951
        %v1958 = vsel %vm1955, %v1942, %v1957
        %v1959 = vsel %vm1639, %v1951, %v1952
        %v1960 = vsel %vm1955, %v1944, %v1959
        %v1961 = vsel %vm1639, %v1952, %v1953
        %v1962 = vsel %vm1955, %v1946, %v1961
        %v1963 = vsel %vm1955, %v1948, %v1953
        %1969 = vst [vmem:[#allocation4 + $0x48] sm:$0xcc] %v1956
        %1970 = vst [vmem:[#allocation4 + $0x50] sm:$0xcc] %v1958
        %1971 = vst [vmem:[#allocation4 + $0x58] sm:$0xcc] %v1960
        %1972 = vst [vmem:[#allocation4 + $0x60] sm:$0xcc] %v1962
        %1973 = vst [vmem:[#allocation4 + $0x68] sm:$0xc] %v1963
        %v1974 = vld [vmem:[#allocation2] sm:$0xff]
        %v1975 = vld [vmem:[#allocation2 + $0x8] sm:$0xff]
        %v1976 = vld [vmem:[#allocation2 + $0x10] sm:$0xf]
        %v1980 = vcombine.high %v1974, %v1974
        %v1982 = vunpack.c.l.s4 1983009808
        %v1983 = vunpack.c.0.s8 %v1982
        %v1984 = vlaneseq
        %v1985 = vshrl.u32 %v1984, 7
        %v1986 = vsub.s32 %v1983, %v1985
        %v1987 = vrot.slane %v1974, %v1986
        %v1989 = vunpack.c.l.s4 1983009808
        %v1990 = vunpack.c.0.s8 %v1989
        %v1991 = vlaneseq
        %v1992 = vshrl.u32 %v1991, 7
        %v1993 = vsub.s32 %v1990, %v1992
        %v1994 = vrot.slane %v1980, %v1993
        %v1995 = vcombine.high %v1975, %v1975
        %v1997 = vunpack.c.l.s4 1983009808
        %v1998 = vunpack.c.0.s8 %v1997
        %v1999 = vlaneseq
        %v2000 = vshrl.u32 %v1999, 7
        %v2001 = vsub.s32 %v1998, %v2000
        %v2002 = vrot.slane %v1975, %v2001
        %v2004 = vunpack.c.l.s4 1983009808
        %v2005 = vunpack.c.0.s8 %v2004
        %v2006 = vlaneseq
        %v2007 = vshrl.u32 %v2006, 7
        %v2008 = vsub.s32 %v2005, %v2007
        %v2009 = vrot.slane %v1995, %v2008
        %v2011 = vunpack.c.l.s4 1983009808
        %v2012 = vunpack.c.0.s8 %v2011
        %v2013 = vlaneseq
        %v2014 = vshrl.u32 %v2013, 7
        %v2015 = vsub.s32 %v2012, %v2014
        %v2016 = vrot.slane %v1976, %v2015
        %2017 = vrot.lane.b32.xlu0 %v1987, 56
        %v2018 = vpop.permute.xlu0 %2017
        %2019 = vrot.lane.b32.xlu0 %v1994, 56
        %v2020 = vpop.permute.xlu0 %2019
        %2021 = vrot.lane.b32.xlu0 %v2002, 56
        %v2022 = vpop.permute.xlu0 %2021
        %2023 = vrot.lane.b32.xlu0 %v2009, 56
        %v2024 = vpop.permute.xlu0 %2023
        %2025 = vrot.lane.b32.xlu0 %v2016, 56
        %v2026 = vpop.permute.xlu0 %2025
        %v2027 = vrot.slane %v2018, 4
        %v2028 = vrot.slane %v2020, 4
        %v2029 = vrot.slane %v2022, 4
        %v2030 = vrot.slane %v2024, 4
        %v2031 = vrot.slane %v2026, 4
        %v2032 = vsel %vm1639, %v2027, %v2028
        %vm2033 = vcmask 457728
        %v2034 = vsel %vm2033, %v2018, %v2032
        %v2035 = vsel %vm1639, %v2028, %v2029
        %v2036 = vsel %vm2033, %v2020, %v2035
        %v2037 = vsel %vm1639, %v2029, %v2030
        %v2038 = vsel %vm2033, %v2022, %v2037
        %v2039 = vsel %vm1639, %v2030, %v2031
        %v2040 = vsel %vm2033, %v2024, %v2039
        %v2041 = vsel %vm2033, %v2026, %v2031
        %2047 = vst [vmem:[#allocation4 + $0x6c] sm:$0x33] %v2034
        %2048 = vst [vmem:[#allocation4 + $0x74] sm:$0x33] %v2036
        %2049 = vst [vmem:[#allocation4 + $0x7c] sm:$0x33] %v2038
        %2050 = vst [vmem:[#allocation4 + $0x84] sm:$0x33] %v2040
        %2051 = vst [vmem:[#allocation4 + $0x8c] sm:$0x3] %v2041
        %v2052 = vld [vmem:[#allocation2] sm:$0xff]
        %v2053 = vld [vmem:[#allocation2 + $0x8] sm:$0xff]
        %v2054 = vld [vmem:[#allocation2 + $0x10] sm:$0xf]
        %v2058 = vcombine.low %v2052, %v2052
        %v2060 = vunpack.c.l.s4 1983009808
        %v2061 = vunpack.c.0.s8 %v2060
        %v2062 = vlaneseq
        %v2063 = vshrl.u32 %v2062, 7
        %v2064 = vsub.s32 %v2061, %v2063
        %v2065 = vrot.slane %v2058, %v2064
        %v2067 = vunpack.c.l.s4 1983009808
        %v2068 = vunpack.c.0.s8 %v2067
        %v2069 = vlaneseq
        %v2070 = vshrl.u32 %v2069, 7
        %v2071 = vsub.s32 %v2068, %v2070
        %v2072 = vrot.slane %v2052, %v2071
        %v2073 = vcombine.low %v2053, %v2053
        %v2075 = vunpack.c.l.s4 1983009808
        %v2076 = vunpack.c.0.s8 %v2075
        %v2077 = vlaneseq
        %v2078 = vshrl.u32 %v2077, 7
        %v2079 = vsub.s32 %v2076, %v2078
        %v2080 = vrot.slane %v2073, %v2079
        %v2082 = vunpack.c.l.s4 1983009808
        %v2083 = vunpack.c.0.s8 %v2082
        %v2084 = vlaneseq
        %v2085 = vshrl.u32 %v2084, 7
        %v2086 = vsub.s32 %v2083, %v2085
        %v2087 = vrot.slane %v2053, %v2086
        %v2088 = vcombine.low %v2054, %v2054
        %v2090 = vunpack.c.l.s4 1983009808
        %v2091 = vunpack.c.0.s8 %v2090
        %v2092 = vlaneseq
        %v2093 = vshrl.u32 %v2092, 7
        %v2094 = vsub.s32 %v2091, %v2093
        %v2095 = vrot.slane %v2088, %v2094
        %2096 = vrot.lane.b32.xlu0 %v2065, 55
        %v2097 = vpop.permute.xlu0 %2096
        %2098 = vrot.lane.b32.xlu0 %v2072, 55
        %v2099 = vpop.permute.xlu0 %2098
        %2100 = vrot.lane.b32.xlu0 %v2080, 55
        %v2101 = vpop.permute.xlu0 %2100
        %2102 = vrot.lane.b32.xlu0 %v2087, 55
        %v2103 = vpop.permute.xlu0 %2102
        %2104 = vrot.lane.b32.xlu0 %v2095, 55
        %v2105 = vpop.permute.xlu0 %2104
        %v2106 = vrot.slane %v2097, 4
        %v2107 = vrot.slane %v2099, 4
        %v2108 = vrot.slane %v2101, 4
        %v2109 = vrot.slane %v2103, 4
        %v2110 = vrot.slane %v2105, 4
        %v2111 = vsel %vm1639, %v2106, %v2107
        %vm2112 = vcmask 449536
        %v2113 = vsel %vm2112, %v2097, %v2111
        %v2114 = vsel %vm1639, %v2107, %v2108
        %v2115 = vsel %vm2112, %v2099, %v2114
        %v2116 = vsel %vm1639, %v2108, %v2109
        %v2117 = vsel %vm2112, %v2101, %v2116
        %v2118 = vsel %vm1639, %v2109, %v2110
        %v2119 = vsel %vm2112, %v2103, %v2118
        %v2120 = vsel %vm2112, %v2105, %v2110
        %2126 = vst [vmem:[#allocation4 + $0x6c] sm:$0xcc] %v2113
        %2127 = vst [vmem:[#allocation4 + $0x74] sm:$0xcc] %v2115
        %2128 = vst [vmem:[#allocation4 + $0x7c] sm:$0xcc] %v2117
        %2129 = vst [vmem:[#allocation4 + $0x84] sm:$0xcc] %v2119
        %2130 = vst [vmem:[#allocation4 + $0x8c] sm:$0xc] %v2120
        %v2131 = vld [vmem:[#allocation2] sm:$0xff]
        %v2132 = vld [vmem:[#allocation2 + $0x8] sm:$0xff]
        %v2133 = vld [vmem:[#allocation2 + $0x10] sm:$0xf]
        %v2137 = vcombine.high %v2131, %v2131
        %v2139 = vunpack.c.l.s4 1983009808
        %v2140 = vunpack.c.0.s8 %v2139
        %v2141 = vlaneseq
        %v2142 = vshrl.u32 %v2141, 7
        %v2143 = vsub.s32 %v2140, %v2142
        %v2144 = vrot.slane %v2131, %v2143
        %v2146 = vunpack.c.l.s4 1983009808
        %v2147 = vunpack.c.0.s8 %v2146
        %v2148 = vlaneseq
        %v2149 = vshrl.u32 %v2148, 7
        %v2150 = vsub.s32 %v2147, %v2149
        %v2151 = vrot.slane %v2137, %v2150
        %v2152 = vcombine.high %v2132, %v2132
        %v2154 = vunpack.c.l.s4 1983009808
        %v2155 = vunpack.c.0.s8 %v2154
        %v2156 = vlaneseq
        %v2157 = vshrl.u32 %v2156, 7
        %v2158 = vsub.s32 %v2155, %v2157
        %v2159 = vrot.slane %v2132, %v2158
        %v2161 = vunpack.c.l.s4 1983009808
        %v2162 = vunpack.c.0.s8 %v2161
        %v2163 = vlaneseq
        %v2164 = vshrl.u32 %v2163, 7
        %v2165 = vsub.s32 %v2162, %v2164
        %v2166 = vrot.slane %v2152, %v2165
        %v2168 = vunpack.c.l.s4 1983009808
        %v2169 = vunpack.c.0.s8 %v2168
        %v2170 = vlaneseq
        %v2171 = vshrl.u32 %v2170, 7
        %v2172 = vsub.s32 %v2169, %v2171
        %v2173 = vrot.slane %v2133, %v2172
        %2174 = vrot.lane.b32.xlu0 %v2144, 54
        %v2175 = vpop.permute.xlu0 %2174
        %2176 = vrot.lane.b32.xlu0 %v2151, 54
        %v2177 = vpop.permute.xlu0 %2176
        %2178 = vrot.lane.b32.xlu0 %v2159, 54
        %v2179 = vpop.permute.xlu0 %2178
        %2180 = vrot.lane.b32.xlu0 %v2166, 54
        %v2181 = vpop.permute.xlu0 %2180
        %2182 = vrot.lane.b32.xlu0 %v2173, 54
        %v2183 = vpop.permute.xlu0 %2182
        %v2184 = vrot.slane %v2175, 4
        %v2185 = vrot.slane %v2177, 4
        %v2186 = vrot.slane %v2179, 4
        %v2187 = vrot.slane %v2181, 4
        %v2188 = vrot.slane %v2183, 4
        %v2189 = vsel %vm1639, %v2184, %v2185
        %vm2190 = vcmask 441344
        %v2191 = vsel %vm2190, %v2175, %v2189
        %v2192 = vsel %vm1639, %v2185, %v2186
        %v2193 = vsel %vm2190, %v2177, %v2192
        %v2194 = vsel %vm1639, %v2186, %v2187
        %v2195 = vsel %vm2190, %v2179, %v2194
        %v2196 = vsel %vm1639, %v2187, %v2188
        %v2197 = vsel %vm2190, %v2181, %v2196
        %v2198 = vsel %vm2190, %v2183, %v2188
        %2204 = vst [vmem:[#allocation4 + $0x90] sm:$0x33] %v2191
        %2205 = vst [vmem:[#allocation4 + $0x98] sm:$0x33] %v2193
        %2206 = vst [vmem:[#allocation4 + $0xa0] sm:$0x33] %v2195
        %2207 = vst [vmem:[#allocation4 + $0xa8] sm:$0x33] %v2197
        %2208 = vst [vmem:[#allocation4 + $0xb0] sm:$0x3] %v2198
        %v2209 = vld [vmem:[%s2] sm:$0xf]
        %v2210 = vld [vmem:[#allocation4] sm:$0xff]
        %v2211 = vld [vmem:[#allocation4 + $0x8] sm:$0xff]
        %v2212 = vld [vmem:[#allocation4 + $0x10] sm:$0xff]
        %v2213 = vld [vmem:[#allocation4 + $0x18] sm:$0xff]
        %v2214 = vld [vmem:[#allocation4 + $0x20] sm:$0xf]
        %v2215 = vld [vmem:[#allocation4 + $0x24] sm:$0xff]
        %v2216 = vld [vmem:[#allocation4 + $0x2c] sm:$0xff]
        %v2217 = vld [vmem:[#allocation4 + $0x34] sm:$0xff]
        %v2218 = vld [vmem:[#allocation4 + $0x3c] sm:$0xff]
        %v2219 = vld [vmem:[#allocation4 + $0x44] sm:$0xf]
        %v2220 = vld [vmem:[#allocation4 + $0x48] sm:$0xff]
        %v2221 = vld [vmem:[#allocation4 + $0x50] sm:$0xff]
        %v2222 = vld [vmem:[#allocation4 + $0x58] sm:$0xff]
        %v2223 = vld [vmem:[#allocation4 + $0x60] sm:$0xff]
        %v2224 = vld [vmem:[#allocation4 + $0x68] sm:$0xf]
        %v2225 = vld [vmem:[#allocation4 + $0x6c] sm:$0xff]
        %v2226 = vld [vmem:[#allocation4 + $0x74] sm:$0xff]
        %v2227 = vld [vmem:[#allocation4 + $0x7c] sm:$0xff]
        %v2228 = vld [vmem:[#allocation4 + $0x84] sm:$0xff]
        %v2229 = vld [vmem:[#allocation4 + $0x8c] sm:$0xf]
        %v2230 = vld [vmem:[#allocation4 + $0x90] sm:$0x33]
        %v2231 = vld [vmem:[#allocation4 + $0x98] sm:$0x33]
        %v2232 = vld [vmem:[#allocation4 + $0xa0] sm:$0x33]
        %v2233 = vld [vmem:[#allocation4 + $0xa8] sm:$0x33]
        %v2234 = vld [vmem:[#allocation4 + $0xb0] sm:$0x3]
        %v2235 = vld [vmem:[%s3] sm:$0xff]
        %2237 = vset.pattern.permute.xlu0 0
        %2238 = vperm.xlu0 %2237, %v2235
        %v2239 = vpop.permute.xlu0 %2238
        %v2266 = vunpack.c.l.b16 %v2210
        %v2267 = vunpack.c.h.b16 %v2210
        %v2268 = vunpack.c.l.b16 %v2211
        %v2269 = vunpack.c.h.b16 %v2211
        %v2270 = vunpack.c.l.b16 %v2212
        %v2271 = vunpack.c.h.b16 %v2212
        %v2272 = vunpack.c.l.b16 %v2213
        %v2273 = vunpack.c.h.b16 %v2213
        %v2274 = vunpack.c.l.b16 %v2214
        %v2275 = vunpack.c.l.b16 %v2215
        %v2276 = vunpack.c.h.b16 %v2215
        %v2277 = vunpack.c.l.b16 %v2216
        %v2278 = vunpack.c.h.b16 %v2216
        %v2279 = vunpack.c.l.b16 %v2217
        %v2280 = vunpack.c.h.b16 %v2217
        %v2281 = vunpack.c.l.b16 %v2218
        %v2282 = vunpack.c.h.b16 %v2218
        %v2283 = vunpack.c.l.b16 %v2219
        %v2284 = vunpack.c.l.b16 %v2220
        %v2285 = vunpack.c.h.b16 %v2220
        %v2286 = vunpack.c.l.b16 %v2221
        %v2287 = vunpack.c.h.b16 %v2221
        %v2288 = vunpack.c.l.b16 %v2222
        %v2289 = vunpack.c.h.b16 %v2222
        %v2290 = vunpack.c.l.b16 %v2223
        %v2291 = vunpack.c.h.b16 %v2223
        %v2292 = vunpack.c.l.b16 %v2224
        %v2293 = vunpack.c.l.b16 %v2225
        %v2294 = vunpack.c.h.b16 %v2225
        %v2295 = vunpack.c.l.b16 %v2226
        %v2296 = vunpack.c.h.b16 %v2226
        %v2297 = vunpack.c.l.b16 %v2227
        %v2298 = vunpack.c.h.b16 %v2227
        %v2299 = vunpack.c.l.b16 %v2228
        %v2300 = vunpack.c.h.b16 %v2228
        %v2301 = vunpack.c.l.b16 %v2229
        %v2302 = vunpack.c.l.b16 %v2230
        %v2303 = vunpack.c.h.b16 %v2230
        %v2304 = vunpack.c.l.b16 %v2231
        %v2305 = vunpack.c.h.b16 %v2231
        %v2306 = vunpack.c.l.b16 %v2232
        %v2307 = vunpack.c.h.b16 %v2232
        %v2308 = vunpack.c.l.b16 %v2233
        %v2309 = vunpack.c.h.b16 %v2233
        %v2310 = vunpack.c.l.b16 %v2234
        %v2311 = vpack.c.b16 %v2275, %v2266
        %v2312 = vpack.c.b16 %v2276, %v2267
        %v2313 = vpack.c.b16 %v2277, %v2268
        %v2314 = vpack.c.b16 %v2278, %v2269
        %v2315 = vpack.c.b16 %v2279, %v2270
        %v2316 = vpack.c.b16 %v2280, %v2271
        %v2317 = vpack.c.b16 %v2281, %v2272
        %v2318 = vpack.c.b16 %v2282, %v2273
        %v2319 = vpack.c.b16 %v2283, %v2274
        %v2320 = vpack.c.b16 %v2293, %v2284
        %v2321 = vpack.c.b16 %v2294, %v2285
        %v2322 = vpack.c.b16 %v2295, %v2286
        %v2323 = vpack.c.b16 %v2296, %v2287
        %v2324 = vpack.c.b16 %v2297, %v2288
        %v2325 = vpack.c.b16 %v2298, %v2289
        %v2326 = vpack.c.b16 %v2299, %v2290
        %v2327 = vpack.c.b16 %v2300, %v2291
        %v2328 = vpack.c.b16 %v2301, %v2292
        %v2329 = vpack.c.b16 %v2302, %v2302
        %v2330 = vpack.c.b16 %v2303, %v2303
        %v2331 = vpack.c.b16 %v2304, %v2304
        %v2332 = vpack.c.b16 %v2305, %v2305
        %v2333 = vpack.c.b16 %v2306, %v2306
        %v2334 = vpack.c.b16 %v2307, %v2307
        %v2335 = vpack.c.b16 %v2308, %v2308
        %v2336 = vpack.c.b16 %v2309, %v2309
        %v2337 = vpack.c.b16 %v2310, %v2310
        %vm2356 = vcmask 293888
        %v2358 = vsel %vm2356, %v2209, 0
        %v2361 = vsel %vm1521, %v2329, 0
        %v2364 = vsel %vm1521, %v2330, 0
        %v2367 = vsel %vm1521, %v2331, 0
        %v2370 = vsel %vm1521, %v2332, 0
        %v2373 = vsel %vm1521, %v2333, 0
        %v2376 = vsel %vm1521, %v2334, 0
        %v2379 = vsel %vm1521, %v2335, 0
        %v2382 = vsel %vm1521, %v2336, 0
        %v2385 = vsel %vm1521, %v2337, 0
        %2387 = vmatprep.subr.bf16.mxu0 %v2312
        %2388 = vmatpush1.bf16.msra.mxu0 %v2311
        %2389 = vmatprep.subr.bf16.mxu0 %v2321
        %2390 = vmatpush1.bf16.msra.mxu0 %v2320
        %2391 = vmatprep.subr.bf16.mxu0 %v2364
        %2392 = vmatpush1.bf16.msra.mxu0 %v2361
        %2393 = vmatprep.subr.bf16.mxu0 0
        %2394 = vmatpush1.bf16.msra.mxu0 0
        %2395 = vmatprep.subr.bf16.mxu0 0
        %2396 = vmatpush1.bf16.msra.mxu0 0
        %2397 = vmatprep.subr.bf16.mxu0 0
        %2398 = vmatpush1.bf16.msra.mxu0 0
        %2399 = vmatprep.subr.bf16.mxu0 0
        %2400 = vmatpush1.bf16.msra.mxu0 0
        %2401 = vmatprep.subr.bf16.mxu0 0
        %2402 = vmatpush1.bf16.msra.mxu0 0
        %2403 = vmatprep.subr.bf16.mxu0 0
        %2404 = vmatpush1.bf16.msra.mxu0 0
        %2405 = vmatprep.subr.bf16.mxu0 0
        %2406 = vmatpush1.bf16.msra.mxu0 0
        %2407 = vmatprep.subr.bf16.mxu0 0
        %2408 = vmatpush1.bf16.msra.mxu0 0
        %2409 = vmatprep.subr.bf16.mxu0 0
        %2410 = vmatpush1.bf16.msra.mxu0 0
        %2411 = vmatprep.subr.bf16.mxu0 0
        %2412 = vmatpush1.bf16.msra.mxu0 0
        %2413 = vmatprep.subr.bf16.mxu0 0
        %2414 = vmatpush1.bf16.msra.mxu0 0
        %2415 = vmatprep.subr.bf16.mxu0 0
        %2416 = vmatpush1.bf16.msra.mxu0 0
        %2417 = vmatprep.subr.bf16.mxu0 0
        %2418 = vmatpush1.bf16.msra.mxu0 0
        %2419 = vmatprep.mubr.bf16.mxu0 0
        %2420 = vmatmul.mubr.bf16.gmra.mrb[0].mxu0 %v2358
        %v2421 = vpop.f32.mrb[0].mxu0
        %v2422 = vadd.f32 %v2239, %v2421
        %v2423 = vpop.f32.mrb[0].mxu0
        %v2424 = vadd.f32 %v2239, %v2423
        %v2425 = vpop.f32.mrb[0].mxu0
        %v2426 = vpop.f32.mrb[0].mxu0
        %2427 = vdwg.mxu0
        %2428 = vmatprep.subr.bf16.mxu0 %v2314
        %2429 = vmatpush1.bf16.msra.mxu0 %v2313
        %2430 = vmatprep.subr.bf16.mxu0 %v2323
        %2431 = vmatpush1.bf16.msra.mxu0 %v2322
        %2432 = vmatprep.subr.bf16.mxu0 %v2370
        %2433 = vmatpush1.bf16.msra.mxu0 %v2367
        %2434 = vmatprep.subr.bf16.mxu0 0
        %2435 = vmatpush1.bf16.msra.mxu0 0
        %2436 = vmatprep.subr.bf16.mxu0 0
        %2437 = vmatpush1.bf16.msra.mxu0 0
        %2438 = vmatprep.subr.bf16.mxu0 0
        %2439 = vmatpush1.bf16.msra.mxu0 0
        %2440 = vmatprep.subr.bf16.mxu0 0
        %2441 = vmatpush1.bf16.msra.mxu0 0
        %2442 = vmatprep.subr.bf16.mxu0 0
        %2443 = vmatpush1.bf16.msra.mxu0 0
        %2444 = vmatprep.subr.bf16.mxu0 0
        %2445 = vmatpush1.bf16.msra.mxu0 0
        %2446 = vmatprep.subr.bf16.mxu0 0
        %2447 = vmatpush1.bf16.msra.mxu0 0
        %2448 = vmatprep.subr.bf16.mxu0 0
        %2449 = vmatpush1.bf16.msra.mxu0 0
        %2450 = vmatprep.subr.bf16.mxu0 0
        %2451 = vmatpush1.bf16.msra.mxu0 0
        %2452 = vmatprep.subr.bf16.mxu0 0
        %2453 = vmatpush1.bf16.msra.mxu0 0
        %2454 = vmatprep.subr.bf16.mxu0 0
        %2455 = vmatpush1.bf16.msra.mxu0 0
        %2456 = vmatprep.subr.bf16.mxu0 0
        %2457 = vmatpush1.bf16.msra.mxu0 0
        %2458 = vmatprep.subr.bf16.mxu0 0
        %2459 = vmatpush1.bf16.msra.mxu0 0
        %2460 = vmatprep.mubr.bf16.mxu0 0
        %2461 = vmatmul.mubr.bf16.gmra.mrb[0].mxu0 %v2358
        %v2462 = vpop.f32.mrb[0].mxu0
        %v2463 = vadd.f32 %v2239, %v2462
        %v2464 = vpop.f32.mrb[0].mxu0
        %v2465 = vadd.f32 %v2239, %v2464
        %v2466 = vpop.f32.mrb[0].mxu0
        %v2467 = vpop.f32.mrb[0].mxu0
        %2468 = vdwg.mxu0
        %2469 = vmatprep.subr.bf16.mxu0 %v2316
        %2470 = vmatpush1.bf16.msra.mxu0 %v2315
        %2471 = vmatprep.subr.bf16.mxu0 %v2325
        %2472 = vmatpush1.bf16.msra.mxu0 %v2324
        %2473 = vmatprep.subr.bf16.mxu0 %v2376
        %2474 = vmatpush1.bf16.msra.mxu0 %v2373
        %2475 = vmatprep.subr.bf16.mxu0 0
        %2476 = vmatpush1.bf16.msra.mxu0 0
        %2477 = vmatprep.subr.bf16.mxu0 0
        %2478 = vmatpush1.bf16.msra.mxu0 0
        %2479 = vmatprep.subr.bf16.mxu0 0
        %2480 = vmatpush1.bf16.msra.mxu0 0
        %2481 = vmatprep.subr.bf16.mxu0 0
        %2482 = vmatpush1.bf16.msra.mxu0 0
        %2483 = vmatprep.subr.bf16.mxu0 0
        %2484 = vmatpush1.bf16.msra.mxu0 0
        %2485 = vmatprep.subr.bf16.mxu0 0
        %2486 = vmatpush1.bf16.msra.mxu0 0
        %2487 = vmatprep.subr.bf16.mxu0 0
        %2488 = vmatpush1.bf16.msra.mxu0 0
        %2489 = vmatprep.subr.bf16.mxu0 0
        %2490 = vmatpush1.bf16.msra.mxu0 0
        %2491 = vmatprep.subr.bf16.mxu0 0
        %2492 = vmatpush1.bf16.msra.mxu0 0
        %2493 = vmatprep.subr.bf16.mxu0 0
        %2494 = vmatpush1.bf16.msra.mxu0 0
        %2495 = vmatprep.subr.bf16.mxu0 0
        %2496 = vmatpush1.bf16.msra.mxu0 0
        %2497 = vmatprep.subr.bf16.mxu0 0
        %2498 = vmatpush1.bf16.msra.mxu0 0
        %2499 = vmatprep.subr.bf16.mxu0 0
        %2500 = vmatpush1.bf16.msra.mxu0 0
        %2501 = vmatprep.mubr.bf16.mxu0 0
        %2502 = vmatmul.mubr.bf16.gmra.mrb[0].mxu0 %v2358
        %v2503 = vpop.f32.mrb[0].mxu0
        %v2504 = vadd.f32 %v2239, %v2503
        %v2505 = vpop.f32.mrb[0].mxu0
        %v2506 = vadd.f32 %v2239, %v2505
        %v2507 = vpop.f32.mrb[0].mxu0
        %v2508 = vpop.f32.mrb[0].mxu0
        %2509 = vdwg.mxu0
        %2510 = vmatprep.subr.bf16.mxu0 %v2318
        %2511 = vmatpush1.bf16.msra.mxu0 %v2317
        %2512 = vmatprep.subr.bf16.mxu0 %v2327
        %2513 = vmatpush1.bf16.msra.mxu0 %v2326
        %2514 = vmatprep.subr.bf16.mxu0 %v2382
        %2515 = vmatpush1.bf16.msra.mxu0 %v2379
        %2516 = vmatprep.subr.bf16.mxu0 0
        %2517 = vmatpush1.bf16.msra.mxu0 0
        %2518 = vmatprep.subr.bf16.mxu0 0
        %2519 = vmatpush1.bf16.msra.mxu0 0
        %2520 = vmatprep.subr.bf16.mxu0 0
        %2521 = vmatpush1.bf16.msra.mxu0 0
        %2522 = vmatprep.subr.bf16.mxu0 0
        %2523 = vmatpush1.bf16.msra.mxu0 0
        %2524 = vmatprep.subr.bf16.mxu0 0
        %2525 = vmatpush1.bf16.msra.mxu0 0
        %2526 = vmatprep.subr.bf16.mxu0 0
        %2527 = vmatpush1.bf16.msra.mxu0 0
        %2528 = vmatprep.subr.bf16.mxu0 0
        %2529 = vmatpush1.bf16.msra.mxu0 0
        %2530 = vmatprep.subr.bf16.mxu0 0
        %2531 = vmatpush1.bf16.msra.mxu0 0
        %2532 = vmatprep.subr.bf16.mxu0 0
        %2533 = vmatpush1.bf16.msra.mxu0 0
        %2534 = vmatprep.subr.bf16.mxu0 0
        %2535 = vmatpush1.bf16.msra.mxu0 0
        %2536 = vmatprep.subr.bf16.mxu0 0
        %2537 = vmatpush1.bf16.msra.mxu0 0
        %2538 = vmatprep.subr.bf16.mxu0 0
        %2539 = vmatpush1.bf16.msra.mxu0 0
        %2540 = vmatprep.subr.bf16.mxu0 0
        %2541 = vmatpush1.bf16.msra.mxu0 0
        %2542 = vmatprep.mubr.bf16.mxu0 0
        %2543 = vmatmul.mubr.bf16.gmra.mrb[0].mxu0 %v2358
        %v2544 = vpop.f32.mrb[0].mxu0
        %v2545 = vadd.f32 %v2239, %v2544
        %v2546 = vpop.f32.mrb[0].mxu0
        %v2547 = vadd.f32 %v2239, %v2546
        %v2548 = vpop.f32.mrb[0].mxu0
        %v2549 = vpop.f32.mrb[0].mxu0
        %2550 = vdwg.mxu0
        %2551 = vmatprep.subr.bf16.mxu0 0
        %2552 = vmatpush1.bf16.msra.mxu0 %v2319
        %2553 = vmatprep.subr.bf16.mxu0 0
        %2554 = vmatpush1.bf16.msra.mxu0 %v2328
        %2555 = vmatprep.subr.bf16.mxu0 0
        %2556 = vmatpush1.bf16.msra.mxu0 %v2385
        %2557 = vmatprep.subr.bf16.mxu0 0
        %2558 = vmatpush1.bf16.msra.mxu0 0
        %2559 = vmatprep.subr.bf16.mxu0 0
        %2560 = vmatpush1.bf16.msra.mxu0 0
        %2561 = vmatprep.subr.bf16.mxu0 0
        %2562 = vmatpush1.bf16.msra.mxu0 0
        %2563 = vmatprep.subr.bf16.mxu0 0
        %2564 = vmatpush1.bf16.msra.mxu0 0
        %2565 = vmatprep.subr.bf16.mxu0 0
        %2566 = vmatpush1.bf16.msra.mxu0 0
        %2567 = vmatprep.subr.bf16.mxu0 0
        %2568 = vmatpush1.bf16.msra.mxu0 0
        %2569 = vmatprep.subr.bf16.mxu0 0
        %2570 = vmatpush1.bf16.msra.mxu0 0
        %2571 = vmatprep.subr.bf16.mxu0 0
        %2572 = vmatpush1.bf16.msra.mxu0 0
        %2573 = vmatprep.subr.bf16.mxu0 0
        %2574 = vmatpush1.bf16.msra.mxu0 0
        %2575 = vmatprep.subr.bf16.mxu0 0
        %2576 = vmatpush1.bf16.msra.mxu0 0
        %2577 = vmatprep.subr.bf16.mxu0 0
        %2578 = vmatpush1.bf16.msra.mxu0 0
        %2579 = vmatprep.subr.bf16.mxu0 0
        %2580 = vmatpush1.bf16.msra.mxu0 0
        %2581 = vmatprep.subr.bf16.mxu0 0
        %2582 = vmatpush1.bf16.msra.mxu0 0
        %2583 = vmatprep.mubr.bf16.mxu0 0
        %2584 = vmatmul.mubr.bf16.gmra.mrb[0].mxu0 %v2358
        %v2585 = vpop.f32.mrb[0].mxu0
        %v2586 = vadd.f32 %v2239, %v2585
        %v2587 = vpop.f32.mrb[0].mxu0
        %v2588 = vpop.f32.mrb[0].mxu0
        %v2589 = vpop.f32.mrb[0].mxu0
        %2590 = vdwg.mxu0
        %v2591 = vmax.f32 %v2422, 0.0
        %v2592 = vmax.f32 %v2424, 0.0
        %v2593 = vmax.f32 %v2463, 0.0
        %v2594 = vmax.f32 %v2465, 0.0
        %v2595 = vmax.f32 %v2504, 0.0
        %v2596 = vmax.f32 %v2506, 0.0
        %v2597 = vmax.f32 %v2545, 0.0
        %v2598 = vmax.f32 %v2547, 0.0
        %v2599 = vmax.f32 %v2586, 0.0
        %v2600 = vmin.f32 %v2591, 6.0
        %v2601 = vmin.f32 %v2592, 6.0
        %v2602 = vmin.f32 %v2593, 6.0
        %v2603 = vmin.f32 %v2594, 6.0
        %v2604 = vmin.f32 %v2595, 6.0
        %v2605 = vmin.f32 %v2596, 6.0
        %v2606 = vmin.f32 %v2597, 6.0
        %v2607 = vmin.f32 %v2598, 6.0
        %v2608 = vmin.f32 %v2599, 6.0
        %v2609 = vld [vmem:[%s7] sm:$0xff]
        %v2610 = vld [vmem:[%s7 + $0x8] sm:$0x1]
        %v2613 = vlaneseq
        %v2614 = vshrl.u32 %v2613, 7
        %v2615 = vsub.s32 0, %v2614
        %v2616 = vrot.slane %v2609, %v2615
        %v2617 = vlaneseq
        %v2618 = vshrl.u32 %v2617, 7
        %v2619 = vsub.s32 1, %v2618
        %v2620 = vrot.slane %v2609, %v2619
        %v2621 = vlaneseq
        %v2622 = vshrl.u32 %v2621, 7
        %v2623 = vsub.s32 2, %v2622
        %v2624 = vrot.slane %v2609, %v2623
        %v2625 = vlaneseq
        %v2626 = vshrl.u32 %v2625, 7
        %v2627 = vsub.s32 3, %v2626
        %v2628 = vrot.slane %v2609, %v2627
        %v2629 = vlaneseq
        %v2630 = vshrl.u32 %v2629, 7
        %v2631 = vsub.s32 4, %v2630
        %v2632 = vrot.slane %v2609, %v2631
        %v2633 = vlaneseq
        %v2634 = vshrl.u32 %v2633, 7
        %v2635 = vsub.s32 5, %v2634
        %v2636 = vrot.slane %v2609, %v2635
        %v2637 = vlaneseq
        %v2638 = vshrl.u32 %v2637, 7
        %v2639 = vsub.s32 6, %v2638
        %v2640 = vrot.slane %v2609, %v2639
        %v2641 = vlaneseq
        %v2642 = vshrl.u32 %v2641, 7
        %v2643 = vsub.s32 7, %v2642
        %v2644 = vrot.slane %v2609, %v2643
        %v2645 = vlaneseq
        %v2646 = vshrl.u32 %v2645, 7
        %v2647 = vsub.s32 0, %v2646
        %v2648 = vrot.slane %v2610, %v2647
        %v2658 = vmul.f32 %v2600, %v2616
        %v2659 = vmul.f32 %v2601, %v2620
        %v2660 = vmul.f32 %v2602, %v2624
        %v2661 = vmul.f32 %v2603, %v2628
        %v2662 = vmul.f32 %v2604, %v2632
        %v2663 = vmul.f32 %v2605, %v2636
        %v2664 = vmul.f32 %v2606, %v2640
        %v2665 = vmul.f32 %v2607, %v2644
        %v2666 = vmul.f32 %v2608, %v2648
        %vm2667 = vcmask 297984
        %2668 = vst.msk [vmem:[#allocation3] sm:$0xf] %vm2667, 0
        %v2669 = vpack.c.bf16 %v2658, %v2658
        %v2670 = vpack.c.bf16 %v2659, %v2659
        %v2671 = vpack.c.bf16 %v2660, %v2660
        %v2672 = vpack.c.bf16 %v2661, %v2661
        %v2673 = vpack.c.bf16 %v2662, %v2662
        %v2674 = vpack.c.bf16 %v2663, %v2663
        %v2675 = vpack.c.bf16 %v2664, %v2664
        %v2676 = vpack.c.bf16 %v2665, %v2665
        %v2677 = vpack.c.bf16 %v2666, %v2666
        %v2687 = vunpack.c.l.b16 %v2669
        %v2688 = vunpack.c.l.b16 %v2670
        %v2689 = vunpack.c.l.b16 %v2671
        %v2690 = vunpack.c.l.b16 %v2672
        %v2691 = vunpack.c.l.b16 %v2673
        %v2692 = vunpack.c.l.b16 %v2674
        %v2693 = vunpack.c.l.b16 %v2675
        %v2694 = vunpack.c.l.b16 %v2676
        %v2695 = vunpack.c.l.b16 %v2677
        %v2696 = vpack.c.b16 %v2688, %v2687
        %v2697 = vpack.c.b16 %v2690, %v2689
        %v2698 = vpack.c.b16 %v2692, %v2691
        %v2699 = vpack.c.b16 %v2694, %v2693
        %v2700 = vpack.c.b16 %v2695, %v2695
        %2701 = vrot.lane.b32.xlu0 %v2696, 37
        %v2702 = vpop.permute.xlu0 %2701
        %2703 = vrot.lane.b32.xlu0 %v2697, 37
        %v2704 = vpop.permute.xlu0 %2703
        %2705 = vrot.lane.b32.xlu0 %v2698, 37
        %v2706 = vpop.permute.xlu0 %2705
        %2707 = vrot.lane.b32.xlu0 %v2699, 37
        %v2708 = vpop.permute.xlu0 %2707
        %2709 = vrot.lane.b32.xlu0 %v2700, 37
        %v2710 = vpop.permute.xlu0 %2709
        %v2711 = vrot.slane %v2702, 4
        %v2712 = vrot.slane %v2704, 4
        %v2713 = vrot.slane %v2706, 4
        %v2714 = vrot.slane %v2708, 4
        %v2715 = vrot.slane %v2710, 4
        %vm2716 = vcmask 302080
        %v2717 = vsel %vm2716, %v2711, %v2702
        %v2718 = vsel %vm1639, %v2711, %v2712
        %v2719 = vsel %vm2716, %v2718, %v2704
        %v2720 = vsel %vm1639, %v2712, %v2713
        %v2721 = vsel %vm2716, %v2720, %v2706
        %v2722 = vsel %vm1639, %v2713, %v2714
        %v2723 = vsel %vm2716, %v2722, %v2708
        %v2724 = vsel %vm1639, %v2714, %v2715
        %v2725 = vsel %vm2716, %v2724, %v2710
        %vm2731 = vcmask 1043752
        %vm2732 = vcmask 1047556
        %vm2733 = vmor %vm2732, %vm2731
        %2734 = vst.msk [vmem:[#allocation3] sm:$0xff] %vm2733, %v2717
        %2735 = vst [vmem:[#allocation3 + $0x8] sm:$0xff] %v2719
        %2736 = vst [vmem:[#allocation3 + $0x10] sm:$0xff] %v2721
        %2737 = vst [vmem:[#allocation3 + $0x18] sm:$0xff] %v2723
        %vm2738 = vcmask 1043456
        %vm2739 = vcmask 302084
        %vm2740 = vmor %vm2739, %vm2738
        %2741 = vst.msk [vmem:[#allocation3 + $0x20] sm:$0xff] %vm2740, %v2725
        %vm2742 = vcmask 879912
        %2743 = vst.msk [vmem:[#allocation3 + $0x24] sm:$0xf] %vm2742, 0
        %v2744 = vld [vmem:[#allocation3] sm:$0xff]
        %v2745 = vld [vmem:[#allocation3 + $0x8] sm:$0xff]
        %v2746 = vld [vmem:[#allocation3 + $0x10] sm:$0xff]
        %v2747 = vld [vmem:[#allocation3 + $0x18] sm:$0xff]
        %v2748 = vld [vmem:[#allocation3 + $0x20] sm:$0xf]
        %2749 = vst [vmem:[#allocation5] sm:$0xff] %v2744
        %2750 = vst [vmem:[#allocation5 + $0x8] sm:$0xff] %v2745
        %2751 = vst [vmem:[#allocation5 + $0x10] sm:$0xff] %v2746
        %2752 = vst [vmem:[#allocation5 + $0x18] sm:$0xff] %v2747
        %2753 = vst [vmem:[#allocation5 + $0x20] sm:$0xf] %v2748
        %v2754 = vld [vmem:[#allocation3] sm:$0xff]
        %v2755 = vld [vmem:[#allocation3 + $0x8] sm:$0xff]
        %v2756 = vld [vmem:[#allocation3 + $0x10] sm:$0xff]
        %v2757 = vld [vmem:[#allocation3 + $0x18] sm:$0xff]
        %v2758 = vld [vmem:[#allocation3 + $0x20] sm:$0xff]
        %2764 = vrot.lane.b32.xlu0 %v2754, 127
        %v2765 = vpop.permute.xlu0 %2764
        %2766 = vrot.lane.b32.xlu0 %v2755, 127
        %v2767 = vpop.permute.xlu0 %2766
        %2768 = vrot.lane.b32.xlu0 %v2756, 127
        %v2769 = vpop.permute.xlu0 %2768
        %2770 = vrot.lane.b32.xlu0 %v2757, 127
        %v2771 = vpop.permute.xlu0 %2770
        %2772 = vrot.lane.b32.xlu0 %v2758, 127
        %v2773 = vpop.permute.xlu0 %2772
        %v2774 = vrot.slane %v2765, 4
        %v2775 = vrot.slane %v2767, 4
        %v2776 = vrot.slane %v2769, 4
        %v2777 = vrot.slane %v2771, 4
        %v2778 = vrot.slane %v2773, 4
        %v2779 = vsel %vm1639, %v2774, %v2775
        %v2780 = vsel %vm1641, %v2765, %v2779
        %v2781 = vsel %vm1639, %v2775, %v2776
        %v2782 = vsel %vm1641, %v2767, %v2781
        %v2783 = vsel %vm1639, %v2776, %v2777
        %v2784 = vsel %vm1641, %v2769, %v2783
        %v2785 = vsel %vm1639, %v2777, %v2778
        %v2786 = vsel %vm1641, %v2771, %v2785
        %v2787 = vsel %vm1641, %v2773, %v2778
        %2793 = vst [vmem:[#allocation5 + $0x24] sm:$0xff] %v2780
        %2794 = vst [vmem:[#allocation5 + $0x2c] sm:$0xff] %v2782
        %2795 = vst [vmem:[#allocation5 + $0x34] sm:$0xff] %v2784
        %2796 = vst [vmem:[#allocation5 + $0x3c] sm:$0xff] %v2786
        %2797 = vst [vmem:[#allocation5 + $0x44] sm:$0xf] %v2787
        %v2798 = vld [vmem:[#allocation3] sm:$0xff]
        %v2799 = vld [vmem:[#allocation3 + $0x8] sm:$0xff]
        %v2800 = vld [vmem:[#allocation3 + $0x10] sm:$0xff]
        %v2801 = vld [vmem:[#allocation3 + $0x18] sm:$0xff]
        %v2802 = vld [vmem:[#allocation3 + $0x20] sm:$0xff]
        %2808 = vrot.lane.b32.xlu0 %v2798, 126
        %v2809 = vpop.permute.xlu0 %2808
        %2810 = vrot.lane.b32.xlu0 %v2799, 126
        %v2811 = vpop.permute.xlu0 %2810
        %2812 = vrot.lane.b32.xlu0 %v2800, 126
        %v2813 = vpop.permute.xlu0 %2812
        %2814 = vrot.lane.b32.xlu0 %v2801, 126
        %v2815 = vpop.permute.xlu0 %2814
        %2816 = vrot.lane.b32.xlu0 %v2802, 126
        %v2817 = vpop.permute.xlu0 %2816
        %v2818 = vrot.slane %v2809, 4
        %v2819 = vrot.slane %v2811, 4
        %v2820 = vrot.slane %v2813, 4
        %v2821 = vrot.slane %v2815, 4
        %v2822 = vrot.slane %v2817, 4
        %v2823 = vsel %vm1639, %v2818, %v2819
        %v2824 = vsel %vm1719, %v2809, %v2823
        %v2825 = vsel %vm1639, %v2819, %v2820
        %v2826 = vsel %vm1719, %v2811, %v2825
        %v2827 = vsel %vm1639, %v2820, %v2821
        %v2828 = vsel %vm1719, %v2813, %v2827
        %v2829 = vsel %vm1639, %v2821, %v2822
        %v2830 = vsel %vm1719, %v2815, %v2829
        %v2831 = vsel %vm1719, %v2817, %v2822
        %2837 = vst [vmem:[#allocation5 + $0x48] sm:$0xff] %v2824
        %2838 = vst [vmem:[#allocation5 + $0x50] sm:$0xff] %v2826
        %2839 = vst [vmem:[#allocation5 + $0x58] sm:$0xff] %v2828
        %2840 = vst [vmem:[#allocation5 + $0x60] sm:$0xff] %v2830
        %2841 = vst [vmem:[#allocation5 + $0x68] sm:$0xf] %v2831
        %v2842 = vld [vmem:[#allocation3] sm:$0xff]
        %v2843 = vld [vmem:[#allocation3 + $0x8] sm:$0xff]
        %v2844 = vld [vmem:[#allocation3 + $0x10] sm:$0xff]
        %v2845 = vld [vmem:[#allocation3 + $0x18] sm:$0xff]
        %v2846 = vld [vmem:[#allocation3 + $0x20] sm:$0xff]
        %2852 = vrot.lane.b32.xlu0 %v2842, 92
        %v2853 = vpop.permute.xlu0 %2852
        %2854 = vrot.lane.b32.xlu0 %v2843, 92
        %v2855 = vpop.permute.xlu0 %2854
        %2856 = vrot.lane.b32.xlu0 %v2844, 92
        %v2857 = vpop.permute.xlu0 %2856
        %2858 = vrot.lane.b32.xlu0 %v2845, 92
        %v2859 = vpop.permute.xlu0 %2858
        %2860 = vrot.lane.b32.xlu0 %v2846, 92
        %v2861 = vpop.permute.xlu0 %2860
        %v2862 = vrot.slane %v2853, 4
        %v2863 = vrot.slane %v2855, 4
        %v2864 = vrot.slane %v2857, 4
        %v2865 = vrot.slane %v2859, 4
        %v2866 = vrot.slane %v2861, 4
        %v2867 = vsel %vm1639, %v2862, %v2863
        %v2868 = vsel %vm1798, %v2853, %v2867
        %v2869 = vsel %vm1639, %v2863, %v2864
        %v2870 = vsel %vm1798, %v2855, %v2869
        %v2871 = vsel %vm1639, %v2864, %v2865
        %v2872 = vsel %vm1798, %v2857, %v2871
        %v2873 = vsel %vm1639, %v2865, %v2866
        %v2874 = vsel %vm1798, %v2859, %v2873
        %v2875 = vsel %vm1798, %v2861, %v2866
        %2881 = vst [vmem:[#allocation5 + $0x6c] sm:$0xff] %v2868
        %2882 = vst [vmem:[#allocation5 + $0x74] sm:$0xff] %v2870
        %2883 = vst [vmem:[#allocation5 + $0x7c] sm:$0xff] %v2872
        %2884 = vst [vmem:[#allocation5 + $0x84] sm:$0xff] %v2874
        %2885 = vst [vmem:[#allocation5 + $0x8c] sm:$0xf] %v2875
        %v2886 = vld [vmem:[#allocation3] sm:$0xff]
        %v2887 = vld [vmem:[#allocation3 + $0x8] sm:$0xff]
        %v2888 = vld [vmem:[#allocation3 + $0x10] sm:$0xff]
        %v2889 = vld [vmem:[#allocation3 + $0x18] sm:$0xff]
        %v2890 = vld [vmem:[#allocation3 + $0x20] sm:$0xff]
        %2896 = vrot.lane.b32.xlu0 %v2886, 91
        %v2897 = vpop.permute.xlu0 %2896
        %2898 = vrot.lane.b32.xlu0 %v2887, 91
        %v2899 = vpop.permute.xlu0 %2898
        %2900 = vrot.lane.b32.xlu0 %v2888, 91
        %v2901 = vpop.permute.xlu0 %2900
        %2902 = vrot.lane.b32.xlu0 %v2889, 91
        %v2903 = vpop.permute.xlu0 %2902
        %2904 = vrot.lane.b32.xlu0 %v2890, 91
        %v2905 = vpop.permute.xlu0 %2904
        %v2906 = vrot.slane %v2897, 4
        %v2907 = vrot.slane %v2899, 4
        %v2908 = vrot.slane %v2901, 4
        %v2909 = vrot.slane %v2903, 4
        %v2910 = vrot.slane %v2905, 4
        %v2911 = vsel %vm1639, %v2906, %v2907
        %v2912 = vsel %vm1876, %v2897, %v2911
        %v2913 = vsel %vm1639, %v2907, %v2908
        %v2914 = vsel %vm1876, %v2899, %v2913
        %v2915 = vsel %vm1639, %v2908, %v2909
        %v2916 = vsel %vm1876, %v2901, %v2915
        %v2917 = vsel %vm1639, %v2909, %v2910
        %v2918 = vsel %vm1876, %v2903, %v2917
        %v2919 = vsel %vm1876, %v2905, %v2910
        %2925 = vst [vmem:[#allocation5 + $0x90] sm:$0xff] %v2912
        %2926 = vst [vmem:[#allocation5 + $0x98] sm:$0xff] %v2914
        %2927 = vst [vmem:[#allocation5 + $0xa0] sm:$0xff] %v2916
        %2928 = vst [vmem:[#allocation5 + $0xa8] sm:$0xff] %v2918
        %2929 = vst [vmem:[#allocation5 + $0xb0] sm:$0xf] %v2919
        %v2930 = vld [vmem:[#allocation3] sm:$0xff]
        %v2931 = vld [vmem:[#allocation3 + $0x8] sm:$0xff]
        %v2932 = vld [vmem:[#allocation3 + $0x10] sm:$0xff]
        %v2933 = vld [vmem:[#allocation3 + $0x18] sm:$0xff]
        %v2934 = vld [vmem:[#allocation3 + $0x20] sm:$0xff]
        %2940 = vrot.lane.b32.xlu0 %v2930, 90
        %v2941 = vpop.permute.xlu0 %2940
        %2942 = vrot.lane.b32.xlu0 %v2931, 90
        %v2943 = vpop.permute.xlu0 %2942
        %2944 = vrot.lane.b32.xlu0 %v2932, 90
        %v2945 = vpop.permute.xlu0 %2944
        %2946 = vrot.lane.b32.xlu0 %v2933, 90
        %v2947 = vpop.permute.xlu0 %2946
        %2948 = vrot.lane.b32.xlu0 %v2934, 90
        %v2949 = vpop.permute.xlu0 %2948
        %v2950 = vrot.slane %v2941, 4
        %v2951 = vrot.slane %v2943, 4
        %v2952 = vrot.slane %v2945, 4
        %v2953 = vrot.slane %v2947, 4
        %v2954 = vrot.slane %v2949, 4
        %v2955 = vsel %vm1639, %v2950, %v2951
        %v2956 = vsel %vm1955, %v2941, %v2955
        %v2957 = vsel %vm1639, %v2951, %v2952
        %v2958 = vsel %vm1955, %v2943, %v2957
        %v2959 = vsel %vm1639, %v2952, %v2953
        %v2960 = vsel %vm1955, %v2945, %v2959
        %v2961 = vsel %vm1639, %v2953, %v2954
        %v2962 = vsel %vm1955, %v2947, %v2961
        %v2963 = vsel %vm1955, %v2949, %v2954
        %2969 = vst [vmem:[#allocation5 + $0xb4] sm:$0xff] %v2956
        %2970 = vst [vmem:[#allocation5 + $0xbc] sm:$0xff] %v2958
        %2971 = vst [vmem:[#allocation5 + $0xc4] sm:$0xff] %v2960
        %2972 = vst [vmem:[#allocation5 + $0xcc] sm:$0xff] %v2962
        %2973 = vst [vmem:[#allocation5 + $0xd4] sm:$0xf] %v2963
        %v2974 = vld [vmem:[#allocation3] sm:$0xff]
        %v2975 = vld [vmem:[#allocation3 + $0x8] sm:$0xff]
        %v2976 = vld [vmem:[#allocation3 + $0x10] sm:$0xff]
        %v2977 = vld [vmem:[#allocation3 + $0x18] sm:$0xff]
        %v2978 = vld [vmem:[#allocation3 + $0x20] sm:$0xff]
        %2984 = vrot.lane.b32.xlu0 %v2974, 56
        %v2985 = vpop.permute.xlu0 %2984
        %2986 = vrot.lane.b32.xlu0 %v2975, 56
        %v2987 = vpop.permute.xlu0 %2986
        %2988 = vrot.lane.b32.xlu0 %v2976, 56
        %v2989 = vpop.permute.xlu0 %2988
        %2990 = vrot.lane.b32.xlu0 %v2977, 56
        %v2991 = vpop.permute.xlu0 %2990
        %2992 = vrot.lane.b32.xlu0 %v2978, 56
        %v2993 = vpop.permute.xlu0 %2992
        %v2994 = vrot.slane %v2985, 4
        %v2995 = vrot.slane %v2987, 4
        %v2996 = vrot.slane %v2989, 4
        %v2997 = vrot.slane %v2991, 4
        %v2998 = vrot.slane %v2993, 4
        %v2999 = vsel %vm1639, %v2994, %v2995
        %v3000 = vsel %vm2033, %v2985, %v2999
        %v3001 = vsel %vm1639, %v2995, %v2996
        %v3002 = vsel %vm2033, %v2987, %v3001
        %v3003 = vsel %vm1639, %v2996, %v2997
        %v3004 = vsel %vm2033, %v2989, %v3003
        %v3005 = vsel %vm1639, %v2997, %v2998
        %v3006 = vsel %vm2033, %v2991, %v3005
        %v3007 = vsel %vm2033, %v2993, %v2998
        %3013 = vst [vmem:[#allocation5 + $0xd8] sm:$0xff] %v3000
        %3014 = vst [vmem:[#allocation5 + $0xe0] sm:$0xff] %v3002
        %3015 = vst [vmem:[#allocation5 + $0xe8] sm:$0xff] %v3004
        %3016 = vst [vmem:[#allocation5 + $0xf0] sm:$0xff] %v3006
        %3017 = vst [vmem:[#allocation5 + $0xf8] sm:$0xf] %v3007
        %v3018 = vld [vmem:[#allocation3] sm:$0xff]
        %v3019 = vld [vmem:[#allocation3 + $0x8] sm:$0xff]
        %v3020 = vld [vmem:[#allocation3 + $0x10] sm:$0xff]
        %v3021 = vld [vmem:[#allocation3 + $0x18] sm:$0xff]
        %v3022 = vld [vmem:[#allocation3 + $0x20] sm:$0xff]
        %3028 = vrot.lane.b32.xlu0 %v3018, 55
        %v3029 = vpop.permute.xlu0 %3028
        %3030 = vrot.lane.b32.xlu0 %v3019, 55
        %v3031 = vpop.permute.xlu0 %3030
        %3032 = vrot.lane.b32.xlu0 %v3020, 55
        %v3033 = vpop.permute.xlu0 %3032
        %3034 = vrot.lane.b32.xlu0 %v3021, 55
        %v3035 = vpop.permute.xlu0 %3034
        %3036 = vrot.lane.b32.xlu0 %v3022, 55
        %v3037 = vpop.permute.xlu0 %3036
        %v3038 = vrot.slane %v3029, 4
        %v3039 = vrot.slane %v3031, 4
        %v3040 = vrot.slane %v3033, 4
        %v3041 = vrot.slane %v3035, 4
        %v3042 = vrot.slane %v3037, 4
        %v3043 = vsel %vm1639, %v3038, %v3039
        %v3044 = vsel %vm2112, %v3029, %v3043
        %v3045 = vsel %vm1639, %v3039, %v3040
        %v3046 = vsel %vm2112, %v3031, %v3045
        %v3047 = vsel %vm1639, %v3040, %v3041
        %v3048 = vsel %vm2112, %v3033, %v3047
        %v3049 = vsel %vm1639, %v3041, %v3042
        %v3050 = vsel %vm2112, %v3035, %v3049
        %v3051 = vsel %vm2112, %v3037, %v3042
        %3057 = vst [vmem:[#allocation5 + $0xfc] sm:$0xff] %v3044
        %3058 = vst [vmem:[#allocation5 + $0x104] sm:$0xff] %v3046
        %3059 = vst [vmem:[#allocation5 + $0x10c] sm:$0xff] %v3048
        %3060 = vst [vmem:[#allocation5 + $0x114] sm:$0xff] %v3050
        %3061 = vst [vmem:[#allocation5 + $0x11c] sm:$0xf] %v3051
        %v3062 = vld [vmem:[#allocation3] sm:$0xff]
        %v3063 = vld [vmem:[#allocation3 + $0x8] sm:$0xff]
        %v3064 = vld [vmem:[#allocation3 + $0x10] sm:$0xff]
        %v3065 = vld [vmem:[#allocation3 + $0x18] sm:$0xff]
        %v3066 = vld [vmem:[#allocation3 + $0x20] sm:$0xff]
        %3072 = vrot.lane.b32.xlu0 %v3062, 54
        %v3073 = vpop.permute.xlu0 %3072
        %3074 = vrot.lane.b32.xlu0 %v3063, 54
        %v3075 = vpop.permute.xlu0 %3074
        %3076 = vrot.lane.b32.xlu0 %v3064, 54
        %v3077 = vpop.permute.xlu0 %3076
        %3078 = vrot.lane.b32.xlu0 %v3065, 54
        %v3079 = vpop.permute.xlu0 %3078
        %3080 = vrot.lane.b32.xlu0 %v3066, 54
        %v3081 = vpop.permute.xlu0 %3080
        %v3082 = vrot.slane %v3073, 4
        %v3083 = vrot.slane %v3075, 4
        %v3084 = vrot.slane %v3077, 4
        %v3085 = vrot.slane %v3079, 4
        %v3086 = vrot.slane %v3081, 4
        %v3087 = vsel %vm1639, %v3082, %v3083
        %v3088 = vsel %vm2190, %v3073, %v3087
        %v3089 = vsel %vm1639, %v3083, %v3084
        %v3090 = vsel %vm2190, %v3075, %v3089
        %v3091 = vsel %vm1639, %v3084, %v3085
        %v3092 = vsel %vm2190, %v3077, %v3091
        %v3093 = vsel %vm1639, %v3085, %v3086
        %v3094 = vsel %vm2190, %v3079, %v3093
        %v3095 = vsel %vm2190, %v3081, %v3086
        %3101 = vst [vmem:[#allocation5 + $0x120] sm:$0xff] %v3088
        %3102 = vst [vmem:[#allocation5 + $0x128] sm:$0xff] %v3090
        %3103 = vst [vmem:[#allocation5 + $0x130] sm:$0xff] %v3092
        %3104 = vst [vmem:[#allocation5 + $0x138] sm:$0xff] %v3094
        %3105 = vst [vmem:[#allocation5 + $0x140] sm:$0xf] %v3095
        %v3106 = vld [vmem:[%s4] sm:$0xf]
        %v3107 = vld [vmem:[#allocation5] sm:$0xff]
        %v3108 = vld [vmem:[#allocation5 + $0x8] sm:$0xff]
        %v3109 = vld [vmem:[#allocation5 + $0x10] sm:$0xff]
        %v3110 = vld [vmem:[#allocation5 + $0x18] sm:$0xff]
        %v3111 = vld [vmem:[#allocation5 + $0x20] sm:$0xf]
        %v3112 = vld [vmem:[#allocation5 + $0x24] sm:$0xff]
        %v3113 = vld [vmem:[#allocation5 + $0x2c] sm:$0xff]
        %v3114 = vld [vmem:[#allocation5 + $0x34] sm:$0xff]
        %v3115 = vld [vmem:[#allocation5 + $0x3c] sm:$0xff]
        %v3116 = vld [vmem:[#allocation5 + $0x44] sm:$0xf]
        %v3117 = vld [vmem:[#allocation5 + $0x48] sm:$0xff]
        %v3118 = vld [vmem:[#allocation5 + $0x50] sm:$0xff]
        %v3119 = vld [vmem:[#allocation5 + $0x58] sm:$0xff]
        %v3120 = vld [vmem:[#allocation5 + $0x60] sm:$0xff]
        %v3121 = vld [vmem:[#allocation5 + $0x68] sm:$0xf]
        %v3122 = vld [vmem:[#allocation5 + $0x6c] sm:$0xff]
        %v3123 = vld [vmem:[#allocation5 + $0x74] sm:$0xff]
        %v3124 = vld [vmem:[#allocation5 + $0x7c] sm:$0xff]
        %v3125 = vld [vmem:[#allocation5 + $0x84] sm:$0xff]
        %v3126 = vld [vmem:[#allocation5 + $0x8c] sm:$0xf]
        %v3127 = vld [vmem:[#allocation5 + $0x90] sm:$0xff]
        %v3128 = vld [vmem:[#allocation5 + $0x98] sm:$0xff]
        %v3129 = vld [vmem:[#allocation5 + $0xa0] sm:$0xff]
        %v3130 = vld [vmem:[#allocation5 + $0xa8] sm:$0xff]
        %v3131 = vld [vmem:[#allocation5 + $0xb0] sm:$0xf]
        %v3132 = vld [vmem:[#allocation5 + $0xb4] sm:$0xff]
        %v3133 = vld [vmem:[#allocation5 + $0xbc] sm:$0xff]
        %v3134 = vld [vmem:[#allocation5 + $0xc4] sm:$0xff]
        %v3135 = vld [vmem:[#allocation5 + $0xcc] sm:$0xff]
        %v3136 = vld [vmem:[#allocation5 + $0xd4] sm:$0xf]
        %v3137 = vld [vmem:[#allocation5 + $0xd8] sm:$0xff]
        %v3138 = vld [vmem:[#allocation5 + $0xe0] sm:$0xff]
        %v3139 = vld [vmem:[#allocation5 + $0xe8] sm:$0xff]
        %v3140 = vld [vmem:[#allocation5 + $0xf0] sm:$0xff]
        %v3141 = vld [vmem:[#allocation5 + $0xf8] sm:$0xf]
        %v3142 = vld [vmem:[#allocation5 + $0xfc] sm:$0xff]
        %v3143 = vld [vmem:[#allocation5 + $0x104] sm:$0xff]
        %v3144 = vld [vmem:[#allocation5 + $0x10c] sm:$0xff]
        %v3145 = vld [vmem:[#allocation5 + $0x114] sm:$0xff]
        %v3146 = vld [vmem:[#allocation5 + $0x11c] sm:$0xf]
        %v3147 = vld [vmem:[#allocation5 + $0x120] sm:$0xff]
        %v3148 = vld [vmem:[#allocation5 + $0x128] sm:$0xff]
        %v3149 = vld [vmem:[#allocation5 + $0x130] sm:$0xff]
        %v3150 = vld [vmem:[#allocation5 + $0x138] sm:$0xff]
        %v3151 = vld [vmem:[#allocation5 + $0x140] sm:$0xf]
        %v3152 = vld [vmem:[%s5] sm:$0xff]
        %3154 = vset.pattern.permute.xlu0 0
        %3155 = vperm.xlu0 %3154, %v3152
        %v3156 = vpop.permute.xlu0 %3155
        %v3203 = vunpack.c.l.b16 %v3107
        %v3204 = vunpack.c.h.b16 %v3107
        %v3205 = vunpack.c.l.b16 %v3108
        %v3206 = vunpack.c.h.b16 %v3108
        %v3207 = vunpack.c.l.b16 %v3109
        %v3208 = vunpack.c.h.b16 %v3109
        %v3209 = vunpack.c.l.b16 %v3110
        %v3210 = vunpack.c.h.b16 %v3110
        %v3211 = vunpack.c.l.b16 %v3111
        %v3212 = vunpack.c.l.b16 %v3112
        %v3213 = vunpack.c.h.b16 %v3112
        %v3214 = vunpack.c.l.b16 %v3113
        %v3215 = vunpack.c.h.b16 %v3113
        %v3216 = vunpack.c.l.b16 %v3114
        %v3217 = vunpack.c.h.b16 %v3114
        %v3218 = vunpack.c.l.b16 %v3115
        %v3219 = vunpack.c.h.b16 %v3115
        %v3220 = vunpack.c.l.b16 %v3116
        %v3221 = vunpack.c.l.b16 %v3117
        %v3222 = vunpack.c.h.b16 %v3117
        %v3223 = vunpack.c.l.b16 %v3118
        %v3224 = vunpack.c.h.b16 %v3118
        %v3225 = vunpack.c.l.b16 %v3119
        %v3226 = vunpack.c.h.b16 %v3119
        %v3227 = vunpack.c.l.b16 %v3120
        %v3228 = vunpack.c.h.b16 %v3120
        %v3229 = vunpack.c.l.b16 %v3121
        %v3230 = vunpack.c.l.b16 %v3122
        %v3231 = vunpack.c.h.b16 %v3122
        %v3232 = vunpack.c.l.b16 %v3123
        %v3233 = vunpack.c.h.b16 %v3123
        %v3234 = vunpack.c.l.b16 %v3124
        %v3235 = vunpack.c.h.b16 %v3124
        %v3236 = vunpack.c.l.b16 %v3125
        %v3237 = vunpack.c.h.b16 %v3125
        %v3238 = vunpack.c.l.b16 %v3126
        %v3239 = vunpack.c.l.b16 %v3127
        %v3240 = vunpack.c.h.b16 %v3127
        %v3241 = vunpack.c.l.b16 %v3128
        %v3242 = vunpack.c.h.b16 %v3128
        %v3243 = vunpack.c.l.b16 %v3129
        %v3244 = vunpack.c.h.b16 %v3129
        %v3245 = vunpack.c.l.b16 %v3130
        %v3246 = vunpack.c.h.b16 %v3130
        %v3247 = vunpack.c.l.b16 %v3131
        %v3248 = vunpack.c.l.b16 %v3132
        %v3249 = vunpack.c.h.b16 %v3132
        %v3250 = vunpack.c.l.b16 %v3133
        %v3251 = vunpack.c.h.b16 %v3133
        %v3252 = vunpack.c.l.b16 %v3134
        %v3253 = vunpack.c.h.b16 %v3134
        %v3254 = vunpack.c.l.b16 %v3135
        %v3255 = vunpack.c.h.b16 %v3135
        %v3256 = vunpack.c.l.b16 %v3136
        %v3257 = vunpack.c.l.b16 %v3137
        %v3258 = vunpack.c.h.b16 %v3137
        %v3259 = vunpack.c.l.b16 %v3138
        %v3260 = vunpack.c.h.b16 %v3138
        %v3261 = vunpack.c.l.b16 %v3139
        %v3262 = vunpack.c.h.b16 %v3139
        %v3263 = vunpack.c.l.b16 %v3140
        %v3264 = vunpack.c.h.b16 %v3140
        %v3265 = vunpack.c.l.b16 %v3141
        %v3266 = vunpack.c.l.b16 %v3142
        %v3267 = vunpack.c.h.b16 %v3142
        %v3268 = vunpack.c.l.b16 %v3143
        %v3269 = vunpack.c.h.b16 %v3143
        %v3270 = vunpack.c.l.b16 %v3144
        %v3271 = vunpack.c.h.b16 %v3144
        %v3272 = vunpack.c.l.b16 %v3145
        %v3273 = vunpack.c.h.b16 %v3145
        %v3274 = vunpack.c.l.b16 %v3146
        %v3275 = vunpack.c.l.b16 %v3147
        %v3276 = vunpack.c.h.b16 %v3147
        %v3277 = vunpack.c.l.b16 %v3148
        %v3278 = vunpack.c.h.b16 %v3148
        %v3279 = vunpack.c.l.b16 %v3149
        %v3280 = vunpack.c.h.b16 %v3149
        %v3281 = vunpack.c.l.b16 %v3150
        %v3282 = vunpack.c.h.b16 %v3150
        %v3283 = vunpack.c.l.b16 %v3151
        %v3284 = vpack.c.b16 %v3212, %v3203
        %v3285 = vpack.c.b16 %v3213, %v3204
        %v3286 = vpack.c.b16 %v3214, %v3205
        %v3287 = vpack.c.b16 %v3215, %v3206
        %v3288 = vpack.c.b16 %v3216, %v3207
        %v3289 = vpack.c.b16 %v3217, %v3208
        %v3290 = vpack.c.b16 %v3218, %v3209
        %v3291 = vpack.c.b16 %v3219, %v3210
        %v3292 = vpack.c.b16 %v3220, %v3211
        %v3293 = vpack.c.b16 %v3230, %v3221
        %v3294 = vpack.c.b16 %v3231, %v3222
        %v3295 = vpack.c.b16 %v3232, %v3223
        %v3296 = vpack.c.b16 %v3233, %v3224
        %v3297 = vpack.c.b16 %v3234, %v3225
        %v3298 = vpack.c.b16 %v3235, %v3226
        %v3299 = vpack.c.b16 %v3236, %v3227
        %v3300 = vpack.c.b16 %v3237, %v3228
        %v3301 = vpack.c.b16 %v3238, %v3229
        %v3302 = vpack.c.b16 %v3248, %v3239
        %v3303 = vpack.c.b16 %v3249, %v3240
        %v3304 = vpack.c.b16 %v3250, %v3241
        %v3305 = vpack.c.b16 %v3251, %v3242
        %v3306 = vpack.c.b16 %v3252, %v3243
        %v3307 = vpack.c.b16 %v3253, %v3244
        %v3308 = vpack.c.b16 %v3254, %v3245
        %v3309 = vpack.c.b16 %v3255, %v3246
        %v3310 = vpack.c.b16 %v3256, %v3247
        %v3311 = vpack.c.b16 %v3266, %v3257
        %v3312 = vpack.c.b16 %v3267, %v3258
        %v3313 = vpack.c.b16 %v3268, %v3259
        %v3314 = vpack.c.b16 %v3269, %v3260
        %v3315 = vpack.c.b16 %v3270, %v3261
        %v3316 = vpack.c.b16 %v3271, %v3262
        %v3317 = vpack.c.b16 %v3272, %v3263
        %v3318 = vpack.c.b16 %v3273, %v3264
        %v3319 = vpack.c.b16 %v3274, %v3265
        %v3320 = vpack.c.b16 %v3275, %v3275
        %v3321 = vpack.c.b16 %v3276, %v3276
        %v3322 = vpack.c.b16 %v3277, %v3277
        %v3323 = vpack.c.b16 %v3278, %v3278
        %v3324 = vpack.c.b16 %v3279, %v3279
        %v3325 = vpack.c.b16 %v3280, %v3280
        %v3326 = vpack.c.b16 %v3281, %v3281
        %v3327 = vpack.c.b16 %v3282, %v3282
        %v3328 = vpack.c.b16 %v3283, %v3283
        %vm3365 = vcmask 588800
        %v3367 = vsel %vm3365, %v3106, 0
        %v3370 = vsel %vm2738, %v3320, 0
        %v3373 = vsel %vm2738, %v3321, 0
        %v3376 = vsel %vm2738, %v3322, 0
        %v3379 = vsel %vm2738, %v3323, 0
        %v3382 = vsel %vm2738, %v3324, 0
        %v3385 = vsel %vm2738, %v3325, 0
        %v3388 = vsel %vm2738, %v3326, 0
        %v3391 = vsel %vm2738, %v3327, 0
        %v3394 = vsel %vm2738, %v3328, 0
        %3396 = vmatprep.subr.bf16.mxu0 %v3285
        %3397 = vmatpush1.bf16.msra.mxu0 %v3284
        %3398 = vmatprep.subr.bf16.mxu0 %v3294
        %3399 = vmatpush1.bf16.msra.mxu0 %v3293
        %3400 = vmatprep.subr.bf16.mxu0 %v3303
        %3401 = vmatpush1.bf16.msra.mxu0 %v3302
        %3402 = vmatprep.subr.bf16.mxu0 %v3312
        %3403 = vmatpush1.bf16.msra.mxu0 %v3311
        %3404 = vmatprep.subr.bf16.mxu0 %v3373
        %3405 = vmatpush1.bf16.msra.mxu0 %v3370
        %3406 = vmatprep.subr.bf16.mxu0 0
        %3407 = vmatpush1.bf16.msra.mxu0 0
        %3408 = vmatprep.subr.bf16.mxu0 0
        %3409 = vmatpush1.bf16.msra.mxu0 0
        %3410 = vmatprep.subr.bf16.mxu0 0
        %3411 = vmatpush1.bf16.msra.mxu0 0
        %3412 = vmatprep.subr.bf16.mxu0 0
        %3413 = vmatpush1.bf16.msra.mxu0 0
        %3414 = vmatprep.subr.bf16.mxu0 0
        %3415 = vmatpush1.bf16.msra.mxu0 0
        %3416 = vmatprep.subr.bf16.mxu0 0
        %3417 = vmatpush1.bf16.msra.mxu0 0
        %3418 = vmatprep.subr.bf16.mxu0 0
        %3419 = vmatpush1.bf16.msra.mxu0 0
        %3420 = vmatprep.subr.bf16.mxu0 0
        %3421 = vmatpush1.bf16.msra.mxu0 0
        %3422 = vmatprep.subr.bf16.mxu0 0
        %3423 = vmatpush1.bf16.msra.mxu0 0
        %3424 = vmatprep.subr.bf16.mxu0 0
        %3425 = vmatpush1.bf16.msra.mxu0 0
        %3426 = vmatprep.subr.bf16.mxu0 0
        %3427 = vmatpush1.bf16.msra.mxu0 0
        %3428 = vmatprep.mubr.bf16.mxu0 0
        %3429 = vmatmul.mubr.bf16.gmra.mrb[0].mxu0 %v3367
        %v3430 = vpop.f32.mrb[0].mxu0
        %v3431 = vadd.f32 %v3156, %v3430
        %v3432 = vpop.f32.mrb[0].mxu0
        %v3433 = vadd.f32 %v3156, %v3432
        %v3434 = vpop.f32.mrb[0].mxu0
        %v3435 = vpop.f32.mrb[0].mxu0
        %3436 = vdwg.mxu0
        %3437 = vmatprep.subr.bf16.mxu0 %v3287
        %3438 = vmatpush1.bf16.msra.mxu0 %v3286
        %3439 = vmatprep.subr.bf16.mxu0 %v3296
        %3440 = vmatpush1.bf16.msra.mxu0 %v3295
        %3441 = vmatprep.subr.bf16.mxu0 %v3305
        %3442 = vmatpush1.bf16.msra.mxu0 %v3304
        %3443 = vmatprep.subr.bf16.mxu0 %v3314
        %3444 = vmatpush1.bf16.msra.mxu0 %v3313
        %3445 = vmatprep.subr.bf16.mxu0 %v3379
        %3446 = vmatpush1.bf16.msra.mxu0 %v3376
        %3447 = vmatprep.subr.bf16.mxu0 0
        %3448 = vmatpush1.bf16.msra.mxu0 0
        %3449 = vmatprep.subr.bf16.mxu0 0
        %3450 = vmatpush1.bf16.msra.mxu0 0
        %3451 = vmatprep.subr.bf16.mxu0 0
        %3452 = vmatpush1.bf16.msra.mxu0 0
        %3453 = vmatprep.subr.bf16.mxu0 0
        %3454 = vmatpush1.bf16.msra.mxu0 0
        %3455 = vmatprep.subr.bf16.mxu0 0
        %3456 = vmatpush1.bf16.msra.mxu0 0
        %3457 = vmatprep.subr.bf16.mxu0 0
        %3458 = vmatpush1.bf16.msra.mxu0 0
        %3459 = vmatprep.subr.bf16.mxu0 0
        %3460 = vmatpush1.bf16.msra.mxu0 0
        %3461 = vmatprep.subr.bf16.mxu0 0
        %3462 = vmatpush1.bf16.msra.mxu0 0
        %3463 = vmatprep.subr.bf16.mxu0 0
        %3464 = vmatpush1.bf16.msra.mxu0 0
        %3465 = vmatprep.subr.bf16.mxu0 0
        %3466 = vmatpush1.bf16.msra.mxu0 0
        %3467 = vmatprep.subr.bf16.mxu0 0
        %3468 = vmatpush1.bf16.msra.mxu0 0
        %3469 = vmatprep.mubr.bf16.mxu0 0
        %3470 = vmatmul.mubr.bf16.gmra.mrb[0].mxu0 %v3367
        %v3471 = vpop.f32.mrb[0].mxu0
        %v3472 = vadd.f32 %v3156, %v3471
        %v3473 = vpop.f32.mrb[0].mxu0
        %v3474 = vadd.f32 %v3156, %v3473
        %v3475 = vpop.f32.mrb[0].mxu0
        %v3476 = vpop.f32.mrb[0].mxu0
        %3477 = vdwg.mxu0
        %3478 = vmatprep.subr.bf16.mxu0 %v3289
        %3479 = vmatpush1.bf16.msra.mxu0 %v3288
        %3480 = vmatprep.subr.bf16.mxu0 %v3298
        %3481 = vmatpush1.bf16.msra.mxu0 %v3297
        %3482 = vmatprep.subr.bf16.mxu0 %v3307
        %3483 = vmatpush1.bf16.msra.mxu0 %v3306
        %3484 = vmatprep.subr.bf16.mxu0 %v3316
        %3485 = vmatpush1.bf16.msra.mxu0 %v3315
        %3486 = vmatprep.subr.bf16.mxu0 %v3385
        %3487 = vmatpush1.bf16.msra.mxu0 %v3382
        %3488 = vmatprep.subr.bf16.mxu0 0
        %3489 = vmatpush1.bf16.msra.mxu0 0
        %3490 = vmatprep.subr.bf16.mxu0 0
        %3491 = vmatpush1.bf16.msra.mxu0 0
        %3492 = vmatprep.subr.bf16.mxu0 0
        %3493 = vmatpush1.bf16.msra.mxu0 0
        %3494 = vmatprep.subr.bf16.mxu0 0
        %3495 = vmatpush1.bf16.msra.mxu0 0
        %3496 = vmatprep.subr.bf16.mxu0 0
        %3497 = vmatpush1.bf16.msra.mxu0 0
        %3498 = vmatprep.subr.bf16.mxu0 0
        %3499 = vmatpush1.bf16.msra.mxu0 0
        %3500 = vmatprep.subr.bf16.mxu0 0
        %3501 = vmatpush1.bf16.msra.mxu0 0
        %3502 = vmatprep.subr.bf16.mxu0 0
        %3503 = vmatpush1.bf16.msra.mxu0 0
        %3504 = vmatprep.subr.bf16.mxu0 0
        %3505 = vmatpush1.bf16.msra.mxu0 0
        %3506 = vmatprep.subr.bf16.mxu0 0
        %3507 = vmatpush1.bf16.msra.mxu0 0
        %3508 = vmatprep.subr.bf16.mxu0 0
        %3509 = vmatpush1.bf16.msra.mxu0 0
        %3510 = vmatprep.mubr.bf16.mxu0 0
        %3511 = vmatmul.mubr.bf16.gmra.mrb[0].mxu0 %v3367
        %v3512 = vpop.f32.mrb[0].mxu0
        %v3513 = vadd.f32 %v3156, %v3512
        %v3514 = vpop.f32.mrb[0].mxu0
        %v3515 = vadd.f32 %v3156, %v3514
        %v3516 = vpop.f32.mrb[0].mxu0
        %v3517 = vpop.f32.mrb[0].mxu0
        %3518 = vdwg.mxu0
        %3519 = vmatprep.subr.bf16.mxu0 %v3291
        %3520 = vmatpush1.bf16.msra.mxu0 %v3290
        %3521 = vmatprep.subr.bf16.mxu0 %v3300
        %3522 = vmatpush1.bf16.msra.mxu0 %v3299
        %3523 = vmatprep.subr.bf16.mxu0 %v3309
        %3524 = vmatpush1.bf16.msra.mxu0 %v3308
        %3525 = vmatprep.subr.bf16.mxu0 %v3318
        %3526 = vmatpush1.bf16.msra.mxu0 %v3317
        %3527 = vmatprep.subr.bf16.mxu0 %v3391
        %3528 = vmatpush1.bf16.msra.mxu0 %v3388
        %3529 = vmatprep.subr.bf16.mxu0 0
        %3530 = vmatpush1.bf16.msra.mxu0 0
        %3531 = vmatprep.subr.bf16.mxu0 0
        %3532 = vmatpush1.bf16.msra.mxu0 0
        %3533 = vmatprep.subr.bf16.mxu0 0
        %3534 = vmatpush1.bf16.msra.mxu0 0
        %3535 = vmatprep.subr.bf16.mxu0 0
        %3536 = vmatpush1.bf16.msra.mxu0 0
        %3537 = vmatprep.subr.bf16.mxu0 0
        %3538 = vmatpush1.bf16.msra.mxu0 0
        %3539 = vmatprep.subr.bf16.mxu0 0
        %3540 = vmatpush1.bf16.msra.mxu0 0
        %3541 = vmatprep.subr.bf16.mxu0 0
        %3542 = vmatpush1.bf16.msra.mxu0 0
        %3543 = vmatprep.subr.bf16.mxu0 0
        %3544 = vmatpush1.bf16.msra.mxu0 0
        %3545 = vmatprep.subr.bf16.mxu0 0
        %3546 = vmatpush1.bf16.msra.mxu0 0
        %3547 = vmatprep.subr.bf16.mxu0 0
        %3548 = vmatpush1.bf16.msra.mxu0 0
        %3549 = vmatprep.subr.bf16.mxu0 0
        %3550 = vmatpush1.bf16.msra.mxu0 0
        %3551 = vmatprep.mubr.bf16.mxu0 0
        %3552 = vmatmul.mubr.bf16.gmra.mrb[0].mxu0 %v3367
        %v3553 = vpop.f32.mrb[0].mxu0
        %v3554 = vadd.f32 %v3156, %v3553
        %v3555 = vpop.f32.mrb[0].mxu0
        %v3556 = vadd.f32 %v3156, %v3555
        %v3557 = vpop.f32.mrb[0].mxu0
        %v3558 = vpop.f32.mrb[0].mxu0
        %3559 = vdwg.mxu0
        %3560 = vmatprep.subr.bf16.mxu0 0
        %3561 = vmatpush1.bf16.msra.mxu0 %v3292
        %3562 = vmatprep.subr.bf16.mxu0 0
        %3563 = vmatpush1.bf16.msra.mxu0 %v3301
        %3564 = vmatprep.subr.bf16.mxu0 0
        %3565 = vmatpush1.bf16.msra.mxu0 %v3310
        %3566 = vmatprep.subr.bf16.mxu0 0
        %3567 = vmatpush1.bf16.msra.mxu0 %v3319
        %3568 = vmatprep.subr.bf16.mxu0 0
        %3569 = vmatpush1.bf16.msra.mxu0 %v3394
        %3570 = vmatprep.subr.bf16.mxu0 0
        %3571 = vmatpush1.bf16.msra.mxu0 0
        %3572 = vmatprep.subr.bf16.mxu0 0
        %3573 = vmatpush1.bf16.msra.mxu0 0
        %3574 = vmatprep.subr.bf16.mxu0 0
        %3575 = vmatpush1.bf16.msra.mxu0 0
        %3576 = vmatprep.subr.bf16.mxu0 0
        %3577 = vmatpush1.bf16.msra.mxu0 0
        %3578 = vmatprep.subr.bf16.mxu0 0
        %3579 = vmatpush1.bf16.msra.mxu0 0
        %3580 = vmatprep.subr.bf16.mxu0 0
        %3581 = vmatpush1.bf16.msra.mxu0 0
        %3582 = vmatprep.subr.bf16.mxu0 0
        %3583 = vmatpush1.bf16.msra.mxu0 0
        %3584 = vmatprep.subr.bf16.mxu0 0
        %3585 = vmatpush1.bf16.msra.mxu0 0
        %3586 = vmatprep.subr.bf16.mxu0 0
        %3587 = vmatpush1.bf16.msra.mxu0 0
        %3588 = vmatprep.subr.bf16.mxu0 0
        %3589 = vmatpush1.bf16.msra.mxu0 0
        %3590 = vmatprep.subr.bf16.mxu0 0
        %3591 = vmatpush1.bf16.msra.mxu0 0
        %3592 = vmatprep.mubr.bf16.mxu0 0
        %3593 = vmatmul.mubr.bf16.gmra.mrb[0].mxu0 %v3367
        %v3594 = vpop.f32.mrb[0].mxu0
        %v3595 = vadd.f32 %v3156, %v3594
        %v3596 = vpop.f32.mrb[0].mxu0
        %v3597 = vpop.f32.mrb[0].mxu0
        %v3598 = vpop.f32.mrb[0].mxu0
        %3599 = vdwg.mxu0
        %v3600 = vmax.f32 %v3431, 0.0
        %v3601 = vmax.f32 %v3433, 0.0
        %v3602 = vmax.f32 %v3472, 0.0
        %v3603 = vmax.f32 %v3474, 0.0
        %v3604 = vmax.f32 %v3513, 0.0
        %v3605 = vmax.f32 %v3515, 0.0
        %v3606 = vmax.f32 %v3554, 0.0
        %v3607 = vmax.f32 %v3556, 0.0
        %v3608 = vmax.f32 %v3595, 0.0
        %v3609 = vmin.f32 %v3600, 6.0
        %v3610 = vmin.f32 %v3601, 6.0
        %v3611 = vmin.f32 %v3602, 6.0
        %v3612 = vmin.f32 %v3603, 6.0
        %v3613 = vmin.f32 %v3604, 6.0
        %v3614 = vmin.f32 %v3605, 6.0
        %v3615 = vmin.f32 %v3606, 6.0
        %v3616 = vmin.f32 %v3607, 6.0
        %v3617 = vmin.f32 %v3608, 6.0
        %v3618 = vld [vmem:[%s6] sm:$0xf]
        %v3619 = vld [vmem:[#allocation4 + $0x48] sm:$0x33]
        %v3620 = vld [vmem:[#allocation4 + $0x50] sm:$0x33]
        %v3621 = vld [vmem:[#allocation4 + $0x58] sm:$0x33]
        %v3622 = vld [vmem:[#allocation4 + $0x60] sm:$0x33]
        %v3623 = vld [vmem:[#allocation4 + $0x68] sm:$0x3]
        %v3629 = vunpack.c.l.b16 %v3619
        %v3630 = vunpack.c.h.b16 %v3619
        %v3631 = vunpack.c.l.b16 %v3620
        %v3632 = vunpack.c.h.b16 %v3620
        %v3633 = vunpack.c.l.b16 %v3621
        %v3634 = vunpack.c.h.b16 %v3621
        %v3635 = vunpack.c.l.b16 %v3622
        %v3636 = vunpack.c.h.b16 %v3622
        %v3637 = vunpack.c.l.b16 %v3623
        %v3638 = vpack.c.b16 %v3629, %v3629
        %v3639 = vpack.c.b16 %v3630, %v3630
        %v3640 = vpack.c.b16 %v3631, %v3631
        %v3641 = vpack.c.b16 %v3632, %v3632
        %v3642 = vpack.c.b16 %v3633, %v3633
        %v3643 = vpack.c.b16 %v3634, %v3634
        %v3644 = vpack.c.b16 %v3635, %v3635
        %v3645 = vpack.c.b16 %v3636, %v3636
        %v3646 = vpack.c.b16 %v3637, %v3637
        %vm3647 = vcmask 31744
        %v3649 = vsel %vm3647, %v3618, 0
        %v3652 = vsel %vm1521, %v3638, 0
        %v3655 = vsel %vm1521, %v3639, 0
        %v3658 = vsel %vm1521, %v3640, 0
        %v3661 = vsel %vm1521, %v3641, 0
        %v3664 = vsel %vm1521, %v3642, 0
        %v3667 = vsel %vm1521, %v3643, 0
        %v3670 = vsel %vm1521, %v3644, 0
        %v3673 = vsel %vm1521, %v3645, 0
        %v3676 = vsel %vm1521, %v3646, 0
        %3678 = vmatprep.subr.bf16.mxu0 %v3655
        %3679 = vmatpush1.bf16.msra.mxu0 %v3652
        %3680 = vmatprep.subr.bf16.mxu0 0
        %3681 = vmatpush1.bf16.msra.mxu0 0
        %3682 = vmatprep.subr.bf16.mxu0 0
        %3683 = vmatpush1.bf16.msra.mxu0 0
        %3684 = vmatprep.subr.bf16.mxu0 0
        %3685 = vmatpush1.bf16.msra.mxu0 0
        %3686 = vmatprep.subr.bf16.mxu0 0
        %3687 = vmatpush1.bf16.msra.mxu0 0
        %3688 = vmatprep.subr.bf16.mxu0 0
        %3689 = vmatpush1.bf16.msra.mxu0 0
        %3690 = vmatprep.subr.bf16.mxu0 0
        %3691 = vmatpush1.bf16.msra.mxu0 0
        %3692 = vmatprep.subr.bf16.mxu0 0
        %3693 = vmatpush1.bf16.msra.mxu0 0
        %3694 = vmatprep.subr.bf16.mxu0 0
        %3695 = vmatpush1.bf16.msra.mxu0 0
        %3696 = vmatprep.subr.bf16.mxu0 0
        %3697 = vmatpush1.bf16.msra.mxu0 0
        %3698 = vmatprep.subr.bf16.mxu0 0
        %3699 = vmatpush1.bf16.msra.mxu0 0
        %3700 = vmatprep.subr.bf16.mxu0 0
        %3701 = vmatpush1.bf16.msra.mxu0 0
        %3702 = vmatprep.subr.bf16.mxu0 0
        %3703 = vmatpush1.bf16.msra.mxu0 0
        %3704 = vmatprep.subr.bf16.mxu0 0
        %3705 = vmatpush1.bf16.msra.mxu0 0
        %3706 = vmatprep.subr.bf16.mxu0 0
        %3707 = vmatpush1.bf16.msra.mxu0 0
        %3708 = vmatprep.subr.bf16.mxu0 0
        %3709 = vmatpush1.bf16.msra.mxu0 0
        %3710 = vmatprep.mubr.bf16.mxu0 0
        %3711 = vmatmul.mubr.bf16.gmra.mrb[0].mxu0 %v3649
        %v3712 = vpop.f32.mrb[0].mxu0
        %v3713 = vadd.f32 0.0, %v3712
        %v3714 = vpop.f32.mrb[0].mxu0
        %v3715 = vadd.f32 0.0, %v3714
        %v3716 = vpop.f32.mrb[0].mxu0
        %v3717 = vpop.f32.mrb[0].mxu0
        %3718 = vdwg.mxu0
        %3719 = vmatprep.subr.bf16.mxu0 %v3661
        %3720 = vmatpush1.bf16.msra.mxu0 %v3658
        %3721 = vmatprep.subr.bf16.mxu0 0
        %3722 = vmatpush1.bf16.msra.mxu0 0
        %3723 = vmatprep.subr.bf16.mxu0 0
        %3724 = vmatpush1.bf16.msra.mxu0 0
        %3725 = vmatprep.subr.bf16.mxu0 0
        %3726 = vmatpush1.bf16.msra.mxu0 0
        %3727 = vmatprep.subr.bf16.mxu0 0
        %3728 = vmatpush1.bf16.msra.mxu0 0
        %3729 = vmatprep.subr.bf16.mxu0 0
        %3730 = vmatpush1.bf16.msra.mxu0 0
        %3731 = vmatprep.subr.bf16.mxu0 0
        %3732 = vmatpush1.bf16.msra.mxu0 0
        %3733 = vmatprep.subr.bf16.mxu0 0
        %3734 = vmatpush1.bf16.msra.mxu0 0
        %3735 = vmatprep.subr.bf16.mxu0 0
        %3736 = vmatpush1.bf16.msra.mxu0 0
        %3737 = vmatprep.subr.bf16.mxu0 0
        %3738 = vmatpush1.bf16.msra.mxu0 0
        %3739 = vmatprep.subr.bf16.mxu0 0
        %3740 = vmatpush1.bf16.msra.mxu0 0
        %3741 = vmatprep.subr.bf16.mxu0 0
        %3742 = vmatpush1.bf16.msra.mxu0 0
        %3743 = vmatprep.subr.bf16.mxu0 0
        %3744 = vmatpush1.bf16.msra.mxu0 0
        %3745 = vmatprep.subr.bf16.mxu0 0
        %3746 = vmatpush1.bf16.msra.mxu0 0
        %3747 = vmatprep.subr.bf16.mxu0 0
        %3748 = vmatpush1.bf16.msra.mxu0 0
        %3749 = vmatprep.subr.bf16.mxu0 0
        %3750 = vmatpush1.bf16.msra.mxu0 0
        %3751 = vmatprep.mubr.bf16.mxu0 0
        %3752 = vmatmul.mubr.bf16.gmra.mrb[0].mxu0 %v3649
        %v3753 = vpop.f32.mrb[0].mxu0
        %v3754 = vadd.f32 0.0, %v3753
        %v3755 = vpop.f32.mrb[0].mxu0
        %v3756 = vadd.f32 0.0, %v3755
        %v3757 = vpop.f32.mrb[0].mxu0
        %v3758 = vpop.f32.mrb[0].mxu0
        %3759 = vdwg.mxu0
        %3760 = vmatprep.subr.bf16.mxu0 %v3667
        %3761 = vmatpush1.bf16.msra.mxu0 %v3664
        %3762 = vmatprep.subr.bf16.mxu0 0
        %3763 = vmatpush1.bf16.msra.mxu0 0
        %3764 = vmatprep.subr.bf16.mxu0 0
        %3765 = vmatpush1.bf16.msra.mxu0 0
        %3766 = vmatprep.subr.bf16.mxu0 0
        %3767 = vmatpush1.bf16.msra.mxu0 0
        %3768 = vmatprep.subr.bf16.mxu0 0
        %3769 = vmatpush1.bf16.msra.mxu0 0
        %3770 = vmatprep.subr.bf16.mxu0 0
        %3771 = vmatpush1.bf16.msra.mxu0 0
        %3772 = vmatprep.subr.bf16.mxu0 0
        %3773 = vmatpush1.bf16.msra.mxu0 0
        %3774 = vmatprep.subr.bf16.mxu0 0
        %3775 = vmatpush1.bf16.msra.mxu0 0
        %3776 = vmatprep.subr.bf16.mxu0 0
        %3777 = vmatpush1.bf16.msra.mxu0 0
        %3778 = vmatprep.subr.bf16.mxu0 0
        %3779 = vmatpush1.bf16.msra.mxu0 0
        %3780 = vmatprep.subr.bf16.mxu0 0
        %3781 = vmatpush1.bf16.msra.mxu0 0
        %3782 = vmatprep.subr.bf16.mxu0 0
        %3783 = vmatpush1.bf16.msra.mxu0 0
        %3784 = vmatprep.subr.bf16.mxu0 0
        %3785 = vmatpush1.bf16.msra.mxu0 0
        %3786 = vmatprep.subr.bf16.mxu0 0
        %3787 = vmatpush1.bf16.msra.mxu0 0
        %3788 = vmatprep.subr.bf16.mxu0 0
        %3789 = vmatpush1.bf16.msra.mxu0 0
        %3790 = vmatprep.subr.bf16.mxu0 0
        %3791 = vmatpush1.bf16.msra.mxu0 0
        %3792 = vmatprep.mubr.bf16.mxu0 0
        %3793 = vmatmul.mubr.bf16.gmra.mrb[0].mxu0 %v3649
        %v3794 = vpop.f32.mrb[0].mxu0
        %v3795 = vadd.f32 0.0, %v3794
        %v3796 = vpop.f32.mrb[0].mxu0
        %v3797 = vadd.f32 0.0, %v3796
        %v3798 = vpop.f32.mrb[0].mxu0
        %v3799 = vpop.f32.mrb[0].mxu0
        %3800 = vdwg.mxu0
        %3801 = vmatprep.subr.bf16.mxu0 %v3673
        %3802 = vmatpush1.bf16.msra.mxu0 %v3670
        %3803 = vmatprep.subr.bf16.mxu0 0
        %3804 = vmatpush1.bf16.msra.mxu0 0
        %3805 = vmatprep.subr.bf16.mxu0 0
        %3806 = vmatpush1.bf16.msra.mxu0 0
        %3807 = vmatprep.subr.bf16.mxu0 0
        %3808 = vmatpush1.bf16.msra.mxu0 0
        %3809 = vmatprep.subr.bf16.mxu0 0
        %3810 = vmatpush1.bf16.msra.mxu0 0
        %3811 = vmatprep.subr.bf16.mxu0 0
        %3812 = vmatpush1.bf16.msra.mxu0 0
        %3813 = vmatprep.subr.bf16.mxu0 0
        %3814 = vmatpush1.bf16.msra.mxu0 0
        %3815 = vmatprep.subr.bf16.mxu0 0
        %3816 = vmatpush1.bf16.msra.mxu0 0
        %3817 = vmatprep.subr.bf16.mxu0 0
        %3818 = vmatpush1.bf16.msra.mxu0 0
        %3819 = vmatprep.subr.bf16.mxu0 0
        %3820 = vmatpush1.bf16.msra.mxu0 0
        %3821 = vmatprep.subr.bf16.mxu0 0
        %3822 = vmatpush1.bf16.msra.mxu0 0
        %3823 = vmatprep.subr.bf16.mxu0 0
        %3824 = vmatpush1.bf16.msra.mxu0 0
        %3825 = vmatprep.subr.bf16.mxu0 0
        %3826 = vmatpush1.bf16.msra.mxu0 0
        %3827 = vmatprep.subr.bf16.mxu0 0
        %3828 = vmatpush1.bf16.msra.mxu0 0
        %3829 = vmatprep.subr.bf16.mxu0 0
        %3830 = vmatpush1.bf16.msra.mxu0 0
        %3831 = vmatprep.subr.bf16.mxu0 0
        %3832 = vmatpush1.bf16.msra.mxu0 0
        %3833 = vmatprep.mubr.bf16.mxu0 0
        %3834 = vmatmul.mubr.bf16.gmra.mrb[0].mxu0 %v3649
        %v3835 = vpop.f32.mrb[0].mxu0
        %v3836 = vadd.f32 0.0, %v3835
        %v3837 = vpop.f32.mrb[0].mxu0
        %v3838 = vadd.f32 0.0, %v3837
        %v3839 = vpop.f32.mrb[0].mxu0
        %v3840 = vpop.f32.mrb[0].mxu0
        %3841 = vdwg.mxu0
        %3842 = vmatprep.subr.bf16.mxu0 0
        %3843 = vmatpush1.bf16.msra.mxu0 %v3676
        %3844 = vmatprep.subr.bf16.mxu0 0
        %3845 = vmatpush1.bf16.msra.mxu0 0
        %3846 = vmatprep.subr.bf16.mxu0 0
        %3847 = vmatpush1.bf16.msra.mxu0 0
        %3848 = vmatprep.subr.bf16.mxu0 0
        %3849 = vmatpush1.bf16.msra.mxu0 0
        %3850 = vmatprep.subr.bf16.mxu0 0
        %3851 = vmatpush1.bf16.msra.mxu0 0
        %3852 = vmatprep.subr.bf16.mxu0 0
        %3853 = vmatpush1.bf16.msra.mxu0 0
        %3854 = vmatprep.subr.bf16.mxu0 0
        %3855 = vmatpush1.bf16.msra.mxu0 0
        %3856 = vmatprep.subr.bf16.mxu0 0
        %3857 = vmatpush1.bf16.msra.mxu0 0
        %3858 = vmatprep.subr.bf16.mxu0 0
        %3859 = vmatpush1.bf16.msra.mxu0 0
        %3860 = vmatprep.subr.bf16.mxu0 0
        %3861 = vmatpush1.bf16.msra.mxu0 0
        %3862 = vmatprep.subr.bf16.mxu0 0
        %3863 = vmatpush1.bf16.msra.mxu0 0
        %3864 = vmatprep.subr.bf16.mxu0 0
        %3865 = vmatpush1.bf16.msra.mxu0 0
        %3866 = vmatprep.subr.bf16.mxu0 0
        %3867 = vmatpush1.bf16.msra.mxu0 0
        %3868 = vmatprep.subr.bf16.mxu0 0
        %3869 = vmatpush1.bf16.msra.mxu0 0
        %3870 = vmatprep.subr.bf16.mxu0 0
        %3871 = vmatpush1.bf16.msra.mxu0 0
        %3872 = vmatprep.subr.bf16.mxu0 0
        %3873 = vmatpush1.bf16.msra.mxu0 0
        %3874 = vmatprep.mubr.bf16.mxu0 0
        %3875 = vmatmul.mubr.bf16.gmra.mrb[0].mxu0 %v3649
        %v3876 = vpop.f32.mrb[0].mxu0
        %v3877 = vadd.f32 0.0, %v3876
        %v3878 = vpop.f32.mrb[0].mxu0
        %v3879 = vpop.f32.mrb[0].mxu0
        %v3880 = vpop.f32.mrb[0].mxu0
        %3881 = vdwg.mxu0
        %v3882 = vadd.f32 %v3609, %v3713
        %v3883 = vadd.f32 %v3610, %v3715
        %v3884 = vadd.f32 %v3611, %v3754
        %v3885 = vadd.f32 %v3612, %v3756
        %v3886 = vadd.f32 %v3613, %v3795
        %v3887 = vadd.f32 %v3614, %v3797
        %v3888 = vadd.f32 %v3615, %v3836
        %v3889 = vadd.f32 %v3616, %v3838
        %v3890 = vadd.f32 %v3617, %v3877
        %3891 = vst [vmem:[%s313] sm:$0xff] %v3882
        %3892 = vst [vmem:[%s313 + $0x8] sm:$0xff] %v3883
        %3893 = vst [vmem:[%s313 + $0x10] sm:$0xff] %v3884
        %3894 = vst [vmem:[%s313 + $0x18] sm:$0xff] %v3885
        %3895 = vst [vmem:[%s313 + $0x20] sm:$0xff] %v3886
        %3896 = vst [vmem:[%s313 + $0x28] sm:$0xff] %v3887
        %3897 = vst [vmem:[%s313 + $0x30] sm:$0xff] %v3888
        %3898 = vst [vmem:[%s313 + $0x38] sm:$0xff] %v3889
        %3899 = vst [vmem:[%s313 + $0x40] sm:$0xff] %v3890
        %s3900 = sand.u32 %s204, 1
        %s3901 = scalar_lea.sflag [#allocation8], %s3900
        %s3902 = sand.u32 %s204, 1
        %s3903 = smul.addr %s3902, 72
        %s3904 = scalar_lea.vmem [#allocation9], %s3903
        // Predicated region
        $region57: #{tpu_custom_call.1} parent=51 // pred_check
          %p3905 = pneg %p214
        $region58: #{tpu_custom_call.1} parent=51 // pred_check_branch
          %3907 = sbr.rel (%p3905) target = $region60
        $region59: #{tpu_custom_call.1} parent=51 // pred_region
          %s3909 = ssub.s32 1152, 1152
          %3910 = vsyncadd %s3901, %s3909
          %s3911 = smul.addr %s23, 9
          %s3912 = smul.addr %s3911, 128
          %s3913 = scalar_lea.hbm %s8, %s3912
          %s3915 = sshll.u32 %s3904, 4
          %s3916 = int_to_ptr.vmem [resolvable:$true] %s3915
          %3918 = dma.vmem_to_hbm [thread:$0]  %s3916, 1152, %s3913, %s3901
        $region60: #{tpu_custom_call.1} parent=51 // pred_fallthru
          _
      $region52: #{tpu_custom_call.1} parent=5 // pred_fallthru
        _
      %p3919 = scmp.le.s32.totalorder 2, %s18
      // Predicated region
      $region61: #{tpu_custom_call.1} parent=5 // pred_check
        %p3920 = pneg %p3919
      $region62: #{tpu_custom_call.1} parent=5 // pred_check_branch
        %3922 = sbr.rel (%p3920) target = $region64
      $region63: #{tpu_custom_call.1} parent=5 // pred_region
        %s3923 = ssub.s32 %s18, 2
        // Predicated region
        $region65: #{tpu_custom_call.1} parent=63 // pred_check
          %p3924 = pneg %p220
        $region66: #{tpu_custom_call.1} parent=63 // pred_check_branch
          %3926 = sbr.rel (%p3924) target = $region68
        $region67: #{tpu_custom_call.1} parent=63 // pred_region
          %s3927 = sand.u32 %s205, 1
          %s3928 = scalar_lea.sflag [#allocation8], %s3927
          %s3929 = sand.u32 %s205, 1
          %s3930 = smul.addr %s3929, 72
          %s3931 = scalar_lea.vmem [#allocation9], %s3930
          %3932 = dma.done %s3928, 1152
        $region68: #{tpu_custom_call.1} parent=63 // pred_fallthru
          _
      $region64: #{tpu_custom_call.1} parent=5 // pred_fallthru
        _
    $region6: #{tpu_custom_call.1} parent=1 // loop_footer
      %s22 = sadd.s32 1, %s18
    $region7: #{tpu_custom_call.1} parent=1 // loop_footer_branch
      %17 = sbr.rel target = $region3
    $region8: #{tpu_custom_call.1} parent=1 // loop_exit
      _
    %3933 = vsyncpa [#allocation7], 1
    %s3934 = scalar_lea.sflag [#allocation7], 1
    %3935 = vsyncpa %s3934, 1
    %3936 = vsyncpa [#allocation8], 1
    %s3937 = scalar_lea.sflag [#allocation8], 1
    %3938 = vsyncpa %s3937, 1

</llo_original>
